<compile_context>
chip_gen: v5e
topology: v5e:2x2
jax: 0.10.0
libtpu: 0.0.40
codegen_flags: <defaults>
</compile_context>

<pallas_src>
import functools

import jax
import jax.numpy as jnp
from jax.experimental import pallas as pl
from jax.experimental.pallas import tpu as pltpu

# ----- small, module-consistent shapes -----
B, T = 2, 8          # batch, sequence length
V, E = 50, 32        # vocab size, embedding dim
H = 128              # cell_hidden_size (module default)
NH = 4               # heads: harassment, sexual, physical, indirect


# --------------------------------------------------------------------------
# Single fused kernel
# --------------------------------------------------------------------------
def fused_kernel(ids_ref, table_ref, whh_ref, bhh_ref,
                 wa_ref, ba_ref, ubd_ref, w1_ref, b1_ref, w2bd_ref, b2_ref,
                 sel_ref, selt_ref, exp_ref,
                 out_ref, gi_ref, hs_ref, *, batch, seq, hidden, n_heads):
    f32 = jnp.float32
    bf16 = jnp.bfloat16
    tb = seq * batch

    # ---- embedding + input projection: row gather from the prefolded table ----
    # table[v] = emb[v] @ W_ih + b_ih (folded at pack time), so every gathered
    # row already is the full input-to-hidden pre-activation for that token.
    for r in range(tb):                                   # static unroll, T*B = 16
        tok = ids_ref[r]                                  # scalar read from SMEM
        gi_ref[pl.ds(r, 1), :] = table_ref[pl.ds(tok, 1), :]

    # ---- GRU recurrence (PyTorch gate order r, z, n), unrolled over T ----
    # TODO(synk): W_hh could be held stationary on the MXU across the 8 serial
    # steps via pltpu.matmul_push_rhs/acc_lhs/pop; kept as jnp.dot for safety.
    w_hh = whh_ref[...]                                   # (H, 3H) bf16
    b_hh = bhh_ref[...]                                   # (1, 3H) f32
    h = jnp.zeros((batch, hidden), f32)
    for t in range(seq):
        gi = gi_ref[pl.ds(t * batch, batch), :]           # (B, 3H) f32
        gh = jnp.dot(h.astype(bf16), w_hh, preferred_element_type=f32) + b_hh
        r_g = jax.nn.sigmoid(gi[:, :hidden] + gh[:, :hidden])
        z_g = jax.nn.sigmoid(gi[:, hidden:2 * hidden] + gh[:, hidden:2 * hidden])
        n_g = jnp.tanh(gi[:, 2 * hidden:] + r_g * gh[:, 2 * hidden:])
        h = (1.0 - z_g) * n_g + z_g * h
        hs_ref[pl.ds(t * batch, batch), :] = h            # rows t*B .. t*B+B-1

    # ---- 4 attention heads as fused wide matmuls on the flat (T*B, .) slab ----
    hs = hs_ref[...]                                      # (T*B, H) f32
    a = jnp.maximum(
        jnp.dot(hs.astype(bf16), wa_ref[...], preferred_element_type=f32)
        + ba_ref[...], 0.0)                               # (T*B, 4H) f32
    scores = jnp.dot(a, ubd_ref[...], preferred_element_type=f32)   # (T*B, NH)

    # softmax over time per (batch, head) with NO (T,B,.) reshapes:
    # subtracting the per-head global max is a constant shift within each group.
    m = jnp.max(scores, axis=0, keepdims=True)            # (1, NH)
    e = jnp.exp(scores - m)                               # (T*B, NH)
    sel = sel_ref[...]                                    # (T*B, B) row->batch one-hot
    selt = selt_ref[...]                                  # (B, T*B)
    denom = jnp.dot(selt, e, preferred_element_type=f32)  # (B, NH)  = sum_t exp
    att = e / jnp.dot(sel, denom, preferred_element_type=f32)        # (T*B, NH)

    # broadcast each head's attention weight across its H lanes with a constant
    # (NH, NH*H) ones-block expander (tiny MXU op), then reduce over time:
    att_wide = jnp.dot(att, exp_ref[...], preferred_element_type=f32)  # (T*B, 4H)
    ctx = jnp.dot(selt, att_wide * a, preferred_element_type=f32)      # (B, 4H)

    # ---- 4 decision MLPs: per-head dots accumulated straight into (B, NH) ----
    out = jnp.zeros((batch, n_heads), f32)
    for k in range(n_heads):
        lo = k * hidden
        ctx_k = ctx[:, lo:lo + hidden]                    # (B, H), 128-aligned lanes
        d1_k = jnp.maximum(
            jnp.dot(ctx_k.astype(bf16), w1_ref[k], preferred_element_type=f32)
            + b1_ref[:, lo:lo + hidden], 0.0)             # (B, H)
        # w2 is block-diagonal: this dot only contributes to output column k.
        out = out + jnp.dot(d1_k, w2bd_ref[lo:lo + hidden, :],
                            preferred_element_type=f32)
    out_ref[...] = out + b2_ref[...]


def run_fused(ids_tm, p):
    kern = functools.partial(fused_kernel, batch=B, seq=T, hidden=H, n_heads=NH)
    full = lambda i: (0, 0)
    return pl.pallas_call(
        kern,
        out_shape=jax.ShapeDtypeStruct((B, NH), jnp.float32),
        grid=(1,),
        in_specs=[
            pl.BlockSpec(memory_space=pltpu.MemorySpace.SMEM),   # ids (T*B,) int32
            pl.BlockSpec((V, 3 * H), full),                      # emb @ W_ih + b_ih
            pl.BlockSpec((H, 3 * H), full),                      # W_hh (bf16)
            pl.BlockSpec((1, 3 * H), full),                      # b_hh
            pl.BlockSpec((H, NH * H), full),                     # Wa stacked (bf16)
            pl.BlockSpec((1, NH * H), full),                     # ba stacked
            pl.BlockSpec((NH * H, NH), full),                    # u block-diagonal
            pl.BlockSpec((NH, H, H), lambda i: (0, 0, 0)),       # W1 stacked (bf16)
            pl.BlockSpec((1, NH * H), full),                     # b1 stacked
            pl.BlockSpec((NH * H, NH), full),                    # W2 block-diagonal
            pl.BlockSpec((1, NH), full),                         # b2 stacked
            pl.BlockSpec((T * B, B), full),                      # batch selector S
            pl.BlockSpec((B, T * B), full),                      # S^T
            pl.BlockSpec((NH, NH * H), full),                    # head expander E
        ],
        out_specs=pl.BlockSpec((B, NH), full),
        scratch_shapes=[pltpu.VMEM((T * B, 3 * H), jnp.float32),  # gathered gi rows
                        pltpu.VMEM((T * B, H), jnp.float32)],     # all hidden states
        compiler_params=pltpu.CompilerParams(dimension_semantics=("arbitrary",)),
    )(ids_tm, p["table"], p["w_hh"], p["b_hh"], p["wa_s"], p["ba_s"], p["u_bd"],
      p["w1_s"], p["b1_s"], p["w2_bd"], p["b2_s"], p["sel"], p["selt"], p["expand"])


# --------------------------------------------------------------------------
# Forward pass: everything except a 64-byte ids relayout lives in the kernel.
# --------------------------------------------------------------------------
@jax.jit
def multi_attention_rnn(ids, packed):
    # Only wrapper-side op: relayout the tiny (B, T) int32 ids into the
    # time-major flat (T*B,) vector (row r = t*B + b) used by the SMEM gather.
    ids_tm = jnp.transpose(ids).reshape(T * B)
    return run_fused(ids_tm, packed)                      # (B, 4)


# --------------------------------------------------------------------------
# Parameter construction: per-head weights, then packed for the kernel.
# --------------------------------------------------------------------------
def make_params(key):
    ks = jax.random.split(key, 12)
    return {
        "emb":  jax.random.normal(ks[0], (V, E), jnp.float32) * 0.1,
        # GRU weights stored transposed vs. PyTorch ((E,3H)/(H,3H)), gate order r,z,n
        "w_ih": jax.random.normal(ks[1], (E, 3 * H), jnp.float32) * 0.1,
        "w_hh": jax.random.normal(ks[2], (H, 3 * H), jnp.float32) * 0.1,
        "b_ih": jax.random.normal(ks[3], (1, 3 * H), jnp.float32) * 0.1,
        "b_hh": jax.random.normal(ks[4], (1, 3 * H), jnp.float32) * 0.1,
        # per-head params; head order = [harassment, sexual, physical, indirect]
        "wa":   jax.random.normal(ks[5], (NH, H, H), jnp.float32) * 0.05,
        "ba":   jax.random.normal(ks[6], (NH, 1, H), jnp.float32) * 0.05,
        "u":    jax.random.normal(ks[7], (NH, 1, H), jnp.float32) * 0.05,
        "w1":   jax.random.normal(ks[8], (NH, H, H), jnp.float32) * 0.05,
        "b1":   jax.random.normal(ks[9], (NH, 1, H), jnp.float32) * 0.05,
        "w2":   jax.random.normal(ks[10], (NH, H, 1), jnp.float32) * 0.05,
        "b2":   jax.random.normal(ks[11], (NH, 1, 1), jnp.float32) * 0.05,
    }


def _block_diag(blocks):
    rows = sum(b.shape[0] for b in blocks)
    cols = sum(b.shape[1] for b in blocks)
    out = jnp.zeros((rows, cols), blocks[0].dtype)
    r = c = 0
    for b in blocks:
        out = out.at[r:r + b.shape[0], c:c + b.shape[1]].set(b)
        r += b.shape[0]
        c += b.shape[1]
    return out


def pack_params(p):
    """One-time repack: fold emb into W_ih, stack heads, bf16 the big weights."""
    bf16 = jnp.bfloat16
    packed = {}
    # Fold embedding table AND b_ih into the GRU input projection
    # (valid because embedding dropout is an eval-time no-op):
    packed["table"] = (p["emb"] @ p["w_ih"] + p["b_ih"]).astype(jnp.float32)    # (V, 3H)
    packed["w_hh"] = p["w_hh"].astype(bf16)                                     # (H, 3H)
    packed["b_hh"] = p["b_hh"]                                                  # (1, 3H)
    packed["wa_s"] = jnp.concatenate([p["wa"][k] for k in range(NH)],
                                     axis=1).astype(bf16)                       # (H, 4H)
    packed["ba_s"] = jnp.concatenate([p["ba"][k] for k in range(NH)], axis=1)   # (1, 4H)
    packed["u_bd"] = _block_diag([p["u"][k].reshape(H, 1) for k in range(NH)])  # (4H, 4)
    packed["w1_s"] = p["w1"].astype(bf16)                                       # (4, H, H)
    packed["b1_s"] = jnp.concatenate([p["b1"][k] for k in range(NH)], axis=1)   # (1, 4H)
    packed["w2_bd"] = _block_diag([p["w2"][k] for k in range(NH)])              # (4H, 4)
    packed["b2_s"] = jnp.concatenate([p["b2"][k] for k in range(NH)], axis=1)   # (1, 4)
    # Tiny constant matrices (built once on host): batch selector + head expander.
    r_idx = jnp.arange(T * B)
    packed["sel"] = (r_idx[:, None] % B == jnp.arange(B)[None, :]
                     ).astype(jnp.float32)                                      # (T*B, B)
    packed["selt"] = packed["sel"].T                                            # (B, T*B)
    lane = jnp.arange(NH * H)
    packed["expand"] = (lane[None, :] // H == jnp.arange(NH)[:, None]
                        ).astype(jnp.float32)                                   # (4, 4H)
    return packed


if __name__ == "__main__":
    key = jax.random.PRNGKey(0)
    k_ids, k_par = jax.random.split(key)
    ids = jax.random.randint(k_ids, (B, T), 0, V, dtype=jnp.int32)
    params = pack_params(make_params(k_par))

    # TODO(synk): embeddings_dropout (p=0.3) and MLP dropouts are eval-time
    # no-ops and therefore omitted from the kernel.
    out = multi_attention_rnn(ids, params)
    out = jax.block_until_ready(out)

    assert out.shape == (B, NH), out.shape
    assert bool(jnp.all(jnp.isfinite(out)))
    print("KERNEL_OK")
</pallas_src>

<mosaic_0001>
module attributes {stable_mosaic.version = 11 : i64} {
  func.func @fused_kernel(%arg0: i32, %arg1: memref<16xi32, #tpu.memory_space<smem>>, %arg2: memref<50x384xf32, #tpu.memory_space<vmem>>, %arg3: memref<128x384xbf16, #tpu.memory_space<vmem>>, %arg4: memref<1x384xf32, #tpu.memory_space<vmem>>, %arg5: memref<128x512xbf16, #tpu.memory_space<vmem>>, %arg6: memref<1x512xf32, #tpu.memory_space<vmem>>, %arg7: memref<512x4xf32, #tpu.memory_space<vmem>>, %arg8: memref<4x128x128xbf16, #tpu.memory_space<vmem>>, %arg9: memref<1x512xf32, #tpu.memory_space<vmem>>, %arg10: memref<512x4xf32, #tpu.memory_space<vmem>>, %arg11: memref<1x4xf32, #tpu.memory_space<vmem>>, %arg12: memref<16x2xf32, #tpu.memory_space<vmem>>, %arg13: memref<2x16xf32, #tpu.memory_space<vmem>>, %arg14: memref<4x512xf32, #tpu.memory_space<vmem>>, %arg15: memref<2x4xf32, #tpu.memory_space<vmem>>, %arg16: memref<16x384xf32, #tpu.memory_space<vmem>>, %arg17: memref<16x128xf32, #tpu.memory_space<vmem>>) attributes {dimension_semantics = [#tpu.dimension_semantics<arbitrary>], iteration_bounds = array<i64: 1>, scalar_prefetch = 0 : i64, scratch_operands = 2 : i64, tpu.core_type = #tpu.core_type<tc>, window_params = [{transform_indices = @transform_0, window_bounds = array<i64: 16>}, {pipeline_mode = #tpu.pipeline_mode<synchronous>, transform_indices = @transform_1, window_bounds = array<i64: 50, 384>}, {pipeline_mode = #tpu.pipeline_mode<synchronous>, transform_indices = @transform_2, window_bounds = array<i64: 128, 384>}, {pipeline_mode = #tpu.pipeline_mode<synchronous>, transform_indices = @transform_3, window_bounds = array<i64: 1, 384>}, {pipeline_mode = #tpu.pipeline_mode<synchronous>, transform_indices = @transform_4, window_bounds = array<i64: 128, 512>}, {pipeline_mode = #tpu.pipeline_mode<synchronous>, transform_indices = @transform_5, window_bounds = array<i64: 1, 512>}, {pipeline_mode = #tpu.pipeline_mode<synchronous>, transform_indices = @transform_6, window_bounds = array<i64: 512, 4>}, {pipeline_mode = #tpu.pipeline_mode<synchronous>, transform_indices = @transform_7, window_bounds = array<i64: 4, 128, 128>}, {pipeline_mode = #tpu.pipeline_mode<synchronous>, transform_indices = @transform_8, window_bounds = array<i64: 1, 512>}, {pipeline_mode = #tpu.pipeline_mode<synchronous>, transform_indices = @transform_9, window_bounds = array<i64: 512, 4>}, {pipeline_mode = #tpu.pipeline_mode<synchronous>, transform_indices = @transform_10, window_bounds = array<i64: 1, 4>}, {pipeline_mode = #tpu.pipeline_mode<synchronous>, transform_indices = @transform_11, window_bounds = array<i64: 16, 2>}, {pipeline_mode = #tpu.pipeline_mode<synchronous>, transform_indices = @transform_12, window_bounds = array<i64: 2, 16>}, {pipeline_mode = #tpu.pipeline_mode<synchronous>, transform_indices = @transform_13, window_bounds = array<i64: 4, 512>}, {pipeline_mode = #tpu.pipeline_mode<synchronous>, transform_indices = @transform_14, window_bounds = array<i64: 2, 4>}]} {
    %c0 = arith.constant 0 : index
    %0 = memref.load %arg1[%c0] : memref<16xi32, #tpu.memory_space<smem>>
    %1 = arith.index_cast %0 : i32 to index
    %c0_0 = arith.constant 0 : index
    %2 = vector.load %arg2[%1, %c0_0] : memref<50x384xf32, #tpu.memory_space<vmem>>, vector<1x384xf32>
    %c0_1 = arith.constant 0 : index
    %c0_2 = arith.constant 0 : index
    %3 = vector.load %arg16[%c0_1, %c0_2] : memref<16x384xf32, #tpu.memory_space<vmem>>, vector<1x384xf32>
    tpu.vector_store %arg16[%c0_1, %c0_2], %2 {strides = array<i32>} : memref<16x384xf32, #tpu.memory_space<vmem>>, vector<1x384xf32>,
    %c1 = arith.constant 1 : index
    %4 = memref.load %arg1[%c1] : memref<16xi32, #tpu.memory_space<smem>>
    %5 = arith.index_cast %4 : i32 to index
    %c0_3 = arith.constant 0 : index
    %6 = vector.load %arg2[%5, %c0_3] : memref<50x384xf32, #tpu.memory_space<vmem>>, vector<1x384xf32>
    %c1_4 = arith.constant 1 : index
    %c0_5 = arith.constant 0 : index
    %7 = vector.load %arg16[%c1_4, %c0_5] : memref<16x384xf32, #tpu.memory_space<vmem>>, vector<1x384xf32>
    tpu.vector_store %arg16[%c1_4, %c0_5], %6 {strides = array<i32>} : memref<16x384xf32, #tpu.memory_space<vmem>>, vector<1x384xf32>,
    %c2 = arith.constant 2 : index
    %8 = memref.load %arg1[%c2] : memref<16xi32, #tpu.memory_space<smem>>
    %9 = arith.index_cast %8 : i32 to index
    %c0_6 = arith.constant 0 : index
    %10 = vector.load %arg2[%9, %c0_6] : memref<50x384xf32, #tpu.memory_space<vmem>>, vector<1x384xf32>
    %c2_7 = arith.constant 2 : index
    %c0_8 = arith.constant 0 : index
    %11 = vector.load %arg16[%c2_7, %c0_8] : memref<16x384xf32, #tpu.memory_space<vmem>>, vector<1x384xf32>
    tpu.vector_store %arg16[%c2_7, %c0_8], %10 {strides = array<i32>} : memref<16x384xf32, #tpu.memory_space<vmem>>, vector<1x384xf32>,
    %c3 = arith.constant 3 : index
    %12 = memref.load %arg1[%c3] : memref<16xi32, #tpu.memory_space<smem>>
    %13 = arith.index_cast %12 : i32 to index
    %c0_9 = arith.constant 0 : index
    %14 = vector.load %arg2[%13, %c0_9] : memref<50x384xf32, #tpu.memory_space<vmem>>, vector<1x384xf32>
    %c3_10 = arith.constant 3 : index
    %c0_11 = arith.constant 0 : index
    %15 = vector.load %arg16[%c3_10, %c0_11] : memref<16x384xf32, #tpu.memory_space<vmem>>, vector<1x384xf32>
    tpu.vector_store %arg16[%c3_10, %c0_11], %14 {strides = array<i32>} : memref<16x384xf32, #tpu.memory_space<vmem>>, vector<1x384xf32>,
    %c4 = arith.constant 4 : index
    %16 = memref.load %arg1[%c4] : memref<16xi32, #tpu.memory_space<smem>>
    %17 = arith.index_cast %16 : i32 to index
    %c0_12 = arith.constant 0 : index
    %18 = vector.load %arg2[%17, %c0_12] : memref<50x384xf32, #tpu.memory_space<vmem>>, vector<1x384xf32>
    %c4_13 = arith.constant 4 : index
    %c0_14 = arith.constant 0 : index
    %19 = vector.load %arg16[%c4_13, %c0_14] : memref<16x384xf32, #tpu.memory_space<vmem>>, vector<1x384xf32>
    tpu.vector_store %arg16[%c4_13, %c0_14], %18 {strides = array<i32>} : memref<16x384xf32, #tpu.memory_space<vmem>>, vector<1x384xf32>,
    %c5 = arith.constant 5 : index
    %20 = memref.load %arg1[%c5] : memref<16xi32, #tpu.memory_space<smem>>
    %21 = arith.index_cast %20 : i32 to index
    %c0_15 = arith.constant 0 : index
    %22 = vector.load %arg2[%21, %c0_15] : memref<50x384xf32, #tpu.memory_space<vmem>>, vector<1x384xf32>
    %c5_16 = arith.constant 5 : index
    %c0_17 = arith.constant 0 : index
    %23 = vector.load %arg16[%c5_16, %c0_17] : memref<16x384xf32, #tpu.memory_space<vmem>>, vector<1x384xf32>
    tpu.vector_store %arg16[%c5_16, %c0_17], %22 {strides = array<i32>} : memref<16x384xf32, #tpu.memory_space<vmem>>, vector<1x384xf32>,
    %c6 = arith.constant 6 : index
    %24 = memref.load %arg1[%c6] : memref<16xi32, #tpu.memory_space<smem>>
    %25 = arith.index_cast %24 : i32 to index
    %c0_18 = arith.constant 0 : index
    %26 = vector.load %arg2[%25, %c0_18] : memref<50x384xf32, #tpu.memory_space<vmem>>, vector<1x384xf32>
    %c6_19 = arith.constant 6 : index
    %c0_20 = arith.constant 0 : index
    %27 = vector.load %arg16[%c6_19, %c0_20] : memref<16x384xf32, #tpu.memory_space<vmem>>, vector<1x384xf32>
    tpu.vector_store %arg16[%c6_19, %c0_20], %26 {strides = array<i32>} : memref<16x384xf32, #tpu.memory_space<vmem>>, vector<1x384xf32>,
    %c7 = arith.constant 7 : index
    %28 = memref.load %arg1[%c7] : memref<16xi32, #tpu.memory_space<smem>>
    %29 = arith.index_cast %28 : i32 to index
    %c0_21 = arith.constant 0 : index
    %30 = vector.load %arg2[%29, %c0_21] : memref<50x384xf32, #tpu.memory_space<vmem>>, vector<1x384xf32>
    %c7_22 = arith.constant 7 : index
    %c0_23 = arith.constant 0 : index
    %31 = vector.load %arg16[%c7_22, %c0_23] : memref<16x384xf32, #tpu.memory_space<vmem>>, vector<1x384xf32>
    tpu.vector_store %arg16[%c7_22, %c0_23], %30 {strides = array<i32>} : memref<16x384xf32, #tpu.memory_space<vmem>>, vector<1x384xf32>,
    %c8 = arith.constant 8 : index
    %32 = memref.load %arg1[%c8] : memref<16xi32, #tpu.memory_space<smem>>
    %33 = arith.index_cast %32 : i32 to index
    %c0_24 = arith.constant 0 : index
    %34 = vector.load %arg2[%33, %c0_24] : memref<50x384xf32, #tpu.memory_space<vmem>>, vector<1x384xf32>
    %c8_25 = arith.constant 8 : index
    %c0_26 = arith.constant 0 : index
    %35 = vector.load %arg16[%c8_25, %c0_26] : memref<16x384xf32, #tpu.memory_space<vmem>>, vector<1x384xf32>
    tpu.vector_store %arg16[%c8_25, %c0_26], %34 {strides = array<i32>} : memref<16x384xf32, #tpu.memory_space<vmem>>, vector<1x384xf32>,
    %c9 = arith.constant 9 : index
    %36 = memref.load %arg1[%c9] : memref<16xi32, #tpu.memory_space<smem>>
    %37 = arith.index_cast %36 : i32 to index
    %c0_27 = arith.constant 0 : index
    %38 = vector.load %arg2[%37, %c0_27] : memref<50x384xf32, #tpu.memory_space<vmem>>, vector<1x384xf32>
    %c9_28 = arith.constant 9 : index
    %c0_29 = arith.constant 0 : index
    %39 = vector.load %arg16[%c9_28, %c0_29] : memref<16x384xf32, #tpu.memory_space<vmem>>, vector<1x384xf32>
    tpu.vector_store %arg16[%c9_28, %c0_29], %38 {strides = array<i32>} : memref<16x384xf32, #tpu.memory_space<vmem>>, vector<1x384xf32>,
    %c10 = arith.constant 10 : index
    %40 = memref.load %arg1[%c10] : memref<16xi32, #tpu.memory_space<smem>>
    %41 = arith.index_cast %40 : i32 to index
    %c0_30 = arith.constant 0 : index
    %42 = vector.load %arg2[%41, %c0_30] : memref<50x384xf32, #tpu.memory_space<vmem>>, vector<1x384xf32>
    %c10_31 = arith.constant 10 : index
    %c0_32 = arith.constant 0 : index
    %43 = vector.load %arg16[%c10_31, %c0_32] : memref<16x384xf32, #tpu.memory_space<vmem>>, vector<1x384xf32>
    tpu.vector_store %arg16[%c10_31, %c0_32], %42 {strides = array<i32>} : memref<16x384xf32, #tpu.memory_space<vmem>>, vector<1x384xf32>,
    %c11 = arith.constant 11 : index
    %44 = memref.load %arg1[%c11] : memref<16xi32, #tpu.memory_space<smem>>
    %45 = arith.index_cast %44 : i32 to index
    %c0_33 = arith.constant 0 : index
    %46 = vector.load %arg2[%45, %c0_33] : memref<50x384xf32, #tpu.memory_space<vmem>>, vector<1x384xf32>
    %c11_34 = arith.constant 11 : index
    %c0_35 = arith.constant 0 : index
    %47 = vector.load %arg16[%c11_34, %c0_35] : memref<16x384xf32, #tpu.memory_space<vmem>>, vector<1x384xf32>
    tpu.vector_store %arg16[%c11_34, %c0_35], %46 {strides = array<i32>} : memref<16x384xf32, #tpu.memory_space<vmem>>, vector<1x384xf32>,
    %c12 = arith.constant 12 : index
    %48 = memref.load %arg1[%c12] : memref<16xi32, #tpu.memory_space<smem>>
    %49 = arith.index_cast %48 : i32 to index
    %c0_36 = arith.constant 0 : index
    %50 = vector.load %arg2[%49, %c0_36] : memref<50x384xf32, #tpu.memory_space<vmem>>, vector<1x384xf32>
    %c12_37 = arith.constant 12 : index
    %c0_38 = arith.constant 0 : index
    %51 = vector.load %arg16[%c12_37, %c0_38] : memref<16x384xf32, #tpu.memory_space<vmem>>, vector<1x384xf32>
    tpu.vector_store %arg16[%c12_37, %c0_38], %50 {strides = array<i32>} : memref<16x384xf32, #tpu.memory_space<vmem>>, vector<1x384xf32>,
    %c13 = arith.constant 13 : index
    %52 = memref.load %arg1[%c13] : memref<16xi32, #tpu.memory_space<smem>>
    %53 = arith.index_cast %52 : i32 to index
    %c0_39 = arith.constant 0 : index
    %54 = vector.load %arg2[%53, %c0_39] : memref<50x384xf32, #tpu.memory_space<vmem>>, vector<1x384xf32>
    %c13_40 = arith.constant 13 : index
    %c0_41 = arith.constant 0 : index
    %55 = vector.load %arg16[%c13_40, %c0_41] : memref<16x384xf32, #tpu.memory_space<vmem>>, vector<1x384xf32>
    tpu.vector_store %arg16[%c13_40, %c0_41], %54 {strides = array<i32>} : memref<16x384xf32, #tpu.memory_space<vmem>>, vector<1x384xf32>,
    %c14 = arith.constant 14 : index
    %56 = memref.load %arg1[%c14] : memref<16xi32, #tpu.memory_space<smem>>
    %57 = arith.index_cast %56 : i32 to index
    %c0_42 = arith.constant 0 : index
    %58 = vector.load %arg2[%57, %c0_42] : memref<50x384xf32, #tpu.memory_space<vmem>>, vector<1x384xf32>
    %c14_43 = arith.constant 14 : index
    %c0_44 = arith.constant 0 : index
    %59 = vector.load %arg16[%c14_43, %c0_44] : memref<16x384xf32, #tpu.memory_space<vmem>>, vector<1x384xf32>
    tpu.vector_store %arg16[%c14_43, %c0_44], %58 {strides = array<i32>} : memref<16x384xf32, #tpu.memory_space<vmem>>, vector<1x384xf32>,
    %c15 = arith.constant 15 : index
    %60 = memref.load %arg1[%c15] : memref<16xi32, #tpu.memory_space<smem>>
    %61 = arith.index_cast %60 : i32 to index
    %c0_45 = arith.constant 0 : index
    %62 = vector.load %arg2[%61, %c0_45] : memref<50x384xf32, #tpu.memory_space<vmem>>, vector<1x384xf32>
    %c15_46 = arith.constant 15 : index
    %c0_47 = arith.constant 0 : index
    %63 = vector.load %arg16[%c15_46, %c0_47] : memref<16x384xf32, #tpu.memory_space<vmem>>, vector<1x384xf32>
    tpu.vector_store %arg16[%c15_46, %c0_47], %62 {strides = array<i32>} : memref<16x384xf32, #tpu.memory_space<vmem>>, vector<1x384xf32>,
    %c0_48 = arith.constant 0 : index
    %c0_49 = arith.constant 0 : index
    %64 = vector.load %arg3[%c0_48, %c0_49] : memref<128x384xbf16, #tpu.memory_space<vmem>>, vector<128x384xbf16>
    %c0_50 = arith.constant 0 : index
    %c0_51 = arith.constant 0 : index
    %65 = vector.load %arg4[%c0_50, %c0_51] : memref<1x384xf32, #tpu.memory_space<vmem>>, vector<1x384xf32>
    %cst = arith.constant 0.000000e+00 : f32
    %66 = vector.broadcast %cst : f32 to vector<2x128xf32>
    %c0_52 = arith.constant 0 : index
    %c0_53 = arith.constant 0 : index
    %67 = vector.load %arg16[%c0_52, %c0_53] : memref<16x384xf32, #tpu.memory_space<vmem>>, vector<2x384xf32>
    %68 = arith.truncf %66 : vector<2x128xf32> to vector<2x128xbf16>
    %cst_54 = arith.constant dense<0.000000e+00> : vector<2x384xf32>
    %69 = tpu.matmul %68, %64, %cst_54 {dimension_numbers = #tpu.dot_dimension_numbers<[1], [0], [0], [1], [0, 0, 1, 1], [], []>} : vector<2x128xbf16>, vector<128x384xbf16>, vector<2x384xf32> -> vector<2x384xf32>
    %70 = vector.broadcast %65 : vector<1x384xf32> to vector<2x384xf32>
    %71 = arith.addf %69, %70 : vector<2x384xf32>
    %72 = vector.extract_strided_slice %67 {offsets = [0, 0], sizes = [2, 128], strides = [1, 1]} : vector<2x384xf32> to vector<2x128xf32>
    %73 = vector.extract_strided_slice %71 {offsets = [0, 0], sizes = [2, 128], strides = [1, 1]} : vector<2x384xf32> to vector<2x128xf32>
    %74 = arith.addf %72, %73 : vector<2x128xf32>
    %75 = arith.negf %74 : vector<2x128xf32>
    %76 = math.exp %75 : vector<2x128xf32>
    %cst_55 = arith.constant 1.000000e+00 : f32
    %77 = vector.broadcast %cst_55 : f32 to vector<2x128xf32>
    %78 = arith.addf %77, %76 : vector<2x128xf32>
    %79 = arith.divf %77, %78 : vector<2x128xf32>
    %80 = vector.extract_strided_slice %67 {offsets = [0, 128], sizes = [2, 128], strides = [1, 1]} : vector<2x384xf32> to vector<2x128xf32>
    %81 = vector.extract_strided_slice %71 {offsets = [0, 128], sizes = [2, 128], strides = [1, 1]} : vector<2x384xf32> to vector<2x128xf32>
    %82 = arith.addf %80, %81 : vector<2x128xf32>
    %83 = arith.negf %82 : vector<2x128xf32>
    %84 = math.exp %83 : vector<2x128xf32>
    %cst_56 = arith.constant 1.000000e+00 : f32
    %85 = vector.broadcast %cst_56 : f32 to vector<2x128xf32>
    %86 = arith.addf %85, %84 : vector<2x128xf32>
    %87 = arith.divf %85, %86 : vector<2x128xf32>
    %88 = vector.extract_strided_slice %67 {offsets = [0, 256], sizes = [2, 128], strides = [1, 1]} : vector<2x384xf32> to vector<2x128xf32>
    %89 = vector.extract_strided_slice %71 {offsets = [0, 256], sizes = [2, 128], strides = [1, 1]} : vector<2x384xf32> to vector<2x128xf32>
    %90 = arith.mulf %79, %89 : vector<2x128xf32>
    %91 = arith.addf %88, %90 : vector<2x128xf32>
    %92 = math.tanh %91 : vector<2x128xf32>
    %cst_57 = arith.constant 1.000000e+00 : f32
    %93 = vector.broadcast %cst_57 : f32 to vector<2x128xf32>
    %94 = arith.subf %93, %87 : vector<2x128xf32>
    %95 = arith.mulf %94, %92 : vector<2x128xf32>
    %96 = arith.mulf %87, %66 : vector<2x128xf32>
    %97 = arith.addf %95, %96 : vector<2x128xf32>
    %c0_58 = arith.constant 0 : index
    %c0_59 = arith.constant 0 : index
    %98 = vector.load %arg17[%c0_58, %c0_59] : memref<16x128xf32, #tpu.memory_space<vmem>>, vector<2x128xf32>
    tpu.vector_store %arg17[%c0_58, %c0_59], %97 {strides = array<i32>} : memref<16x128xf32, #tpu.memory_space<vmem>>, vector<2x128xf32>,
    %c2_60 = arith.constant 2 : index
    %c0_61 = arith.constant 0 : index
    %99 = vector.load %arg16[%c2_60, %c0_61] : memref<16x384xf32, #tpu.memory_space<vmem>>, vector<2x384xf32>
    %100 = arith.truncf %97 : vector<2x128xf32> to vector<2x128xbf16>
    %cst_62 = arith.constant dense<0.000000e+00> : vector<2x384xf32>
    %101 = tpu.matmul %100, %64, %cst_62 {dimension_numbers = #tpu.dot_dimension_numbers<[1], [0], [0], [1], [0, 0, 1, 1], [], []>} : vector<2x128xbf16>, vector<128x384xbf16>, vector<2x384xf32> -> vector<2x384xf32>
    %102 = vector.broadcast %65 : vector<1x384xf32> to vector<2x384xf32>
    %103 = arith.addf %101, %102 : vector<2x384xf32>
    %104 = vector.extract_strided_slice %99 {offsets = [0, 0], sizes = [2, 128], strides = [1, 1]} : vector<2x384xf32> to vector<2x128xf32>
    %105 = vector.extract_strided_slice %103 {offsets = [0, 0], sizes = [2, 128], strides = [1, 1]} : vector<2x384xf32> to vector<2x128xf32>
    %106 = arith.addf %104, %105 : vector<2x128xf32>
    %107 = arith.negf %106 : vector<2x128xf32>
    %108 = math.exp %107 : vector<2x128xf32>
    %cst_63 = arith.constant 1.000000e+00 : f32
    %109 = vector.broadcast %cst_63 : f32 to vector<2x128xf32>
    %110 = arith.addf %109, %108 : vector<2x128xf32>
    %111 = arith.divf %109, %110 : vector<2x128xf32>
    %112 = vector.extract_strided_slice %99 {offsets = [0, 128], sizes = [2, 128], strides = [1, 1]} : vector<2x384xf32> to vector<2x128xf32>
    %113 = vector.extract_strided_slice %103 {offsets = [0, 128], sizes = [2, 128], strides = [1, 1]} : vector<2x384xf32> to vector<2x128xf32>
    %114 = arith.addf %112, %113 : vector<2x128xf32>
    %115 = arith.negf %114 : vector<2x128xf32>
    %116 = math.exp %115 : vector<2x128xf32>
    %cst_64 = arith.constant 1.000000e+00 : f32
    %117 = vector.broadcast %cst_64 : f32 to vector<2x128xf32>
    %118 = arith.addf %117, %116 : vector<2x128xf32>
    %119 = arith.divf %117, %118 : vector<2x128xf32>
    %120 = vector.extract_strided_slice %99 {offsets = [0, 256], sizes = [2, 128], strides = [1, 1]} : vector<2x384xf32> to vector<2x128xf32>
    %121 = vector.extract_strided_slice %103 {offsets = [0, 256], sizes = [2, 128], strides = [1, 1]} : vector<2x384xf32> to vector<2x128xf32>
    %122 = arith.mulf %111, %121 : vector<2x128xf32>
    %123 = arith.addf %120, %122 : vector<2x128xf32>
    %124 = math.tanh %123 : vector<2x128xf32>
    %cst_65 = arith.constant 1.000000e+00 : f32
    %125 = vector.broadcast %cst_65 : f32 to vector<2x128xf32>
    %126 = arith.subf %125, %119 : vector<2x128xf32>
    %127 = arith.mulf %126, %124 : vector<2x128xf32>
    %128 = arith.mulf %119, %97 : vector<2x128xf32>
    %129 = arith.addf %127, %128 : vector<2x128xf32>
    %c2_66 = arith.constant 2 : index
    %c0_67 = arith.constant 0 : index
    %130 = vector.load %arg17[%c2_66, %c0_67] : memref<16x128xf32, #tpu.memory_space<vmem>>, vector<2x128xf32>
    tpu.vector_store %arg17[%c2_66, %c0_67], %129 {strides = array<i32>} : memref<16x128xf32, #tpu.memory_space<vmem>>, vector<2x128xf32>,
    %c4_68 = arith.constant 4 : index
    %c0_69 = arith.constant 0 : index
    %131 = vector.load %arg16[%c4_68, %c0_69] : memref<16x384xf32, #tpu.memory_space<vmem>>, vector<2x384xf32>
    %132 = arith.truncf %129 : vector<2x128xf32> to vector<2x128xbf16>
    %cst_70 = arith.constant dense<0.000000e+00> : vector<2x384xf32>
    %133 = tpu.matmul %132, %64, %cst_70 {dimension_numbers = #tpu.dot_dimension_numbers<[1], [0], [0], [1], [0, 0, 1, 1], [], []>} : vector<2x128xbf16>, vector<128x384xbf16>, vector<2x384xf32> -> vector<2x384xf32>
    %134 = vector.broadcast %65 : vector<1x384xf32> to vector<2x384xf32>
    %135 = arith.addf %133, %134 : vector<2x384xf32>
    %136 = vector.extract_strided_slice %131 {offsets = [0, 0], sizes = [2, 128], strides = [1, 1]} : vector<2x384xf32> to vector<2x128xf32>
    %137 = vector.extract_strided_slice %135 {offsets = [0, 0], sizes = [2, 128], strides = [1, 1]} : vector<2x384xf32> to vector<2x128xf32>
    %138 = arith.addf %136, %137 : vector<2x128xf32>
    %139 = arith.negf %138 : vector<2x128xf32>
    %140 = math.exp %139 : vector<2x128xf32>
    %cst_71 = arith.constant 1.000000e+00 : f32
    %141 = vector.broadcast %cst_71 : f32 to vector<2x128xf32>
    %142 = arith.addf %141, %140 : vector<2x128xf32>
    %143 = arith.divf %141, %142 : vector<2x128xf32>
    %144 = vector.extract_strided_slice %131 {offsets = [0, 128], sizes = [2, 128], strides = [1, 1]} : vector<2x384xf32> to vector<2x128xf32>
    %145 = vector.extract_strided_slice %135 {offsets = [0, 128], sizes = [2, 128], strides = [1, 1]} : vector<2x384xf32> to vector<2x128xf32>
    %146 = arith.addf %144, %145 : vector<2x128xf32>
    %147 = arith.negf %146 : vector<2x128xf32>
    %148 = math.exp %147 : vector<2x128xf32>
    %cst_72 = arith.constant 1.000000e+00 : f32
    %149 = vector.broadcast %cst_72 : f32 to vector<2x128xf32>
    %150 = arith.addf %149, %148 : vector<2x128xf32>
    %151 = arith.divf %149, %150 : vector<2x128xf32>
    %152 = vector.extract_strided_slice %131 {offsets = [0, 256], sizes = [2, 128], strides = [1, 1]} : vector<2x384xf32> to vector<2x128xf32>
    %153 = vector.extract_strided_slice %135 {offsets = [0, 256], sizes = [2, 128], strides = [1, 1]} : vector<2x384xf32> to vector<2x128xf32>
    %154 = arith.mulf %143, %153 : vector<2x128xf32>
    %155 = arith.addf %152, %154 : vector<2x128xf32>
    %156 = math.tanh %155 : vector<2x128xf32>
    %cst_73 = arith.constant 1.000000e+00 : f32
    %157 = vector.broadcast %cst_73 : f32 to vector<2x128xf32>
    %158 = arith.subf %157, %151 : vector<2x128xf32>
    %159 = arith.mulf %158, %156 : vector<2x128xf32>
    %160 = arith.mulf %151, %129 : vector<2x128xf32>
    %161 = arith.addf %159, %160 : vector<2x128xf32>
    %c4_74 = arith.constant 4 : index
    %c0_75 = arith.constant 0 : index
    %162 = vector.load %arg17[%c4_74, %c0_75] : memref<16x128xf32, #tpu.memory_space<vmem>>, vector<2x128xf32>
    tpu.vector_store %arg17[%c4_74, %c0_75], %161 {strides = array<i32>} : memref<16x128xf32, #tpu.memory_space<vmem>>, vector<2x128xf32>,
    %c6_76 = arith.constant 6 : index
    %c0_77 = arith.constant 0 : index
    %163 = vector.load %arg16[%c6_76, %c0_77] : memref<16x384xf32, #tpu.memory_space<vmem>>, vector<2x384xf32>
    %164 = arith.truncf %161 : vector<2x128xf32> to vector<2x128xbf16>
    %cst_78 = arith.constant dense<0.000000e+00> : vector<2x384xf32>
    %165 = tpu.matmul %164, %64, %cst_78 {dimension_numbers = #tpu.dot_dimension_numbers<[1], [0], [0], [1], [0, 0, 1, 1], [], []>} : vector<2x128xbf16>, vector<128x384xbf16>, vector<2x384xf32> -> vector<2x384xf32>
    %166 = vector.broadcast %65 : vector<1x384xf32> to vector<2x384xf32>
    %167 = arith.addf %165, %166 : vector<2x384xf32>
    %168 = vector.extract_strided_slice %163 {offsets = [0, 0], sizes = [2, 128], strides = [1, 1]} : vector<2x384xf32> to vector<2x128xf32>
    %169 = vector.extract_strided_slice %167 {offsets = [0, 0], sizes = [2, 128], strides = [1, 1]} : vector<2x384xf32> to vector<2x128xf32>
    %170 = arith.addf %168, %169 : vector<2x128xf32>
    %171 = arith.negf %170 : vector<2x128xf32>
    %172 = math.exp %171 : vector<2x128xf32>
    %cst_79 = arith.constant 1.000000e+00 : f32
    %173 = vector.broadcast %cst_79 : f32 to vector<2x128xf32>
    %174 = arith.addf %173, %172 : vector<2x128xf32>
    %175 = arith.divf %173, %174 : vector<2x128xf32>
    %176 = vector.extract_strided_slice %163 {offsets = [0, 128], sizes = [2, 128], strides = [1, 1]} : vector<2x384xf32> to vector<2x128xf32>
    %177 = vector.extract_strided_slice %167 {offsets = [0, 128], sizes = [2, 128], strides = [1, 1]} : vector<2x384xf32> to vector<2x128xf32>
    %178 = arith.addf %176, %177 : vector<2x128xf32>
    %179 = arith.negf %178 : vector<2x128xf32>
    %180 = math.exp %179 : vector<2x128xf32>
    %cst_80 = arith.constant 1.000000e+00 : f32
    %181 = vector.broadcast %cst_80 : f32 to vector<2x128xf32>
    %182 = arith.addf %181, %180 : vector<2x128xf32>
    %183 = arith.divf %181, %182 : vector<2x128xf32>
    %184 = vector.extract_strided_slice %163 {offsets = [0, 256], sizes = [2, 128], strides = [1, 1]} : vector<2x384xf32> to vector<2x128xf32>
    %185 = vector.extract_strided_slice %167 {offsets = [0, 256], sizes = [2, 128], strides = [1, 1]} : vector<2x384xf32> to vector<2x128xf32>
    %186 = arith.mulf %175, %185 : vector<2x128xf32>
    %187 = arith.addf %184, %186 : vector<2x128xf32>
    %188 = math.tanh %187 : vector<2x128xf32>
    %cst_81 = arith.constant 1.000000e+00 : f32
    %189 = vector.broadcast %cst_81 : f32 to vector<2x128xf32>
    %190 = arith.subf %189, %183 : vector<2x128xf32>
    %191 = arith.mulf %190, %188 : vector<2x128xf32>
    %192 = arith.mulf %183, %161 : vector<2x128xf32>
    %193 = arith.addf %191, %192 : vector<2x128xf32>
    %c6_82 = arith.constant 6 : index
    %c0_83 = arith.constant 0 : index
    %194 = vector.load %arg17[%c6_82, %c0_83] : memref<16x128xf32, #tpu.memory_space<vmem>>, vector<2x128xf32>
    tpu.vector_store %arg17[%c6_82, %c0_83], %193 {strides = array<i32>} : memref<16x128xf32, #tpu.memory_space<vmem>>, vector<2x128xf32>,
    %c8_84 = arith.constant 8 : index
    %c0_85 = arith.constant 0 : index
    %195 = vector.load %arg16[%c8_84, %c0_85] : memref<16x384xf32, #tpu.memory_space<vmem>>, vector<2x384xf32>
    %196 = arith.truncf %193 : vector<2x128xf32> to vector<2x128xbf16>
    %cst_86 = arith.constant dense<0.000000e+00> : vector<2x384xf32>
    %197 = tpu.matmul %196, %64, %cst_86 {dimension_numbers = #tpu.dot_dimension_numbers<[1], [0], [0], [1], [0, 0, 1, 1], [], []>} : vector<2x128xbf16>, vector<128x384xbf16>, vector<2x384xf32> -> vector<2x384xf32>
    %198 = vector.broadcast %65 : vector<1x384xf32> to vector<2x384xf32>
    %199 = arith.addf %197, %198 : vector<2x384xf32>
    %200 = vector.extract_strided_slice %195 {offsets = [0, 0], sizes = [2, 128], strides = [1, 1]} : vector<2x384xf32> to vector<2x128xf32>
    %201 = vector.extract_strided_slice %199 {offsets = [0, 0], sizes = [2, 128], strides = [1, 1]} : vector<2x384xf32> to vector<2x128xf32>
    %202 = arith.addf %200, %201 : vector<2x128xf32>
    %203 = arith.negf %202 : vector<2x128xf32>
    %204 = math.exp %203 : vector<2x128xf32>
    %cst_87 = arith.constant 1.000000e+00 : f32
    %205 = vector.broadcast %cst_87 : f32 to vector<2x128xf32>
    %206 = arith.addf %205, %204 : vector<2x128xf32>
    %207 = arith.divf %205, %206 : vector<2x128xf32>
    %208 = vector.extract_strided_slice %195 {offsets = [0, 128], sizes = [2, 128], strides = [1, 1]} : vector<2x384xf32> to vector<2x128xf32>
    %209 = vector.extract_strided_slice %199 {offsets = [0, 128], sizes = [2, 128], strides = [1, 1]} : vector<2x384xf32> to vector<2x128xf32>
    %210 = arith.addf %208, %209 : vector<2x128xf32>
    %211 = arith.negf %210 : vector<2x128xf32>
    %212 = math.exp %211 : vector<2x128xf32>
    %cst_88 = arith.constant 1.000000e+00 : f32
    %213 = vector.broadcast %cst_88 : f32 to vector<2x128xf32>
    %214 = arith.addf %213, %212 : vector<2x128xf32>
    %215 = arith.divf %213, %214 : vector<2x128xf32>
    %216 = vector.extract_strided_slice %195 {offsets = [0, 256], sizes = [2, 128], strides = [1, 1]} : vector<2x384xf32> to vector<2x128xf32>
    %217 = vector.extract_strided_slice %199 {offsets = [0, 256], sizes = [2, 128], strides = [1, 1]} : vector<2x384xf32> to vector<2x128xf32>
    %218 = arith.mulf %207, %217 : vector<2x128xf32>
    %219 = arith.addf %216, %218 : vector<2x128xf32>
    %220 = math.tanh %219 : vector<2x128xf32>
    %cst_89 = arith.constant 1.000000e+00 : f32
    %221 = vector.broadcast %cst_89 : f32 to vector<2x128xf32>
    %222 = arith.subf %221, %215 : vector<2x128xf32>
    %223 = arith.mulf %222, %220 : vector<2x128xf32>
    %224 = arith.mulf %215, %193 : vector<2x128xf32>
    %225 = arith.addf %223, %224 : vector<2x128xf32>
    %c8_90 = arith.constant 8 : index
    %c0_91 = arith.constant 0 : index
    %226 = vector.load %arg17[%c8_90, %c0_91] : memref<16x128xf32, #tpu.memory_space<vmem>>, vector<2x128xf32>
    tpu.vector_store %arg17[%c8_90, %c0_91], %225 {strides = array<i32>} : memref<16x128xf32, #tpu.memory_space<vmem>>, vector<2x128xf32>,
    %c10_92 = arith.constant 10 : index
    %c0_93 = arith.constant 0 : index
    %227 = vector.load %arg16[%c10_92, %c0_93] : memref<16x384xf32, #tpu.memory_space<vmem>>, vector<2x384xf32>
    %228 = arith.truncf %225 : vector<2x128xf32> to vector<2x128xbf16>
    %cst_94 = arith.constant dense<0.000000e+00> : vector<2x384xf32>
    %229 = tpu.matmul %228, %64, %cst_94 {dimension_numbers = #tpu.dot_dimension_numbers<[1], [0], [0], [1], [0, 0, 1, 1], [], []>} : vector<2x128xbf16>, vector<128x384xbf16>, vector<2x384xf32> -> vector<2x384xf32>
    %230 = vector.broadcast %65 : vector<1x384xf32> to vector<2x384xf32>
    %231 = arith.addf %229, %230 : vector<2x384xf32>
    %232 = vector.extract_strided_slice %227 {offsets = [0, 0], sizes = [2, 128], strides = [1, 1]} : vector<2x384xf32> to vector<2x128xf32>
    %233 = vector.extract_strided_slice %231 {offsets = [0, 0], sizes = [2, 128], strides = [1, 1]} : vector<2x384xf32> to vector<2x128xf32>
    %234 = arith.addf %232, %233 : vector<2x128xf32>
    %235 = arith.negf %234 : vector<2x128xf32>
    %236 = math.exp %235 : vector<2x128xf32>
    %cst_95 = arith.constant 1.000000e+00 : f32
    %237 = vector.broadcast %cst_95 : f32 to vector<2x128xf32>
    %238 = arith.addf %237, %236 : vector<2x128xf32>
    %239 = arith.divf %237, %238 : vector<2x128xf32>
    %240 = vector.extract_strided_slice %227 {offsets = [0, 128], sizes = [2, 128], strides = [1, 1]} : vector<2x384xf32> to vector<2x128xf32>
    %241 = vector.extract_strided_slice %231 {offsets = [0, 128], sizes = [2, 128], strides = [1, 1]} : vector<2x384xf32> to vector<2x128xf32>
    %242 = arith.addf %240, %241 : vector<2x128xf32>
    %243 = arith.negf %242 : vector<2x128xf32>
    %244 = math.exp %243 : vector<2x128xf32>
    %cst_96 = arith.constant 1.000000e+00 : f32
    %245 = vector.broadcast %cst_96 : f32 to vector<2x128xf32>
    %246 = arith.addf %245, %244 : vector<2x128xf32>
    %247 = arith.divf %245, %246 : vector<2x128xf32>
    %248 = vector.extract_strided_slice %227 {offsets = [0, 256], sizes = [2, 128], strides = [1, 1]} : vector<2x384xf32> to vector<2x128xf32>
    %249 = vector.extract_strided_slice %231 {offsets = [0, 256], sizes = [2, 128], strides = [1, 1]} : vector<2x384xf32> to vector<2x128xf32>
    %250 = arith.mulf %239, %249 : vector<2x128xf32>
    %251 = arith.addf %248, %250 : vector<2x128xf32>
    %252 = math.tanh %251 : vector<2x128xf32>
    %cst_97 = arith.constant 1.000000e+00 : f32
    %253 = vector.broadcast %cst_97 : f32 to vector<2x128xf32>
    %254 = arith.subf %253, %247 : vector<2x128xf32>
    %255 = arith.mulf %254, %252 : vector<2x128xf32>
    %256 = arith.mulf %247, %225 : vector<2x128xf32>
    %257 = arith.addf %255, %256 : vector<2x128xf32>
    %c10_98 = arith.constant 10 : index
    %c0_99 = arith.constant 0 : index
    %258 = vector.load %arg17[%c10_98, %c0_99] : memref<16x128xf32, #tpu.memory_space<vmem>>, vector<2x128xf32>
    tpu.vector_store %arg17[%c10_98, %c0_99], %257 {strides = array<i32>} : memref<16x128xf32, #tpu.memory_space<vmem>>, vector<2x128xf32>,
    %c12_100 = arith.constant 12 : index
    %c0_101 = arith.constant 0 : index
    %259 = vector.load %arg16[%c12_100, %c0_101] : memref<16x384xf32, #tpu.memory_space<vmem>>, vector<2x384xf32>
    %260 = arith.truncf %257 : vector<2x128xf32> to vector<2x128xbf16>
    %cst_102 = arith.constant dense<0.000000e+00> : vector<2x384xf32>
    %261 = tpu.matmul %260, %64, %cst_102 {dimension_numbers = #tpu.dot_dimension_numbers<[1], [0], [0], [1], [0, 0, 1, 1], [], []>} : vector<2x128xbf16>, vector<128x384xbf16>, vector<2x384xf32> -> vector<2x384xf32>
    %262 = vector.broadcast %65 : vector<1x384xf32> to vector<2x384xf32>
    %263 = arith.addf %261, %262 : vector<2x384xf32>
    %264 = vector.extract_strided_slice %259 {offsets = [0, 0], sizes = [2, 128], strides = [1, 1]} : vector<2x384xf32> to vector<2x128xf32>
    %265 = vector.extract_strided_slice %263 {offsets = [0, 0], sizes = [2, 128], strides = [1, 1]} : vector<2x384xf32> to vector<2x128xf32>
    %266 = arith.addf %264, %265 : vector<2x128xf32>
    %267 = arith.negf %266 : vector<2x128xf32>
    %268 = math.exp %267 : vector<2x128xf32>
    %cst_103 = arith.constant 1.000000e+00 : f32
    %269 = vector.broadcast %cst_103 : f32 to vector<2x128xf32>
    %270 = arith.addf %269, %268 : vector<2x128xf32>
    %271 = arith.divf %269, %270 : vector<2x128xf32>
    %272 = vector.extract_strided_slice %259 {offsets = [0, 128], sizes = [2, 128], strides = [1, 1]} : vector<2x384xf32> to vector<2x128xf32>
    %273 = vector.extract_strided_slice %263 {offsets = [0, 128], sizes = [2, 128], strides = [1, 1]} : vector<2x384xf32> to vector<2x128xf32>
    %274 = arith.addf %272, %273 : vector<2x128xf32>
    %275 = arith.negf %274 : vector<2x128xf32>
    %276 = math.exp %275 : vector<2x128xf32>
    %cst_104 = arith.constant 1.000000e+00 : f32
    %277 = vector.broadcast %cst_104 : f32 to vector<2x128xf32>
    %278 = arith.addf %277, %276 : vector<2x128xf32>
    %279 = arith.divf %277, %278 : vector<2x128xf32>
    %280 = vector.extract_strided_slice %259 {offsets = [0, 256], sizes = [2, 128], strides = [1, 1]} : vector<2x384xf32> to vector<2x128xf32>
    %281 = vector.extract_strided_slice %263 {offsets = [0, 256], sizes = [2, 128], strides = [1, 1]} : vector<2x384xf32> to vector<2x128xf32>
    %282 = arith.mulf %271, %281 : vector<2x128xf32>
    %283 = arith.addf %280, %282 : vector<2x128xf32>
    %284 = math.tanh %283 : vector<2x128xf32>
    %cst_105 = arith.constant 1.000000e+00 : f32
    %285 = vector.broadcast %cst_105 : f32 to vector<2x128xf32>
    %286 = arith.subf %285, %279 : vector<2x128xf32>
    %287 = arith.mulf %286, %284 : vector<2x128xf32>
    %288 = arith.mulf %279, %257 : vector<2x128xf32>
    %289 = arith.addf %287, %288 : vector<2x128xf32>
    %c12_106 = arith.constant 12 : index
    %c0_107 = arith.constant 0 : index
    %290 = vector.load %arg17[%c12_106, %c0_107] : memref<16x128xf32, #tpu.memory_space<vmem>>, vector<2x128xf32>
    tpu.vector_store %arg17[%c12_106, %c0_107], %289 {strides = array<i32>} : memref<16x128xf32, #tpu.memory_space<vmem>>, vector<2x128xf32>,
    %c14_108 = arith.constant 14 : index
    %c0_109 = arith.constant 0 : index
    %291 = vector.load %arg16[%c14_108, %c0_109] : memref<16x384xf32, #tpu.memory_space<vmem>>, vector<2x384xf32>
    %292 = arith.truncf %289 : vector<2x128xf32> to vector<2x128xbf16>
    %cst_110 = arith.constant dense<0.000000e+00> : vector<2x384xf32>
    %293 = tpu.matmul %292, %64, %cst_110 {dimension_numbers = #tpu.dot_dimension_numbers<[1], [0], [0], [1], [0, 0, 1, 1], [], []>} : vector<2x128xbf16>, vector<128x384xbf16>, vector<2x384xf32> -> vector<2x384xf32>
    %294 = vector.broadcast %65 : vector<1x384xf32> to vector<2x384xf32>
    %295 = arith.addf %293, %294 : vector<2x384xf32>
    %296 = vector.extract_strided_slice %291 {offsets = [0, 0], sizes = [2, 128], strides = [1, 1]} : vector<2x384xf32> to vector<2x128xf32>
    %297 = vector.extract_strided_slice %295 {offsets = [0, 0], sizes = [2, 128], strides = [1, 1]} : vector<2x384xf32> to vector<2x128xf32>
    %298 = arith.addf %296, %297 : vector<2x128xf32>
    %299 = arith.negf %298 : vector<2x128xf32>
    %300 = math.exp %299 : vector<2x128xf32>
    %cst_111 = arith.constant 1.000000e+00 : f32
    %301 = vector.broadcast %cst_111 : f32 to vector<2x128xf32>
    %302 = arith.addf %301, %300 : vector<2x128xf32>
    %303 = arith.divf %301, %302 : vector<2x128xf32>
    %304 = vector.extract_strided_slice %291 {offsets = [0, 128], sizes = [2, 128], strides = [1, 1]} : vector<2x384xf32> to vector<2x128xf32>
    %305 = vector.extract_strided_slice %295 {offsets = [0, 128], sizes = [2, 128], strides = [1, 1]} : vector<2x384xf32> to vector<2x128xf32>
    %306 = arith.addf %304, %305 : vector<2x128xf32>
    %307 = arith.negf %306 : vector<2x128xf32>
    %308 = math.exp %307 : vector<2x128xf32>
    %cst_112 = arith.constant 1.000000e+00 : f32
    %309 = vector.broadcast %cst_112 : f32 to vector<2x128xf32>
    %310 = arith.addf %309, %308 : vector<2x128xf32>
    %311 = arith.divf %309, %310 : vector<2x128xf32>
    %312 = vector.extract_strided_slice %291 {offsets = [0, 256], sizes = [2, 128], strides = [1, 1]} : vector<2x384xf32> to vector<2x128xf32>
    %313 = vector.extract_strided_slice %295 {offsets = [0, 256], sizes = [2, 128], strides = [1, 1]} : vector<2x384xf32> to vector<2x128xf32>
    %314 = arith.mulf %303, %313 : vector<2x128xf32>
    %315 = arith.addf %312, %314 : vector<2x128xf32>
    %316 = math.tanh %315 : vector<2x128xf32>
    %cst_113 = arith.constant 1.000000e+00 : f32
    %317 = vector.broadcast %cst_113 : f32 to vector<2x128xf32>
    %318 = arith.subf %317, %311 : vector<2x128xf32>
    %319 = arith.mulf %318, %316 : vector<2x128xf32>
    %320 = arith.mulf %311, %289 : vector<2x128xf32>
    %321 = arith.addf %319, %320 : vector<2x128xf32>
    %c14_114 = arith.constant 14 : index
    %c0_115 = arith.constant 0 : index
    %322 = vector.load %arg17[%c14_114, %c0_115] : memref<16x128xf32, #tpu.memory_space<vmem>>, vector<2x128xf32>
    tpu.vector_store %arg17[%c14_114, %c0_115], %321 {strides = array<i32>} : memref<16x128xf32, #tpu.memory_space<vmem>>, vector<2x128xf32>,
    %c0_116 = arith.constant 0 : index
    %c0_117 = arith.constant 0 : index
    %323 = vector.load %arg17[%c0_116, %c0_117] : memref<16x128xf32, #tpu.memory_space<vmem>>, vector<16x128xf32>
    %324 = arith.truncf %323 : vector<16x128xf32> to vector<16x128xbf16>
    %c0_118 = arith.constant 0 : index
    %c0_119 = arith.constant 0 : index
    %325 = vector.load %arg5[%c0_118, %c0_119] : memref<128x512xbf16, #tpu.memory_space<vmem>>, vector<128x512xbf16>
    %cst_120 = arith.constant dense<0.000000e+00> : vector<16x512xf32>
    %326 = tpu.matmul %324, %325, %cst_120 {dimension_numbers = #tpu.dot_dimension_numbers<[1], [0], [0], [1], [0, 0, 1, 1], [], []>} : vector<16x128xbf16>, vector<128x512xbf16>, vector<16x512xf32> -> vector<16x512xf32>
    %c0_121 = arith.constant 0 : index
    %c0_122 = arith.constant 0 : index
    %327 = vector.load %arg6[%c0_121, %c0_122] : memref<1x512xf32, #tpu.memory_space<vmem>>, vector<1x512xf32>
    %328 = vector.broadcast %327 : vector<1x512xf32> to vector<16x512xf32>
    %329 = arith.addf %326, %328 : vector<16x512xf32>
    %cst_123 = arith.constant 0.000000e+00 : f32
    %330 = vector.broadcast %cst_123 : f32 to vector<16x512xf32>
    %331 = arith.maximumf %329, %330 : vector<16x512xf32>
    %c0_124 = arith.constant 0 : index
    %c0_125 = arith.constant 0 : index
    %332 = vector.load %arg7[%c0_124, %c0_125] : memref<512x4xf32, #tpu.memory_space<vmem>>, vector<512x4xf32>
    %cst_126 = arith.constant dense<0.000000e+00> : vector<16x4xf32>
    %333 = tpu.matmul %331, %332, %cst_126 {dimension_numbers = #tpu.dot_dimension_numbers<[1], [0], [0], [1], [0, 0, 1, 1], [], []>} : vector<16x512xf32>, vector<512x4xf32>, vector<16x4xf32> -> vector<16x4xf32>
    %cst_127 = arith.constant dense<0xFF800000> : vector<4xf32>
    %334 = vector.multi_reduction <maximumf>, %333, %cst_127 [0] : vector<16x4xf32> to vector<4xf32>
    %335 = vector.shape_cast %334 : vector<4xf32> to vector<1x4xf32>
    %336 = vector.broadcast %335 : vector<1x4xf32> to vector<16x4xf32>
    %337 = arith.subf %333, %336 : vector<16x4xf32>
    %338 = math.exp %337 : vector<16x4xf32>
    %c0_128 = arith.constant 0 : index
    %c0_129 = arith.constant 0 : index
    %339 = vector.load %arg12[%c0_128, %c0_129] : memref<16x2xf32, #tpu.memory_space<vmem>>, vector<16x2xf32>
    %c0_130 = arith.constant 0 : index
    %c0_131 = arith.constant 0 : index
    %340 = vector.load %arg13[%c0_130, %c0_131] : memref<2x16xf32, #tpu.memory_space<vmem>>, vector<2x16xf32>
    %cst_132 = arith.constant dense<0.000000e+00> : vector<2x4xf32>
    %341 = tpu.matmul %340, %338, %cst_132 {dimension_numbers = #tpu.dot_dimension_numbers<[1], [0], [0], [1], [0, 0, 1, 1], [], []>} : vector<2x16xf32>, vector<16x4xf32>, vector<2x4xf32> -> vector<2x4xf32>
    %cst_133 = arith.constant dense<0.000000e+00> : vector<16x4xf32>
    %342 = tpu.matmul %339, %341, %cst_133 {dimension_numbers = #tpu.dot_dimension_numbers<[1], [0], [0], [1], [0, 0, 1, 1], [], []>} : vector<16x2xf32>, vector<2x4xf32>, vector<16x4xf32> -> vector<16x4xf32>
    %343 = arith.divf %338, %342 : vector<16x4xf32>
    %c0_134 = arith.constant 0 : index
    %c0_135 = arith.constant 0 : index
    %344 = vector.load %arg14[%c0_134, %c0_135] : memref<4x512xf32, #tpu.memory_space<vmem>>, vector<4x512xf32>
    %cst_136 = arith.constant dense<0.000000e+00> : vector<16x512xf32>
    %345 = tpu.matmul %343, %344, %cst_136 {dimension_numbers = #tpu.dot_dimension_numbers<[1], [0], [0], [1], [0, 0, 1, 1], [], []>} : vector<16x4xf32>, vector<4x512xf32>, vector<16x512xf32> -> vector<16x512xf32>
    %346 = arith.mulf %345, %331 : vector<16x512xf32>
    %cst_137 = arith.constant dense<0.000000e+00> : vector<2x512xf32>
    %347 = tpu.matmul %340, %346, %cst_137 {dimension_numbers = #tpu.dot_dimension_numbers<[1], [0], [0], [1], [0, 0, 1, 1], [], []>} : vector<2x16xf32>, vector<16x512xf32>, vector<2x512xf32> -> vector<2x512xf32>
    %cst_138 = arith.constant 0.000000e+00 : f32
    %348 = vector.broadcast %cst_138 : f32 to vector<2x4xf32>
    %349 = vector.extract_strided_slice %347 {offsets = [0, 0], sizes = [2, 128], strides = [1, 1]} : vector<2x512xf32> to vector<2x128xf32>
    %350 = arith.truncf %349 : vector<2x128xf32> to vector<2x128xbf16>
    %c0_139 = arith.constant 0 : index
    %c0_140 = arith.constant 0 : index
    %c0_141 = arith.constant 0 : index
    %351 = vector.load %arg8[%c0_139, %c0_140, %c0_141] : memref<4x128x128xbf16, #tpu.memory_space<vmem>>, vector<1x128x128xbf16>
    %352 = vector.shape_cast %351 : vector<1x128x128xbf16> to vector<128x128xbf16>
    %cst_142 = arith.constant dense<0.000000e+00> : vector<2x128xf32>
    %353 = tpu.matmul %350, %352, %cst_142 {dimension_numbers = #tpu.dot_dimension_numbers<[1], [0], [0], [1], [0, 0, 1, 1], [], []>} : vector<2x128xbf16>, vector<128x128xbf16>, vector<2x128xf32> -> vector<2x128xf32>
    %c0_143 = arith.constant 0 : index
    %c0_144 = arith.constant 0 : index
    %354 = vector.load %arg9[%c0_143, %c0_144] : memref<1x512xf32, #tpu.memory_space<vmem>>, vector<1x128xf32>
    %355 = vector.broadcast %354 : vector<1x128xf32> to vector<2x128xf32>
    %356 = arith.addf %353, %355 : vector<2x128xf32>
    %cst_145 = arith.constant 0.000000e+00 : f32
    %357 = vector.broadcast %cst_145 : f32 to vector<2x128xf32>
    %358 = arith.maximumf %356, %357 : vector<2x128xf32>
    %c0_146 = arith.constant 0 : index
    %c0_147 = arith.constant 0 : index
    %359 = vector.load %arg10[%c0_146, %c0_147] : memref<512x4xf32, #tpu.memory_space<vmem>>, vector<128x4xf32>
    %cst_148 = arith.constant dense<0.000000e+00> : vector<2x4xf32>
    %360 = tpu.matmul %358, %359, %cst_148 {dimension_numbers = #tpu.dot_dimension_numbers<[1], [0], [0], [1], [0, 0, 1, 1], [], []>} : vector<2x128xf32>, vector<128x4xf32>, vector<2x4xf32> -> vector<2x4xf32>
    %361 = arith.addf %348, %360 : vector<2x4xf32>
    %362 = vector.extract_strided_slice %347 {offsets = [0, 128], sizes = [2, 128], strides = [1, 1]} : vector<2x512xf32> to vector<2x128xf32>
    %363 = arith.truncf %362 : vector<2x128xf32> to vector<2x128xbf16>
    %c1_149 = arith.constant 1 : index
    %c0_150 = arith.constant 0 : index
    %c0_151 = arith.constant 0 : index
    %364 = vector.load %arg8[%c1_149, %c0_150, %c0_151] : memref<4x128x128xbf16, #tpu.memory_space<vmem>>, vector<1x128x128xbf16>
    %365 = vector.shape_cast %364 : vector<1x128x128xbf16> to vector<128x128xbf16>
    %cst_152 = arith.constant dense<0.000000e+00> : vector<2x128xf32>
    %366 = tpu.matmul %363, %365, %cst_152 {dimension_numbers = #tpu.dot_dimension_numbers<[1], [0], [0], [1], [0, 0, 1, 1], [], []>} : vector<2x128xbf16>, vector<128x128xbf16>, vector<2x128xf32> -> vector<2x128xf32>
    %c0_153 = arith.constant 0 : index
    %c128 = arith.constant 128 : index
    %367 = vector.load %arg9[%c0_153, %c128] : memref<1x512xf32, #tpu.memory_space<vmem>>, vector<1x128xf32>
    %368 = vector.broadcast %367 : vector<1x128xf32> to vector<2x128xf32>
    %369 = arith.addf %366, %368 : vector<2x128xf32>
    %cst_154 = arith.constant 0.000000e+00 : f32
    %370 = vector.broadcast %cst_154 : f32 to vector<2x128xf32>
    %371 = arith.maximumf %369, %370 : vector<2x128xf32>
    %c128_155 = arith.constant 128 : index
    %c0_156 = arith.constant 0 : index
    %372 = vector.load %arg10[%c128_155, %c0_156] : memref<512x4xf32, #tpu.memory_space<vmem>>, vector<128x4xf32>
    %cst_157 = arith.constant dense<0.000000e+00> : vector<2x4xf32>
    %373 = tpu.matmul %371, %372, %cst_157 {dimension_numbers = #tpu.dot_dimension_numbers<[1], [0], [0], [1], [0, 0, 1, 1], [], []>} : vector<2x128xf32>, vector<128x4xf32>, vector<2x4xf32> -> vector<2x4xf32>
    %374 = arith.addf %361, %373 : vector<2x4xf32>
    %375 = vector.extract_strided_slice %347 {offsets = [0, 256], sizes = [2, 128], strides = [1, 1]} : vector<2x512xf32> to vector<2x128xf32>
    %376 = arith.truncf %375 : vector<2x128xf32> to vector<2x128xbf16>
    %c2_158 = arith.constant 2 : index
    %c0_159 = arith.constant 0 : index
    %c0_160 = arith.constant 0 : index
    %377 = vector.load %arg8[%c2_158, %c0_159, %c0_160] : memref<4x128x128xbf16, #tpu.memory_space<vmem>>, vector<1x128x128xbf16>
    %378 = vector.shape_cast %377 : vector<1x128x128xbf16> to vector<128x128xbf16>
    %cst_161 = arith.constant dense<0.000000e+00> : vector<2x128xf32>
    %379 = tpu.matmul %376, %378, %cst_161 {dimension_numbers = #tpu.dot_dimension_numbers<[1], [0], [0], [1], [0, 0, 1, 1], [], []>} : vector<2x128xbf16>, vector<128x128xbf16>, vector<2x128xf32> -> vector<2x128xf32>
    %c0_162 = arith.constant 0 : index
    %c256 = arith.constant 256 : index
    %380 = vector.load %arg9[%c0_162, %c256] : memref<1x512xf32, #tpu.memory_space<vmem>>, vector<1x128xf32>
    %381 = vector.broadcast %380 : vector<1x128xf32> to vector<2x128xf32>
    %382 = arith.addf %379, %381 : vector<2x128xf32>
    %cst_163 = arith.constant 0.000000e+00 : f32
    %383 = vector.broadcast %cst_163 : f32 to vector<2x128xf32>
    %384 = arith.maximumf %382, %383 : vector<2x128xf32>
    %c256_164 = arith.constant 256 : index
    %c0_165 = arith.constant 0 : index
    %385 = vector.load %arg10[%c256_164, %c0_165] : memref<512x4xf32, #tpu.memory_space<vmem>>, vector<128x4xf32>
    %cst_166 = arith.constant dense<0.000000e+00> : vector<2x4xf32>
    %386 = tpu.matmul %384, %385, %cst_166 {dimension_numbers = #tpu.dot_dimension_numbers<[1], [0], [0], [1], [0, 0, 1, 1], [], []>} : vector<2x128xf32>, vector<128x4xf32>, vector<2x4xf32> -> vector<2x4xf32>
    %387 = arith.addf %374, %386 : vector<2x4xf32>
    %388 = vector.extract_strided_slice %347 {offsets = [0, 384], sizes = [2, 128], strides = [1, 1]} : vector<2x512xf32> to vector<2x128xf32>
    %389 = arith.truncf %388 : vector<2x128xf32> to vector<2x128xbf16>
    %c3_167 = arith.constant 3 : index
    %c0_168 = arith.constant 0 : index
    %c0_169 = arith.constant 0 : index
    %390 = vector.load %arg8[%c3_167, %c0_168, %c0_169] : memref<4x128x128xbf16, #tpu.memory_space<vmem>>, vector<1x128x128xbf16>
    %391 = vector.shape_cast %390 : vector<1x128x128xbf16> to vector<128x128xbf16>
    %cst_170 = arith.constant dense<0.000000e+00> : vector<2x128xf32>
    %392 = tpu.matmul %389, %391, %cst_170 {dimension_numbers = #tpu.dot_dimension_numbers<[1], [0], [0], [1], [0, 0, 1, 1], [], []>} : vector<2x128xbf16>, vector<128x128xbf16>, vector<2x128xf32> -> vector<2x128xf32>
    %c0_171 = arith.constant 0 : index
    %c384 = arith.constant 384 : index
    %393 = vector.load %arg9[%c0_171, %c384] : memref<1x512xf32, #tpu.memory_space<vmem>>, vector<1x128xf32>
    %394 = vector.broadcast %393 : vector<1x128xf32> to vector<2x128xf32>
    %395 = arith.addf %392, %394 : vector<2x128xf32>
    %cst_172 = arith.constant 0.000000e+00 : f32
    %396 = vector.broadcast %cst_172 : f32 to vector<2x128xf32>
    %397 = arith.maximumf %395, %396 : vector<2x128xf32>
    %c384_173 = arith.constant 384 : index
    %c0_174 = arith.constant 0 : index
    %398 = vector.load %arg10[%c384_173, %c0_174] : memref<512x4xf32, #tpu.memory_space<vmem>>, vector<128x4xf32>
    %cst_175 = arith.constant dense<0.000000e+00> : vector<2x4xf32>
    %399 = tpu.matmul %397, %398, %cst_175 {dimension_numbers = #tpu.dot_dimension_numbers<[1], [0], [0], [1], [0, 0, 1, 1], [], []>} : vector<2x128xf32>, vector<128x4xf32>, vector<2x4xf32> -> vector<2x4xf32>
    %400 = arith.addf %387, %399 : vector<2x4xf32>
    %c0_176 = arith.constant 0 : index
    %c0_177 = arith.constant 0 : index
    %401 = vector.load %arg11[%c0_176, %c0_177] : memref<1x4xf32, #tpu.memory_space<vmem>>, vector<1x4xf32>
    %402 = vector.broadcast %401 : vector<1x4xf32> to vector<2x4xf32>
    %403 = arith.addf %400, %402 : vector<2x4xf32>
    %c0_178 = arith.constant 0 : index
    %c0_179 = arith.constant 0 : index
    %404 = vector.load %arg15[%c0_178, %c0_179] : memref<2x4xf32, #tpu.memory_space<vmem>>, vector<2x4xf32>
    tpu.vector_store %arg15[%c0_178, %c0_179], %403 {strides = array<i32>} : memref<2x4xf32, #tpu.memory_space<vmem>>, vector<2x4xf32>,
    return
  }
  func.func @transform_0(%arg0: i32) -> i32 {
    %c0_i32 = arith.constant 0 : i32
    %c0_i32_0 = arith.constant 0 : i32
    return %c0_i32 : i32
  }
  func.func @transform_1(%arg0: i32) -> (i32, i32) {
    %c0_i32 = arith.constant 0 : i32
    %c0_i32_0 = arith.constant 0 : i32
    %c0_i32_1 = arith.constant 0 : i32
    return %c0_i32, %c0_i32_0 : i32, i32
  }
  func.func @transform_2(%arg0: i32) -> (i32, i32) {
    %c0_i32 = arith.constant 0 : i32
    %c0_i32_0 = arith.constant 0 : i32
    %c0_i32_1 = arith.constant 0 : i32
    return %c0_i32, %c0_i32_0 : i32, i32
  }
  func.func @transform_3(%arg0: i32) -> (i32, i32) {
    %c0_i32 = arith.constant 0 : i32
    %c0_i32_0 = arith.constant 0 : i32
    %c0_i32_1 = arith.constant 0 : i32
    return %c0_i32, %c0_i32_0 : i32, i32
  }
  func.func @transform_4(%arg0: i32) -> (i32, i32) {
    %c0_i32 = arith.constant 0 : i32
    %c0_i32_0 = arith.constant 0 : i32
    %c0_i32_1 = arith.constant 0 : i32
    return %c0_i32, %c0_i32_0 : i32, i32
  }
  func.func @transform_5(%arg0: i32) -> (i32, i32) {
    %c0_i32 = arith.constant 0 : i32
    %c0_i32_0 = arith.constant 0 : i32
    %c0_i32_1 = arith.constant 0 : i32
    return %c0_i32, %c0_i32_0 : i32, i32
  }
  func.func @transform_6(%arg0: i32) -> (i32, i32) {
    %c0_i32 = arith.constant 0 : i32
    %c0_i32_0 = arith.constant 0 : i32
    %c0_i32_1 = arith.constant 0 : i32
    return %c0_i32, %c0_i32_0 : i32, i32
  }
  func.func @transform_7(%arg0: i32) -> (i32, i32, i32) {
    %c0_i32 = arith.constant 0 : i32
    %c0_i32_0 = arith.constant 0 : i32
    %c0_i32_1 = arith.constant 0 : i32
    %c0_i32_2 = arith.constant 0 : i32
    return %c0_i32, %c0_i32_0, %c0_i32_1 : i32, i32, i32
  }
  func.func @transform_8(%arg0: i32) -> (i32, i32) {
    %c0_i32 = arith.constant 0 : i32
    %c0_i32_0 = arith.constant 0 : i32
    %c0_i32_1 = arith.constant 0 : i32
    return %c0_i32, %c0_i32_0 : i32, i32
  }
  func.func @transform_9(%arg0: i32) -> (i32, i32) {
    %c0_i32 = arith.constant 0 : i32
    %c0_i32_0 = arith.constant 0 : i32
    %c0_i32_1 = arith.constant 0 : i32
    return %c0_i32, %c0_i32_0 : i32, i32
  }
  func.func @transform_10(%arg0: i32) -> (i32, i32) {
    %c0_i32 = arith.constant 0 : i32
    %c0_i32_0 = arith.constant 0 : i32
    %c0_i32_1 = arith.constant 0 : i32
    return %c0_i32, %c0_i32_0 : i32, i32
  }
  func.func @transform_11(%arg0: i32) -> (i32, i32) {
    %c0_i32 = arith.constant 0 : i32
    %c0_i32_0 = arith.constant 0 : i32
    %c0_i32_1 = arith.constant 0 : i32
    return %c0_i32, %c0_i32_0 : i32, i32
  }
  func.func @transform_12(%arg0: i32) -> (i32, i32) {
    %c0_i32 = arith.constant 0 : i32
    %c0_i32_0 = arith.constant 0 : i32
    %c0_i32_1 = arith.constant 0 : i32
    return %c0_i32, %c0_i32_0 : i32, i32
  }
  func.func @transform_13(%arg0: i32) -> (i32, i32) {
    %c0_i32 = arith.constant 0 : i32
    %c0_i32_0 = arith.constant 0 : i32
    %c0_i32_1 = arith.constant 0 : i32
    return %c0_i32, %c0_i32_0 : i32, i32
  }
  func.func @transform_14(%arg0: i32) -> (i32, i32) {
    %c0_i32 = arith.constant 0 : i32
    %c0_i32_0 = arith.constant 0 : i32
    %c0_i32_1 = arith.constant 0 : i32
    return %c0_i32, %c0_i32_0 : i32, i32
  }
}

</mosaic_0001>

<llo_original>
// kernel: multi_attention_rnn.1
$region0: #{multi_attention_rnn.1}
  #allocation0 [shape = 'u32[]', space=smem, size = 0x4, offset = 0x4, fixed_abs, tag = 'smem constant byte address 0x4 - core index']
  #allocation1 [shape = 'u32[72,128]{1,0:T(1,128)}', space=vmem, size = 0x9000, scoped, tag = 'internal scratch']
  #allocation2 [shape = 'f32[16,384]{1,0:T(8,128)}', space=vmem, size = 0x6000, scoped, tag = 'scratch operand']
  #allocation3 [shape = 'f32[16,128]{1,0:T(8,128)}', space=vmem, size = 0x2000, scoped, tag = 'scratch operand']
  %s0 = inlined_call_operand.vmem [shape: s32[16], index: 0, kind: input, shape index: {}]
  %s1 = inlined_call_operand.vmem [shape: f32[50,384], index: 1, kind: input, shape index: {}]
  %s2 = inlined_call_operand.vmem [shape: bf16[128,384], index: 2, kind: input, shape index: {}]
  %s3 = inlined_call_operand.vmem [shape: f32[1,384], index: 3, kind: input, shape index: {}]
  %s4 = inlined_call_operand.vmem [shape: bf16[128,512], index: 4, kind: input, shape index: {}]
  %s5 = inlined_call_operand.vmem [shape: f32[1,512], index: 5, kind: input, shape index: {}]
  %s6 = inlined_call_operand.vmem [shape: f32[512,4], index: 6, kind: input, shape index: {}]
  %s7 = inlined_call_operand.vmem [shape: bf16[4,128,128], index: 7, kind: input, shape index: {}]
  %s8 = inlined_call_operand.vmem [shape: f32[1,512], index: 8, kind: input, shape index: {}]
  %s9 = inlined_call_operand.vmem [shape: f32[512,4], index: 9, kind: input, shape index: {}]
  %s10 = inlined_call_operand.vmem [shape: f32[1,4], index: 10, kind: input, shape index: {}]
  %s11 = inlined_call_operand.vmem [shape: f32[16,2], index: 11, kind: input, shape index: {}]
  %s12 = inlined_call_operand.vmem [shape: f32[2,16], index: 12, kind: input, shape index: {}]
  %s13 = inlined_call_operand.vmem [shape: f32[4,512], index: 13, kind: input, shape index: {}]
  %s14 = inlined_call_operand.hbm [shape: f32[2,4], index: 14, kind: output, shape index: {}]
  %s15 = sld [smem:[#allocation0]]
  $region70: #{multi_attention_rnn.1} parent=0
    _
  %s17 = ssub.s32 1, %s15
  %s18 = scalar_select 0, %s17, %s15
  $region1: #{multi_attention_rnn.1} parent=0
    #allocation4 [shape = 'u8[512]{0}', space=smem, size = 0x200, scoped, tag = 'input window, operand 0, single buffered']
    #allocation5 [shape = 's32[1]{0}', space=sflag, size = 0x4, scoped, tag = 'scoped memory for multi_attention_rnn.1']
    #allocation6 [shape = 's32[1]{0}', space=sflag, size = 0x4, scoped, tag = 'scoped memory for multi_attention_rnn.1']
    #allocation7 [shape = 'u8[1024]{0}', space=vmem, size = 0x400, scoped, tag = 'output window, operand 0, single buffered']
    %19 = vsyncpa [#allocation6], 0
    %20 = vsyncpa [#allocation5], 0
    // Predicated region
    $region2: #{multi_attention_rnn.1} parent=1 // pred_check
      _
    $region3: #{multi_attention_rnn.1} parent=1 // pred_check_branch
      %22 = sbr.rel (0) target = $region5
    $region4: #{multi_attention_rnn.1} parent=1 // pred_region
      %24 = vsyncadd [#allocation6], 0
      %s26 = sshll.u32 %s0, 4
      %s27 = int_to_ptr.vmem [resolvable:$true] %s26
      %29 = dma.vmem_to_smem %s27, 16, [#allocation4], [#allocation6]
    $region5: #{multi_attention_rnn.1} parent=1 // pred_fallthru
      _
    // Predicated region
    $region6: #{multi_attention_rnn.1} parent=1 // pred_check
      _
    $region7: #{multi_attention_rnn.1} parent=1 // pred_check_branch
      %31 = sbr.rel (0) target = $region9
    $region8: #{multi_attention_rnn.1} parent=1 // pred_region
      _
    $region9: #{multi_attention_rnn.1} parent=1 // pred_fallthru
      _
    // Predicated region
    $region10: #{multi_attention_rnn.1} parent=1 // pred_check
      _
    $region11: #{multi_attention_rnn.1} parent=1 // pred_check_branch
      %33 = sbr.rel (0) target = $region13
    $region12: #{multi_attention_rnn.1} parent=1 // pred_region
      _
    $region13: #{multi_attention_rnn.1} parent=1 // pred_fallthru
      _
    // Predicated region
    $region14: #{multi_attention_rnn.1} parent=1 // pred_check
      _
    $region15: #{multi_attention_rnn.1} parent=1 // pred_check_branch
      %35 = sbr.rel (0) target = $region17
    $region16: #{multi_attention_rnn.1} parent=1 // pred_region
      _
    $region17: #{multi_attention_rnn.1} parent=1 // pred_fallthru
      _
    // Predicated region
    $region18: #{multi_attention_rnn.1} parent=1 // pred_check
      _
    $region19: #{multi_attention_rnn.1} parent=1 // pred_check_branch
      %37 = sbr.rel (0) target = $region21
    $region20: #{multi_attention_rnn.1} parent=1 // pred_region
      _
    $region21: #{multi_attention_rnn.1} parent=1 // pred_fallthru
      _
    // Predicated region
    $region22: #{multi_attention_rnn.1} parent=1 // pred_check
      _
    $region23: #{multi_attention_rnn.1} parent=1 // pred_check_branch
      %39 = sbr.rel (0) target = $region25
    $region24: #{multi_attention_rnn.1} parent=1 // pred_region
      _
    $region25: #{multi_attention_rnn.1} parent=1 // pred_fallthru
      _
    // Predicated region
    $region26: #{multi_attention_rnn.1} parent=1 // pred_check
      _
    $region27: #{multi_attention_rnn.1} parent=1 // pred_check_branch
      %41 = sbr.rel (0) target = $region29
    $region28: #{multi_attention_rnn.1} parent=1 // pred_region
      _
    $region29: #{multi_attention_rnn.1} parent=1 // pred_fallthru
      _
    // Predicated region
    $region30: #{multi_attention_rnn.1} parent=1 // pred_check
      _
    $region31: #{multi_attention_rnn.1} parent=1 // pred_check_branch
      %43 = sbr.rel (0) target = $region33
    $region32: #{multi_attention_rnn.1} parent=1 // pred_region
      _
    $region33: #{multi_attention_rnn.1} parent=1 // pred_fallthru
      _
    // Predicated region
    $region34: #{multi_attention_rnn.1} parent=1 // pred_check
      _
    $region35: #{multi_attention_rnn.1} parent=1 // pred_check_branch
      %45 = sbr.rel (0) target = $region37
    $region36: #{multi_attention_rnn.1} parent=1 // pred_region
      _
    $region37: #{multi_attention_rnn.1} parent=1 // pred_fallthru
      _
    // Predicated region
    $region38: #{multi_attention_rnn.1} parent=1 // pred_check
      _
    $region39: #{multi_attention_rnn.1} parent=1 // pred_check_branch
      %47 = sbr.rel (0) target = $region41
    $region40: #{multi_attention_rnn.1} parent=1 // pred_region
      _
    $region41: #{multi_attention_rnn.1} parent=1 // pred_fallthru
      _
    // Predicated region
    $region42: #{multi_attention_rnn.1} parent=1 // pred_check
      _
    $region43: #{multi_attention_rnn.1} parent=1 // pred_check_branch
      %49 = sbr.rel (0) target = $region45
    $region44: #{multi_attention_rnn.1} parent=1 // pred_region
      _
    $region45: #{multi_attention_rnn.1} parent=1 // pred_fallthru
      _
    // Predicated region
    $region46: #{multi_attention_rnn.1} parent=1 // pred_check
      _
    $region47: #{multi_attention_rnn.1} parent=1 // pred_check_branch
      %51 = sbr.rel (0) target = $region49
    $region48: #{multi_attention_rnn.1} parent=1 // pred_region
      _
    $region49: #{multi_attention_rnn.1} parent=1 // pred_fallthru
      _
    // Predicated region
    $region50: #{multi_attention_rnn.1} parent=1 // pred_check
      _
    $region51: #{multi_attention_rnn.1} parent=1 // pred_check_branch
      %53 = sbr.rel (0) target = $region53
    $region52: #{multi_attention_rnn.1} parent=1 // pred_region
      _
    $region53: #{multi_attention_rnn.1} parent=1 // pred_fallthru
      _
    // Predicated region
    $region54: #{multi_attention_rnn.1} parent=1 // pred_check
      _
    $region55: #{multi_attention_rnn.1} parent=1 // pred_check_branch
      %55 = sbr.rel (0) target = $region57
    $region56: #{multi_attention_rnn.1} parent=1 // pred_region
      _
    $region57: #{multi_attention_rnn.1} parent=1 // pred_fallthru
      _
    // Predicated region
    $region58: #{multi_attention_rnn.1} parent=1 // pred_check
      _
    $region59: #{multi_attention_rnn.1} parent=1 // pred_check_branch
      %57 = sbr.rel (0) target = $region61
    $region60: #{multi_attention_rnn.1} parent=1 // pred_region
      %59 = dma.done [#allocation6], 16
    $region61: #{multi_attention_rnn.1} parent=1 // pred_fallthru
      _
    %60 = sfence
    %s62 = sld [smem:[#allocation4]]
    %s63 = sshra.s32 %s62, 3
    %s64 = sand.u32 %s62, 7
    %s65 = sshra.s32 %s62, 3
    %s66 = sand.u32 %s62, 7
    %s67 = smul.u32 %s63, 3
    %s68 = smul.u32 %s67, 8
    %s69 = sadd.s32 %s68, %s66
    %s70 = scalar_lea.vmem %s1, %s69
    %v71 = vld [vmem:[%s70] ss:$8 sm:$0x7]
    %v72 = vlaneseq
    %vm73 = vcmp.ge.s32.totalorder %v72, 0
    %vm74 = vcmp.lt.s32.totalorder %v72, 384
    %vm75 = vmand %vm73, %vm74
    %76 = vst.msk [vmem:[#allocation2] ss:$8 sm:$0x7] %vm75, %v71
    %77 = vst.msk [vmem:[#allocation2] ss:$8 sm:$0x0] %vm75, %v71
    %s78 = sld [smem:[#allocation4 + $0x1]]
    %s79 = sshra.s32 %s78, 3
    %s80 = sand.u32 %s78, 7
    %s81 = sshra.s32 %s78, 3
    %s82 = sand.u32 %s78, 7
    %s83 = smul.u32 %s79, 3
    %s84 = smul.u32 %s83, 8
    %s85 = sadd.s32 %s84, %s82
    %s86 = scalar_lea.vmem %s1, %s85
    %v87 = vld [vmem:[%s86] ss:$8 sm:$0x7]
    %s88 = scalar_lea.vmem [#allocation2], 1
    %89 = vst.msk [vmem:[%s88] ss:$8 sm:$0x7] %vm75, %v87
    %90 = vst.msk [vmem:[%s88] ss:$8 sm:$0x0] %vm75, %v87
    %s91 = sld [smem:[#allocation4 + $0x2]]
    %s92 = sshra.s32 %s91, 3
    %s93 = sand.u32 %s91, 7
    %s94 = sshra.s32 %s91, 3
    %s95 = sand.u32 %s91, 7
    %s96 = smul.u32 %s92, 3
    %s97 = smul.u32 %s96, 8
    %s98 = sadd.s32 %s97, %s95
    %s99 = scalar_lea.vmem %s1, %s98
    %v100 = vld [vmem:[%s99] ss:$8 sm:$0x7]
    %s101 = scalar_lea.vmem [#allocation2], 2
    %102 = vst.msk [vmem:[%s101] ss:$8 sm:$0x7] %vm75, %v100
    %103 = vst.msk [vmem:[%s101] ss:$8 sm:$0x0] %vm75, %v100
    %s104 = sld [smem:[#allocation4 + $0x3]]
    %s105 = sshra.s32 %s104, 3
    %s106 = sand.u32 %s104, 7
    %s107 = sshra.s32 %s104, 3
    %s108 = sand.u32 %s104, 7
    %s109 = smul.u32 %s105, 3
    %s110 = smul.u32 %s109, 8
    %s111 = sadd.s32 %s110, %s108
    %s112 = scalar_lea.vmem %s1, %s111
    %v113 = vld [vmem:[%s112] ss:$8 sm:$0x7]
    %s114 = scalar_lea.vmem [#allocation2], 3
    %115 = vst.msk [vmem:[%s114] ss:$8 sm:$0x7] %vm75, %v113
    %116 = vst.msk [vmem:[%s114] ss:$8 sm:$0x0] %vm75, %v113
    %s117 = sld [smem:[#allocation4 + $0x4]]
    %s118 = sshra.s32 %s117, 3
    %s119 = sand.u32 %s117, 7
    %s120 = sshra.s32 %s117, 3
    %s121 = sand.u32 %s117, 7
    %s122 = smul.u32 %s118, 3
    %s123 = smul.u32 %s122, 8
    %s124 = sadd.s32 %s123, %s121
    %s125 = scalar_lea.vmem %s1, %s124
    %v126 = vld [vmem:[%s125] ss:$8 sm:$0x7]
    %s127 = scalar_lea.vmem [#allocation2], 4
    %128 = vst.msk [vmem:[%s127] ss:$8 sm:$0x7] %vm75, %v126
    %129 = vst.msk [vmem:[%s127] ss:$8 sm:$0x0] %vm75, %v126
    %s130 = sld [smem:[#allocation4 + $0x5]]
    %s131 = sshra.s32 %s130, 3
    %s132 = sand.u32 %s130, 7
    %s133 = sshra.s32 %s130, 3
    %s134 = sand.u32 %s130, 7
    %s135 = smul.u32 %s131, 3
    %s136 = smul.u32 %s135, 8
    %s137 = sadd.s32 %s136, %s134
    %s138 = scalar_lea.vmem %s1, %s137
    %v139 = vld [vmem:[%s138] ss:$8 sm:$0x7]
    %s140 = scalar_lea.vmem [#allocation2], 5
    %141 = vst.msk [vmem:[%s140] ss:$8 sm:$0x7] %vm75, %v139
    %142 = vst.msk [vmem:[%s140] ss:$8 sm:$0x0] %vm75, %v139
    %s143 = sld [smem:[#allocation4 + $0x6]]
    %s144 = sshra.s32 %s143, 3
    %s145 = sand.u32 %s143, 7
    %s146 = sshra.s32 %s143, 3
    %s147 = sand.u32 %s143, 7
    %s148 = smul.u32 %s144, 3
    %s149 = smul.u32 %s148, 8
    %s150 = sadd.s32 %s149, %s147
    %s151 = scalar_lea.vmem %s1, %s150
    %v152 = vld [vmem:[%s151] ss:$8 sm:$0x7]
    %s153 = scalar_lea.vmem [#allocation2], 6
    %154 = vst.msk [vmem:[%s153] ss:$8 sm:$0x7] %vm75, %v152
    %155 = vst.msk [vmem:[%s153] ss:$8 sm:$0x0] %vm75, %v152
    %s156 = sld [smem:[#allocation4 + $0x7]]
    %s157 = sshra.s32 %s156, 3
    %s158 = sand.u32 %s156, 7
    %s159 = sshra.s32 %s156, 3
    %s160 = sand.u32 %s156, 7
    %s161 = smul.u32 %s157, 3
    %s162 = smul.u32 %s161, 8
    %s163 = sadd.s32 %s162, %s160
    %s164 = scalar_lea.vmem %s1, %s163
    %v165 = vld [vmem:[%s164] ss:$8 sm:$0x7]
    %s166 = scalar_lea.vmem [#allocation2], 7
    %167 = vst.msk [vmem:[%s166] ss:$8 sm:$0x7] %vm75, %v165
    %168 = vst.msk [vmem:[%s166] ss:$8 sm:$0x0] %vm75, %v165
    %s169 = sld [smem:[#allocation4 + $0x8]]
    %s170 = sshra.s32 %s169, 3
    %s171 = sand.u32 %s169, 7
    %s172 = sshra.s32 %s169, 3
    %s173 = sand.u32 %s169, 7
    %s174 = smul.u32 %s170, 3
    %s175 = smul.u32 %s174, 8
    %s176 = sadd.s32 %s175, %s173
    %s177 = scalar_lea.vmem %s1, %s176
    %v178 = vld [vmem:[%s177] ss:$8 sm:$0x7]
    %s179 = scalar_lea.vmem [#allocation2], 24
    %180 = vst.msk [vmem:[%s179] ss:$8 sm:$0x7] %vm75, %v178
    %181 = vst.msk [vmem:[%s179] ss:$8 sm:$0x0] %vm75, %v178
    %s182 = sld [smem:[#allocation4 + $0x9]]
    %s183 = sshra.s32 %s182, 3
    %s184 = sand.u32 %s182, 7
    %s185 = sshra.s32 %s182, 3
    %s186 = sand.u32 %s182, 7
    %s187 = smul.u32 %s183, 3
    %s188 = smul.u32 %s187, 8
    %s189 = sadd.s32 %s188, %s186
    %s190 = scalar_lea.vmem %s1, %s189
    %v191 = vld [vmem:[%s190] ss:$8 sm:$0x7]
    %s192 = scalar_lea.vmem [#allocation2], 25
    %193 = vst.msk [vmem:[%s192] ss:$8 sm:$0x7] %vm75, %v191
    %194 = vst.msk [vmem:[%s192] ss:$8 sm:$0x0] %vm75, %v191
    %s195 = sld [smem:[#allocation4 + $0xa]]
    %s196 = sshra.s32 %s195, 3
    %s197 = sand.u32 %s195, 7
    %s198 = sshra.s32 %s195, 3
    %s199 = sand.u32 %s195, 7
    %s200 = smul.u32 %s196, 3
    %s201 = smul.u32 %s200, 8
    %s202 = sadd.s32 %s201, %s199
    %s203 = scalar_lea.vmem %s1, %s202
    %v204 = vld [vmem:[%s203] ss:$8 sm:$0x7]
    %s205 = scalar_lea.vmem [#allocation2], 26
    %206 = vst.msk [vmem:[%s205] ss:$8 sm:$0x7] %vm75, %v204
    %207 = vst.msk [vmem:[%s205] ss:$8 sm:$0x0] %vm75, %v204
    %s208 = sld [smem:[#allocation4 + $0xb]]
    %s209 = sshra.s32 %s208, 3
    %s210 = sand.u32 %s208, 7
    %s211 = sshra.s32 %s208, 3
    %s212 = sand.u32 %s208, 7
    %s213 = smul.u32 %s209, 3
    %s214 = smul.u32 %s213, 8
    %s215 = sadd.s32 %s214, %s212
    %s216 = scalar_lea.vmem %s1, %s215
    %v217 = vld [vmem:[%s216] ss:$8 sm:$0x7]
    %s218 = scalar_lea.vmem [#allocation2], 27
    %219 = vst.msk [vmem:[%s218] ss:$8 sm:$0x7] %vm75, %v217
    %220 = vst.msk [vmem:[%s218] ss:$8 sm:$0x0] %vm75, %v217
    %s221 = sld [smem:[#allocation4 + $0xc]]
    %s222 = sshra.s32 %s221, 3
    %s223 = sand.u32 %s221, 7
    %s224 = sshra.s32 %s221, 3
    %s225 = sand.u32 %s221, 7
    %s226 = smul.u32 %s222, 3
    %s227 = smul.u32 %s226, 8
    %s228 = sadd.s32 %s227, %s225
    %s229 = scalar_lea.vmem %s1, %s228
    %v230 = vld [vmem:[%s229] ss:$8 sm:$0x7]
    %s231 = scalar_lea.vmem [#allocation2], 28
    %232 = vst.msk [vmem:[%s231] ss:$8 sm:$0x7] %vm75, %v230
    %233 = vst.msk [vmem:[%s231] ss:$8 sm:$0x0] %vm75, %v230
    %s234 = sld [smem:[#allocation4 + $0xd]]
    %s235 = sshra.s32 %s234, 3
    %s236 = sand.u32 %s234, 7
    %s237 = sshra.s32 %s234, 3
    %s238 = sand.u32 %s234, 7
    %s239 = smul.u32 %s235, 3
    %s240 = smul.u32 %s239, 8
    %s241 = sadd.s32 %s240, %s238
    %s242 = scalar_lea.vmem %s1, %s241
    %v243 = vld [vmem:[%s242] ss:$8 sm:$0x7]
    %s244 = scalar_lea.vmem [#allocation2], 29
    %245 = vst.msk [vmem:[%s244] ss:$8 sm:$0x7] %vm75, %v243
    %246 = vst.msk [vmem:[%s244] ss:$8 sm:$0x0] %vm75, %v243
    %s247 = sld [smem:[#allocation4 + $0xe]]
    %s248 = sshra.s32 %s247, 3
    %s249 = sand.u32 %s247, 7
    %s250 = sshra.s32 %s247, 3
    %s251 = sand.u32 %s247, 7
    %s252 = smul.u32 %s248, 3
    %s253 = smul.u32 %s252, 8
    %s254 = sadd.s32 %s253, %s251
    %s255 = scalar_lea.vmem %s1, %s254
    %v256 = vld [vmem:[%s255] ss:$8 sm:$0x7]
    %s257 = scalar_lea.vmem [#allocation2], 30
    %258 = vst.msk [vmem:[%s257] ss:$8 sm:$0x7] %vm75, %v256
    %259 = vst.msk [vmem:[%s257] ss:$8 sm:$0x0] %vm75, %v256
    %s260 = sld [smem:[#allocation4 + $0xf]]
    %s261 = sshra.s32 %s260, 3
    %s262 = sand.u32 %s260, 7
    %s263 = sshra.s32 %s260, 3
    %s264 = sand.u32 %s260, 7
    %s265 = smul.u32 %s261, 3
    %s266 = smul.u32 %s265, 8
    %s267 = sadd.s32 %s266, %s264
    %s268 = scalar_lea.vmem %s1, %s267
    %v269 = vld [vmem:[%s268] ss:$8 sm:$0x7]
    %s270 = scalar_lea.vmem [#allocation2], 31
    %271 = vst.msk [vmem:[%s270] ss:$8 sm:$0x7] %vm75, %v269
    %272 = vst.msk [vmem:[%s270] ss:$8 sm:$0x0] %vm75, %v269
    %v273 = vld [vmem:[%s2] sm:$0xff]
    %v274 = vld [vmem:[%s2 + $0x8] sm:$0xf]
    %v275 = vld [vmem:[%s2 + $0xc] sm:$0xff]
    %v276 = vld [vmem:[%s2 + $0x14] sm:$0xf]
    %v277 = vld [vmem:[%s2 + $0x18] sm:$0xff]
    %v278 = vld [vmem:[%s2 + $0x20] sm:$0xf]
    %v279 = vld [vmem:[%s2 + $0x24] sm:$0xff]
    %v280 = vld [vmem:[%s2 + $0x2c] sm:$0xf]
    %v281 = vld [vmem:[%s2 + $0x30] sm:$0xff]
    %v282 = vld [vmem:[%s2 + $0x38] sm:$0xf]
    %v283 = vld [vmem:[%s2 + $0x3c] sm:$0xff]
    %v284 = vld [vmem:[%s2 + $0x44] sm:$0xf]
    %v285 = vld [vmem:[%s2 + $0x48] sm:$0xff]
    %v286 = vld [vmem:[%s2 + $0x50] sm:$0xf]
    %v287 = vld [vmem:[%s2 + $0x54] sm:$0xff]
    %v288 = vld [vmem:[%s2 + $0x5c] sm:$0xf]
    %v289 = vld [vmem:[%s2 + $0x60] sm:$0xff]
    %v290 = vld [vmem:[%s2 + $0x68] sm:$0xf]
    %v291 = vld [vmem:[%s2 + $0x6c] sm:$0xff]
    %v292 = vld [vmem:[%s2 + $0x74] sm:$0xf]
    %v293 = vld [vmem:[%s2 + $0x78] sm:$0xff]
    %v294 = vld [vmem:[%s2 + $0x80] sm:$0xf]
    %v295 = vld [vmem:[%s2 + $0x84] sm:$0xff]
    %v296 = vld [vmem:[%s2 + $0x8c] sm:$0xf]
    %v297 = vld [vmem:[%s2 + $0x90] sm:$0xff]
    %v298 = vld [vmem:[%s2 + $0x98] sm:$0xf]
    %v299 = vld [vmem:[%s2 + $0x9c] sm:$0xff]
    %v300 = vld [vmem:[%s2 + $0xa4] sm:$0xf]
    %v301 = vld [vmem:[%s2 + $0xa8] sm:$0xff]
    %v302 = vld [vmem:[%s2 + $0xb0] sm:$0xf]
    %v303 = vld [vmem:[%s2 + $0xb4] sm:$0xff]
    %v304 = vld [vmem:[%s2 + $0xbc] sm:$0xf]
    %v305 = vld [vmem:[%s3] sm:$0x7]
    %v306 = vld [vmem:[#allocation2] sm:$0x3]
    %v307 = vld [vmem:[#allocation2 + $0x8] sm:$0x3]
    %v308 = vld [vmem:[#allocation2 + $0x10] sm:$0x3]
    %v310 = vperm.slane %v305, 0
    %v311 = vperm.slane %v305, 1
    %v312 = vperm.slane %v305, 2
    %v348 = vunpack.c.l.b16 %v273
    %v349 = vunpack.c.h.b16 %v273
    %v350 = vunpack.c.l.b16 %v274
    %v351 = vunpack.c.l.b16 %v275
    %v352 = vunpack.c.h.b16 %v275
    %v353 = vunpack.c.l.b16 %v276
    %v354 = vunpack.c.l.b16 %v277
    %v355 = vunpack.c.h.b16 %v277
    %v356 = vunpack.c.l.b16 %v278
    %v357 = vunpack.c.l.b16 %v279
    %v358 = vunpack.c.h.b16 %v279
    %v359 = vunpack.c.l.b16 %v280
    %v360 = vunpack.c.l.b16 %v281
    %v361 = vunpack.c.h.b16 %v281
    %v362 = vunpack.c.l.b16 %v282
    %v363 = vunpack.c.l.b16 %v283
    %v364 = vunpack.c.h.b16 %v283
    %v365 = vunpack.c.l.b16 %v284
    %v366 = vunpack.c.l.b16 %v285
    %v367 = vunpack.c.h.b16 %v285
    %v368 = vunpack.c.l.b16 %v286
    %v369 = vunpack.c.l.b16 %v287
    %v370 = vunpack.c.h.b16 %v287
    %v371 = vunpack.c.l.b16 %v288
    %v372 = vunpack.c.l.b16 %v289
    %v373 = vunpack.c.h.b16 %v289
    %v374 = vunpack.c.l.b16 %v290
    %v375 = vunpack.c.l.b16 %v291
    %v376 = vunpack.c.h.b16 %v291
    %v377 = vunpack.c.l.b16 %v292
    %v378 = vunpack.c.l.b16 %v293
    %v379 = vunpack.c.h.b16 %v293
    %v380 = vunpack.c.l.b16 %v294
    %v381 = vunpack.c.l.b16 %v295
    %v382 = vunpack.c.h.b16 %v295
    %v383 = vunpack.c.l.b16 %v296
    %v384 = vunpack.c.l.b16 %v297
    %v385 = vunpack.c.h.b16 %v297
    %v386 = vunpack.c.l.b16 %v298
    %v387 = vunpack.c.l.b16 %v299
    %v388 = vunpack.c.h.b16 %v299
    %v389 = vunpack.c.l.b16 %v300
    %v390 = vunpack.c.l.b16 %v301
    %v391 = vunpack.c.h.b16 %v301
    %v392 = vunpack.c.l.b16 %v302
    %v393 = vunpack.c.l.b16 %v303
    %v394 = vunpack.c.h.b16 %v303
    %v395 = vunpack.c.l.b16 %v304
    %v396 = vpack.c.b16 %v351, %v348
    %v397 = vpack.c.b16 %v352, %v349
    %v398 = vpack.c.b16 %v353, %v350
    %v399 = vpack.c.b16 %v357, %v354
    %v400 = vpack.c.b16 %v358, %v355
    %v401 = vpack.c.b16 %v359, %v356
    %v402 = vpack.c.b16 %v363, %v360
    %v403 = vpack.c.b16 %v364, %v361
    %v404 = vpack.c.b16 %v365, %v362
    %v405 = vpack.c.b16 %v369, %v366
    %v406 = vpack.c.b16 %v370, %v367
    %v407 = vpack.c.b16 %v371, %v368
    %v408 = vpack.c.b16 %v375, %v372
    %v409 = vpack.c.b16 %v376, %v373
    %v410 = vpack.c.b16 %v377, %v374
    %v411 = vpack.c.b16 %v381, %v378
    %v412 = vpack.c.b16 %v382, %v379
    %v413 = vpack.c.b16 %v383, %v380
    %v414 = vpack.c.b16 %v387, %v384
    %v415 = vpack.c.b16 %v388, %v385
    %v416 = vpack.c.b16 %v389, %v386
    %v417 = vpack.c.b16 %v393, %v390
    %v418 = vpack.c.b16 %v394, %v391
    %v419 = vpack.c.b16 %v395, %v392
    %444 = vmatpush.bf16.msra.mxu0 %v417
    %445 = vmatpush.bf16.msra.mxu0 %v414
    %446 = vmatpush.bf16.msra.mxu0 %v411
    %447 = vmatpush.bf16.msra.mxu0 %v408
    %448 = vmatpush.bf16.msra.mxu0 %v405
    %449 = vmatpush.bf16.msra.mxu0 %v402
    %450 = vmatpush.bf16.msra.mxu0 %v399
    %451 = vmatpush.bf16.msra.mxu0 %v396
    %452 = vmatmul.bf16.gmra.mxu0 0
    %v453 = vpop.f32.mrf.mxu0
    %v454 = vadd.f32 %v310, %v453
    %v455 = vpop.f32.mrf.mxu0
    %456 = vdwg.mxu0
    %457 = vmatpush.bf16.msra.mxu0 %v418
    %458 = vmatpush.bf16.msra.mxu0 %v415
    %459 = vmatpush.bf16.msra.mxu0 %v412
    %460 = vmatpush.bf16.msra.mxu0 %v409
    %461 = vmatpush.bf16.msra.mxu0 %v406
    %462 = vmatpush.bf16.msra.mxu0 %v403
    %463 = vmatpush.bf16.msra.mxu0 %v400
    %464 = vmatpush.bf16.msra.mxu0 %v397
    %465 = vmatmul.bf16.gmra.mxu0 0
    %v466 = vpop.f32.mrf.mxu0
    %v467 = vadd.f32 %v311, %v466
    %v468 = vpop.f32.mrf.mxu0
    %469 = vdwg.mxu0
    %470 = vmatpush.bf16.msra.mxu0 %v419
    %471 = vmatpush.bf16.msra.mxu0 %v416
    %472 = vmatpush.bf16.msra.mxu0 %v413
    %473 = vmatpush.bf16.msra.mxu0 %v410
    %474 = vmatpush.bf16.msra.mxu0 %v407
    %475 = vmatpush.bf16.msra.mxu0 %v404
    %476 = vmatpush.bf16.msra.mxu0 %v401
    %477 = vmatpush.bf16.msra.mxu0 %v398
    %478 = vmatmul.bf16.gmra.mxu0 0
    %v479 = vpop.f32.mrf.mxu0
    %v480 = vadd.f32 %v312, %v479
    %v481 = vpop.f32.mrf.mxu0
    %482 = vdwg.mxu0
    %v483 = vadd.f32 %v306, %v454
    %v484 = vxor.u32 %v483, 2147483648
    %v485 = vmul.f32 %v484, 1.442695
    %v486 = vpow.pop %v485
    %v487 = vadd.f32 %v486, 1.0
    %v488 = vrcp.pop %v487
    %v489 = vmul.f32 %v487, %v488
    %v490 = vsub.f32 1.0, %v489
    %v491 = vmul.f32 %v488, %v490
    %v492 = vadd.f32 %v488, %v491
    %vm493 = vweird.f32 %v487
    %vm494 = vweird.f32 %v488
    %vm495 = vmor %vm493, %vm494
    %v496 = vsel %vm495, %v488, %v492
    %v497 = vand.u32 2147483647, %v487
    %vm498 = vcmp.eq.f32.partialorder %v497, 8.507059e+37
    %v499 = vand.u32 %v487, 2147483648
    %v500 = vor.u32 1.1754944e-38, %v499
    %v501 = vsel %vm498, %v500, %v496
    %v502 = vmul.f32 1.0, %v501
    %v503 = vadd.f32 %v307, %v467
    %v504 = vxor.u32 %v503, 2147483648
    %v505 = vmul.f32 %v504, 1.442695
    %v506 = vpow.pop %v505
    %v507 = vadd.f32 %v506, 1.0
    %v508 = vrcp.pop %v507
    %v509 = vmul.f32 %v507, %v508
    %v510 = vsub.f32 1.0, %v509
    %v511 = vmul.f32 %v508, %v510
    %v512 = vadd.f32 %v508, %v511
    %vm513 = vweird.f32 %v507
    %vm514 = vweird.f32 %v508
    %vm515 = vmor %vm513, %vm514
    %v516 = vsel %vm515, %v508, %v512
    %v517 = vand.u32 2147483647, %v507
    %vm518 = vcmp.eq.f32.partialorder %v517, 8.507059e+37
    %v519 = vand.u32 %v507, 2147483648
    %v520 = vor.u32 1.1754944e-38, %v519
    %v521 = vsel %vm518, %v520, %v516
    %v522 = vmul.f32 1.0, %v521
    %v523 = vmul.f32 %v502, %v480
    %v524 = vadd.f32 %v308, %v523
    %v525 = vtanh.pop %v524
    %v526 = vsub.f32 1.0, %v522
    %v527 = vmul.f32 %v526, %v525
    %v528 = vmul.f32 %v522, 0.0
    %v529 = vadd.f32 %v527, %v528
    %530 = vst [vmem:[#allocation3] sm:$0x3] %v529
    %v531 = vld [vmem:[#allocation2] sm:$0xc]
    %v532 = vld [vmem:[#allocation2 + $0x8] sm:$0xc]
    %v533 = vld [vmem:[#allocation2 + $0x10] sm:$0xc]
    %v534 = vpack.c.bf16 %v529, %v529
    %535 = vmatpush.bf16.msra.mxu0 %v417
    %536 = vmatpush.bf16.msra.mxu0 %v414
    %537 = vmatpush.bf16.msra.mxu0 %v411
    %538 = vmatpush.bf16.msra.mxu0 %v408
    %539 = vmatpush.bf16.msra.mxu0 %v405
    %540 = vmatpush.bf16.msra.mxu0 %v402
    %541 = vmatpush.bf16.msra.mxu0 %v399
    %542 = vmatpush.bf16.msra.mxu0 %v396
    %543 = vmatmul.bf16.gmra.mxu0 %v534
    %v544 = vpop.f32.mrf.mxu0
    %v545 = vadd.f32 %v310, %v544
    %v546 = vpop.f32.mrf.mxu0
    %547 = vdwg.mxu0
    %548 = vmatpush.bf16.msra.mxu0 %v418
    %549 = vmatpush.bf16.msra.mxu0 %v415
    %550 = vmatpush.bf16.msra.mxu0 %v412
    %551 = vmatpush.bf16.msra.mxu0 %v409
    %552 = vmatpush.bf16.msra.mxu0 %v406
    %553 = vmatpush.bf16.msra.mxu0 %v403
    %554 = vmatpush.bf16.msra.mxu0 %v400
    %555 = vmatpush.bf16.msra.mxu0 %v397
    %556 = vmatmul.bf16.gmra.mxu0 %v534
    %v557 = vpop.f32.mrf.mxu0
    %v558 = vadd.f32 %v311, %v557
    %v559 = vpop.f32.mrf.mxu0
    %560 = vdwg.mxu0
    %561 = vmatpush.bf16.msra.mxu0 %v419
    %562 = vmatpush.bf16.msra.mxu0 %v416
    %563 = vmatpush.bf16.msra.mxu0 %v413
    %564 = vmatpush.bf16.msra.mxu0 %v410
    %565 = vmatpush.bf16.msra.mxu0 %v407
    %566 = vmatpush.bf16.msra.mxu0 %v404
    %567 = vmatpush.bf16.msra.mxu0 %v401
    %568 = vmatpush.bf16.msra.mxu0 %v398
    %569 = vmatmul.bf16.gmra.mxu0 %v534
    %v570 = vpop.f32.mrf.mxu0
    %v571 = vadd.f32 %v312, %v570
    %v572 = vpop.f32.mrf.mxu0
    %573 = vdwg.mxu0
    %v575 = vrot.slane %v545, 6
    %v577 = vadd.f32 %v531, %v575
    %v578 = vxor.u32 %v577, 2147483648
    %v579 = vmul.f32 %v578, 1.442695
    %v580 = vpow.pop %v579
    %v581 = vadd.f32 %v580, 1.0
    %v582 = vrcp.pop %v581
    %v583 = vmul.f32 %v581, %v582
    %v584 = vsub.f32 1.0, %v583
    %v585 = vmul.f32 %v582, %v584
    %v586 = vadd.f32 %v582, %v585
    %vm587 = vweird.f32 %v581
    %vm588 = vweird.f32 %v582
    %vm589 = vmor %vm587, %vm588
    %v590 = vsel %vm589, %v582, %v586
    %v591 = vand.u32 2147483647, %v581
    %vm592 = vcmp.eq.f32.partialorder %v591, 8.507059e+37
    %v593 = vand.u32 %v581, 2147483648
    %v594 = vor.u32 1.1754944e-38, %v593
    %v595 = vsel %vm592, %v594, %v590
    %v596 = vmul.f32 1.0, %v595
    %v598 = vrot.slane %v558, 6
    %v600 = vadd.f32 %v532, %v598
    %v601 = vxor.u32 %v600, 2147483648
    %v602 = vmul.f32 %v601, 1.442695
    %v603 = vpow.pop %v602
    %v604 = vadd.f32 %v603, 1.0
    %v605 = vrcp.pop %v604
    %v606 = vmul.f32 %v604, %v605
    %v607 = vsub.f32 1.0, %v606
    %v608 = vmul.f32 %v605, %v607
    %v609 = vadd.f32 %v605, %v608
    %vm610 = vweird.f32 %v604
    %vm611 = vweird.f32 %v605
    %vm612 = vmor %vm610, %vm611
    %v613 = vsel %vm612, %v605, %v609
    %v614 = vand.u32 2147483647, %v604
    %vm615 = vcmp.eq.f32.partialorder %v614, 8.507059e+37
    %v616 = vand.u32 %v604, 2147483648
    %v617 = vor.u32 1.1754944e-38, %v616
    %v618 = vsel %vm615, %v617, %v613
    %v619 = vmul.f32 1.0, %v618
    %v621 = vrot.slane %v571, 6
    %v623 = vmul.f32 %v596, %v621
    %v624 = vadd.f32 %v533, %v623
    %v625 = vtanh.pop %v624
    %v626 = vsub.f32 1.0, %v619
    %v627 = vmul.f32 %v626, %v625
    %v629 = vrot.slane %v529, 6
    %v631 = vmul.f32 %v619, %v629
    %v632 = vadd.f32 %v627, %v631
    %633 = vst [vmem:[#allocation3] sm:$0xc] %v632
    %v634 = vld [vmem:[#allocation2] sm:$0x30]
    %v635 = vld [vmem:[#allocation2 + $0x8] sm:$0x30]
    %v636 = vld [vmem:[#allocation2 + $0x10] sm:$0x30]
    %v637 = vpack.c.bf16 %v632, %v632
    %v639 = vrot.slane %v637, 1
    %641 = vmatpush.bf16.msra.mxu0 %v417
    %642 = vmatpush.bf16.msra.mxu0 %v414
    %643 = vmatpush.bf16.msra.mxu0 %v411
    %644 = vmatpush.bf16.msra.mxu0 %v408
    %645 = vmatpush.bf16.msra.mxu0 %v405
    %646 = vmatpush.bf16.msra.mxu0 %v402
    %647 = vmatpush.bf16.msra.mxu0 %v399
    %648 = vmatpush.bf16.msra.mxu0 %v396
    %649 = vmatmul.bf16.gmra.mxu0 %v639
    %v650 = vpop.f32.mrf.mxu0
    %v651 = vadd.f32 %v310, %v650
    %v652 = vpop.f32.mrf.mxu0
    %653 = vdwg.mxu0
    %654 = vmatpush.bf16.msra.mxu0 %v418
    %655 = vmatpush.bf16.msra.mxu0 %v415
    %656 = vmatpush.bf16.msra.mxu0 %v412
    %657 = vmatpush.bf16.msra.mxu0 %v409
    %658 = vmatpush.bf16.msra.mxu0 %v406
    %659 = vmatpush.bf16.msra.mxu0 %v403
    %660 = vmatpush.bf16.msra.mxu0 %v400
    %661 = vmatpush.bf16.msra.mxu0 %v397
    %662 = vmatmul.bf16.gmra.mxu0 %v639
    %v663 = vpop.f32.mrf.mxu0
    %v664 = vadd.f32 %v311, %v663
    %v665 = vpop.f32.mrf.mxu0
    %666 = vdwg.mxu0
    %667 = vmatpush.bf16.msra.mxu0 %v419
    %668 = vmatpush.bf16.msra.mxu0 %v416
    %669 = vmatpush.bf16.msra.mxu0 %v413
    %670 = vmatpush.bf16.msra.mxu0 %v410
    %671 = vmatpush.bf16.msra.mxu0 %v407
    %672 = vmatpush.bf16.msra.mxu0 %v404
    %673 = vmatpush.bf16.msra.mxu0 %v401
    %674 = vmatpush.bf16.msra.mxu0 %v398
    %675 = vmatmul.bf16.gmra.mxu0 %v639
    %v676 = vpop.f32.mrf.mxu0
    %v677 = vadd.f32 %v312, %v676
    %v678 = vpop.f32.mrf.mxu0
    %679 = vdwg.mxu0
    %v681 = vrot.slane %v651, 4
    %v683 = vadd.f32 %v634, %v681
    %v684 = vxor.u32 %v683, 2147483648
    %v685 = vmul.f32 %v684, 1.442695
    %v686 = vpow.pop %v685
    %v687 = vadd.f32 %v686, 1.0
    %v688 = vrcp.pop %v687
    %v689 = vmul.f32 %v687, %v688
    %v690 = vsub.f32 1.0, %v689
    %v691 = vmul.f32 %v688, %v690
    %v692 = vadd.f32 %v688, %v691
    %vm693 = vweird.f32 %v687
    %vm694 = vweird.f32 %v688
    %vm695 = vmor %vm693, %vm694
    %v696 = vsel %vm695, %v688, %v692
    %v697 = vand.u32 2147483647, %v687
    %vm698 = vcmp.eq.f32.partialorder %v697, 8.507059e+37
    %v699 = vand.u32 %v687, 2147483648
    %v700 = vor.u32 1.1754944e-38, %v699
    %v701 = vsel %vm698, %v700, %v696
    %v702 = vmul.f32 1.0, %v701
    %v704 = vrot.slane %v664, 4
    %v706 = vadd.f32 %v635, %v704
    %v707 = vxor.u32 %v706, 2147483648
    %v708 = vmul.f32 %v707, 1.442695
    %v709 = vpow.pop %v708
    %v710 = vadd.f32 %v709, 1.0
    %v711 = vrcp.pop %v710
    %v712 = vmul.f32 %v710, %v711
    %v713 = vsub.f32 1.0, %v712
    %v714 = vmul.f32 %v711, %v713
    %v715 = vadd.f32 %v711, %v714
    %vm716 = vweird.f32 %v710
    %vm717 = vweird.f32 %v711
    %vm718 = vmor %vm716, %vm717
    %v719 = vsel %vm718, %v711, %v715
    %v720 = vand.u32 2147483647, %v710
    %vm721 = vcmp.eq.f32.partialorder %v720, 8.507059e+37
    %v722 = vand.u32 %v710, 2147483648
    %v723 = vor.u32 1.1754944e-38, %v722
    %v724 = vsel %vm721, %v723, %v719
    %v725 = vmul.f32 1.0, %v724
    %v727 = vrot.slane %v677, 4
    %v729 = vmul.f32 %v702, %v727
    %v730 = vadd.f32 %v636, %v729
    %v731 = vtanh.pop %v730
    %v732 = vsub.f32 1.0, %v725
    %v733 = vmul.f32 %v732, %v731
    %v735 = vrot.slane %v632, 6
    %v737 = vmul.f32 %v725, %v735
    %v738 = vadd.f32 %v733, %v737
    %739 = vst [vmem:[#allocation3] sm:$0x30] %v738
    %v740 = vld [vmem:[#allocation2] sm:$0xc0]
    %v741 = vld [vmem:[#allocation2 + $0x8] sm:$0xc0]
    %v742 = vld [vmem:[#allocation2 + $0x10] sm:$0xc0]
    %v743 = vpack.c.bf16 %v738, %v738
    %v745 = vrot.slane %v743, 2
    %747 = vmatpush.bf16.msra.mxu0 %v417
    %748 = vmatpush.bf16.msra.mxu0 %v414
    %749 = vmatpush.bf16.msra.mxu0 %v411
    %750 = vmatpush.bf16.msra.mxu0 %v408
    %751 = vmatpush.bf16.msra.mxu0 %v405
    %752 = vmatpush.bf16.msra.mxu0 %v402
    %753 = vmatpush.bf16.msra.mxu0 %v399
    %754 = vmatpush.bf16.msra.mxu0 %v396
    %755 = vmatmul.bf16.gmra.mxu0 %v745
    %v756 = vpop.f32.mrf.mxu0
    %v757 = vadd.f32 %v310, %v756
    %v758 = vpop.f32.mrf.mxu0
    %759 = vdwg.mxu0
    %760 = vmatpush.bf16.msra.mxu0 %v418
    %761 = vmatpush.bf16.msra.mxu0 %v415
    %762 = vmatpush.bf16.msra.mxu0 %v412
    %763 = vmatpush.bf16.msra.mxu0 %v409
    %764 = vmatpush.bf16.msra.mxu0 %v406
    %765 = vmatpush.bf16.msra.mxu0 %v403
    %766 = vmatpush.bf16.msra.mxu0 %v400
    %767 = vmatpush.bf16.msra.mxu0 %v397
    %768 = vmatmul.bf16.gmra.mxu0 %v745
    %v769 = vpop.f32.mrf.mxu0
    %v770 = vadd.f32 %v311, %v769
    %v771 = vpop.f32.mrf.mxu0
    %772 = vdwg.mxu0
    %773 = vmatpush.bf16.msra.mxu0 %v419
    %774 = vmatpush.bf16.msra.mxu0 %v416
    %775 = vmatpush.bf16.msra.mxu0 %v413
    %776 = vmatpush.bf16.msra.mxu0 %v410
    %777 = vmatpush.bf16.msra.mxu0 %v407
    %778 = vmatpush.bf16.msra.mxu0 %v404
    %779 = vmatpush.bf16.msra.mxu0 %v401
    %780 = vmatpush.bf16.msra.mxu0 %v398
    %781 = vmatmul.bf16.gmra.mxu0 %v745
    %v782 = vpop.f32.mrf.mxu0
    %v783 = vadd.f32 %v312, %v782
    %v784 = vpop.f32.mrf.mxu0
    %785 = vdwg.mxu0
    %v787 = vrot.slane %v757, 2
    %v789 = vadd.f32 %v740, %v787
    %v790 = vxor.u32 %v789, 2147483648
    %v791 = vmul.f32 %v790, 1.442695
    %v792 = vpow.pop %v791
    %v793 = vadd.f32 %v792, 1.0
    %v794 = vrcp.pop %v793
    %v795 = vmul.f32 %v793, %v794
    %v796 = vsub.f32 1.0, %v795
    %v797 = vmul.f32 %v794, %v796
    %v798 = vadd.f32 %v794, %v797
    %vm799 = vweird.f32 %v793
    %vm800 = vweird.f32 %v794
    %vm801 = vmor %vm799, %vm800
    %v802 = vsel %vm801, %v794, %v798
    %v803 = vand.u32 2147483647, %v793
    %vm804 = vcmp.eq.f32.partialorder %v803, 8.507059e+37
    %v805 = vand.u32 %v793, 2147483648
    %v806 = vor.u32 1.1754944e-38, %v805
    %v807 = vsel %vm804, %v806, %v802
    %v808 = vmul.f32 1.0, %v807
    %v810 = vrot.slane %v770, 2
    %v812 = vadd.f32 %v741, %v810
    %v813 = vxor.u32 %v812, 2147483648
    %v814 = vmul.f32 %v813, 1.442695
    %v815 = vpow.pop %v814
    %v816 = vadd.f32 %v815, 1.0
    %v817 = vrcp.pop %v816
    %v818 = vmul.f32 %v816, %v817
    %v819 = vsub.f32 1.0, %v818
    %v820 = vmul.f32 %v817, %v819
    %v821 = vadd.f32 %v817, %v820
    %vm822 = vweird.f32 %v816
    %vm823 = vweird.f32 %v817
    %vm824 = vmor %vm822, %vm823
    %v825 = vsel %vm824, %v817, %v821
    %v826 = vand.u32 2147483647, %v816
    %vm827 = vcmp.eq.f32.partialorder %v826, 8.507059e+37
    %v828 = vand.u32 %v816, 2147483648
    %v829 = vor.u32 1.1754944e-38, %v828
    %v830 = vsel %vm827, %v829, %v825
    %v831 = vmul.f32 1.0, %v830
    %v833 = vrot.slane %v783, 2
    %v835 = vmul.f32 %v808, %v833
    %v836 = vadd.f32 %v742, %v835
    %v837 = vtanh.pop %v836
    %v838 = vsub.f32 1.0, %v831
    %v839 = vmul.f32 %v838, %v837
    %v841 = vrot.slane %v738, 6
    %v843 = vmul.f32 %v831, %v841
    %v844 = vadd.f32 %v839, %v843
    %845 = vst [vmem:[#allocation3] sm:$0xc0] %v844
    %v846 = vld [vmem:[#allocation2 + $0x18] sm:$0x3]
    %v847 = vld [vmem:[#allocation2 + $0x20] sm:$0x3]
    %v848 = vld [vmem:[#allocation2 + $0x28] sm:$0x3]
    %v849 = vpack.c.bf16 %v844, %v844
    %v851 = vrot.slane %v849, 3
    %853 = vmatpush.bf16.msra.mxu0 %v417
    %854 = vmatpush.bf16.msra.mxu0 %v414
    %855 = vmatpush.bf16.msra.mxu0 %v411
    %856 = vmatpush.bf16.msra.mxu0 %v408
    %857 = vmatpush.bf16.msra.mxu0 %v405
    %858 = vmatpush.bf16.msra.mxu0 %v402
    %859 = vmatpush.bf16.msra.mxu0 %v399
    %860 = vmatpush.bf16.msra.mxu0 %v396
    %861 = vmatmul.bf16.gmra.mxu0 %v851
    %v862 = vpop.f32.mrf.mxu0
    %v863 = vadd.f32 %v310, %v862
    %v864 = vpop.f32.mrf.mxu0
    %865 = vdwg.mxu0
    %866 = vmatpush.bf16.msra.mxu0 %v418
    %867 = vmatpush.bf16.msra.mxu0 %v415
    %868 = vmatpush.bf16.msra.mxu0 %v412
    %869 = vmatpush.bf16.msra.mxu0 %v409
    %870 = vmatpush.bf16.msra.mxu0 %v406
    %871 = vmatpush.bf16.msra.mxu0 %v403
    %872 = vmatpush.bf16.msra.mxu0 %v400
    %873 = vmatpush.bf16.msra.mxu0 %v397
    %874 = vmatmul.bf16.gmra.mxu0 %v851
    %v875 = vpop.f32.mrf.mxu0
    %v876 = vadd.f32 %v311, %v875
    %v877 = vpop.f32.mrf.mxu0
    %878 = vdwg.mxu0
    %879 = vmatpush.bf16.msra.mxu0 %v419
    %880 = vmatpush.bf16.msra.mxu0 %v416
    %881 = vmatpush.bf16.msra.mxu0 %v413
    %882 = vmatpush.bf16.msra.mxu0 %v410
    %883 = vmatpush.bf16.msra.mxu0 %v407
    %884 = vmatpush.bf16.msra.mxu0 %v404
    %885 = vmatpush.bf16.msra.mxu0 %v401
    %886 = vmatpush.bf16.msra.mxu0 %v398
    %887 = vmatmul.bf16.gmra.mxu0 %v851
    %v888 = vpop.f32.mrf.mxu0
    %v889 = vadd.f32 %v312, %v888
    %v890 = vpop.f32.mrf.mxu0
    %891 = vdwg.mxu0
    %v892 = vadd.f32 %v846, %v863
    %v893 = vxor.u32 %v892, 2147483648
    %v894 = vmul.f32 %v893, 1.442695
    %v895 = vpow.pop %v894
    %v896 = vadd.f32 %v895, 1.0
    %v897 = vrcp.pop %v896
    %v898 = vmul.f32 %v896, %v897
    %v899 = vsub.f32 1.0, %v898
    %v900 = vmul.f32 %v897, %v899
    %v901 = vadd.f32 %v897, %v900
    %vm902 = vweird.f32 %v896
    %vm903 = vweird.f32 %v897
    %vm904 = vmor %vm902, %vm903
    %v905 = vsel %vm904, %v897, %v901
    %v906 = vand.u32 2147483647, %v896
    %vm907 = vcmp.eq.f32.partialorder %v906, 8.507059e+37
    %v908 = vand.u32 %v896, 2147483648
    %v909 = vor.u32 1.1754944e-38, %v908
    %v910 = vsel %vm907, %v909, %v905
    %v911 = vmul.f32 1.0, %v910
    %v912 = vadd.f32 %v847, %v876
    %v913 = vxor.u32 %v912, 2147483648
    %v914 = vmul.f32 %v913, 1.442695
    %v915 = vpow.pop %v914
    %v916 = vadd.f32 %v915, 1.0
    %v917 = vrcp.pop %v916
    %v918 = vmul.f32 %v916, %v917
    %v919 = vsub.f32 1.0, %v918
    %v920 = vmul.f32 %v917, %v919
    %v921 = vadd.f32 %v917, %v920
    %vm922 = vweird.f32 %v916
    %vm923 = vweird.f32 %v917
    %vm924 = vmor %vm922, %vm923
    %v925 = vsel %vm924, %v917, %v921
    %v926 = vand.u32 2147483647, %v916
    %vm927 = vcmp.eq.f32.partialorder %v926, 8.507059e+37
    %v928 = vand.u32 %v916, 2147483648
    %v929 = vor.u32 1.1754944e-38, %v928
    %v930 = vsel %vm927, %v929, %v925
    %v931 = vmul.f32 1.0, %v930
    %v932 = vmul.f32 %v911, %v889
    %v933 = vadd.f32 %v848, %v932
    %v934 = vtanh.pop %v933
    %v935 = vsub.f32 1.0, %v931
    %v936 = vmul.f32 %v935, %v934
    %v938 = vrot.slane %v844, 6
    %v940 = vmul.f32 %v931, %v938
    %v941 = vadd.f32 %v936, %v940
    %942 = vst [vmem:[#allocation3 + $0x8] sm:$0x3] %v941
    %v943 = vld [vmem:[#allocation2 + $0x18] sm:$0xc]
    %v944 = vld [vmem:[#allocation2 + $0x20] sm:$0xc]
    %v945 = vld [vmem:[#allocation2 + $0x28] sm:$0xc]
    %v946 = vpack.c.bf16 %v941, %v941
    %947 = vmatpush.bf16.msra.mxu0 %v417
    %948 = vmatpush.bf16.msra.mxu0 %v414
    %949 = vmatpush.bf16.msra.mxu0 %v411
    %950 = vmatpush.bf16.msra.mxu0 %v408
    %951 = vmatpush.bf16.msra.mxu0 %v405
    %952 = vmatpush.bf16.msra.mxu0 %v402
    %953 = vmatpush.bf16.msra.mxu0 %v399
    %954 = vmatpush.bf16.msra.mxu0 %v396
    %955 = vmatmul.bf16.gmra.mxu0 %v946
    %v956 = vpop.f32.mrf.mxu0
    %v957 = vadd.f32 %v310, %v956
    %v958 = vpop.f32.mrf.mxu0
    %959 = vdwg.mxu0
    %960 = vmatpush.bf16.msra.mxu0 %v418
    %961 = vmatpush.bf16.msra.mxu0 %v415
    %962 = vmatpush.bf16.msra.mxu0 %v412
    %963 = vmatpush.bf16.msra.mxu0 %v409
    %964 = vmatpush.bf16.msra.mxu0 %v406
    %965 = vmatpush.bf16.msra.mxu0 %v403
    %966 = vmatpush.bf16.msra.mxu0 %v400
    %967 = vmatpush.bf16.msra.mxu0 %v397
    %968 = vmatmul.bf16.gmra.mxu0 %v946
    %v969 = vpop.f32.mrf.mxu0
    %v970 = vadd.f32 %v311, %v969
    %v971 = vpop.f32.mrf.mxu0
    %972 = vdwg.mxu0
    %973 = vmatpush.bf16.msra.mxu0 %v419
    %974 = vmatpush.bf16.msra.mxu0 %v416
    %975 = vmatpush.bf16.msra.mxu0 %v413
    %976 = vmatpush.bf16.msra.mxu0 %v410
    %977 = vmatpush.bf16.msra.mxu0 %v407
    %978 = vmatpush.bf16.msra.mxu0 %v404
    %979 = vmatpush.bf16.msra.mxu0 %v401
    %980 = vmatpush.bf16.msra.mxu0 %v398
    %981 = vmatmul.bf16.gmra.mxu0 %v946
    %v982 = vpop.f32.mrf.mxu0
    %v983 = vadd.f32 %v312, %v982
    %v984 = vpop.f32.mrf.mxu0
    %985 = vdwg.mxu0
    %v987 = vrot.slane %v957, 6
    %v989 = vadd.f32 %v943, %v987
    %v990 = vxor.u32 %v989, 2147483648
    %v991 = vmul.f32 %v990, 1.442695
    %v992 = vpow.pop %v991
    %v993 = vadd.f32 %v992, 1.0
    %v994 = vrcp.pop %v993
    %v995 = vmul.f32 %v993, %v994
    %v996 = vsub.f32 1.0, %v995
    %v997 = vmul.f32 %v994, %v996
    %v998 = vadd.f32 %v994, %v997
    %vm999 = vweird.f32 %v993
    %vm1000 = vweird.f32 %v994
    %vm1001 = vmor %vm999, %vm1000
    %v1002 = vsel %vm1001, %v994, %v998
    %v1003 = vand.u32 2147483647, %v993
    %vm1004 = vcmp.eq.f32.partialorder %v1003, 8.507059e+37
    %v1005 = vand.u32 %v993, 2147483648
    %v1006 = vor.u32 1.1754944e-38, %v1005
    %v1007 = vsel %vm1004, %v1006, %v1002
    %v1008 = vmul.f32 1.0, %v1007
    %v1010 = vrot.slane %v970, 6
    %v1012 = vadd.f32 %v944, %v1010
    %v1013 = vxor.u32 %v1012, 2147483648
    %v1014 = vmul.f32 %v1013, 1.442695
    %v1015 = vpow.pop %v1014
    %v1016 = vadd.f32 %v1015, 1.0
    %v1017 = vrcp.pop %v1016
    %v1018 = vmul.f32 %v1016, %v1017
    %v1019 = vsub.f32 1.0, %v1018
    %v1020 = vmul.f32 %v1017, %v1019
    %v1021 = vadd.f32 %v1017, %v1020
    %vm1022 = vweird.f32 %v1016
    %vm1023 = vweird.f32 %v1017
    %vm1024 = vmor %vm1022, %vm1023
    %v1025 = vsel %vm1024, %v1017, %v1021
    %v1026 = vand.u32 2147483647, %v1016
    %vm1027 = vcmp.eq.f32.partialorder %v1026, 8.507059e+37
    %v1028 = vand.u32 %v1016, 2147483648
    %v1029 = vor.u32 1.1754944e-38, %v1028
    %v1030 = vsel %vm1027, %v1029, %v1025
    %v1031 = vmul.f32 1.0, %v1030
    %v1033 = vrot.slane %v983, 6
    %v1035 = vmul.f32 %v1008, %v1033
    %v1036 = vadd.f32 %v945, %v1035
    %v1037 = vtanh.pop %v1036
    %v1038 = vsub.f32 1.0, %v1031
    %v1039 = vmul.f32 %v1038, %v1037
    %v1041 = vrot.slane %v941, 6
    %v1043 = vmul.f32 %v1031, %v1041
    %v1044 = vadd.f32 %v1039, %v1043
    %1045 = vst [vmem:[#allocation3 + $0x8] sm:$0xc] %v1044
    %v1046 = vld [vmem:[#allocation2 + $0x18] sm:$0x30]
    %v1047 = vld [vmem:[#allocation2 + $0x20] sm:$0x30]
    %v1048 = vld [vmem:[#allocation2 + $0x28] sm:$0x30]
    %v1049 = vpack.c.bf16 %v1044, %v1044
    %v1051 = vrot.slane %v1049, 1
    %1053 = vmatpush.bf16.msra.mxu0 %v417
    %1054 = vmatpush.bf16.msra.mxu0 %v414
    %1055 = vmatpush.bf16.msra.mxu0 %v411
    %1056 = vmatpush.bf16.msra.mxu0 %v408
    %1057 = vmatpush.bf16.msra.mxu0 %v405
    %1058 = vmatpush.bf16.msra.mxu0 %v402
    %1059 = vmatpush.bf16.msra.mxu0 %v399
    %1060 = vmatpush.bf16.msra.mxu0 %v396
    %1061 = vmatmul.bf16.gmra.mxu0 %v1051
    %v1062 = vpop.f32.mrf.mxu0
    %v1063 = vadd.f32 %v310, %v1062
    %v1064 = vpop.f32.mrf.mxu0
    %1065 = vdwg.mxu0
    %1066 = vmatpush.bf16.msra.mxu0 %v418
    %1067 = vmatpush.bf16.msra.mxu0 %v415
    %1068 = vmatpush.bf16.msra.mxu0 %v412
    %1069 = vmatpush.bf16.msra.mxu0 %v409
    %1070 = vmatpush.bf16.msra.mxu0 %v406
    %1071 = vmatpush.bf16.msra.mxu0 %v403
    %1072 = vmatpush.bf16.msra.mxu0 %v400
    %1073 = vmatpush.bf16.msra.mxu0 %v397
    %1074 = vmatmul.bf16.gmra.mxu0 %v1051
    %v1075 = vpop.f32.mrf.mxu0
    %v1076 = vadd.f32 %v311, %v1075
    %v1077 = vpop.f32.mrf.mxu0
    %1078 = vdwg.mxu0
    %1079 = vmatpush.bf16.msra.mxu0 %v419
    %1080 = vmatpush.bf16.msra.mxu0 %v416
    %1081 = vmatpush.bf16.msra.mxu0 %v413
    %1082 = vmatpush.bf16.msra.mxu0 %v410
    %1083 = vmatpush.bf16.msra.mxu0 %v407
    %1084 = vmatpush.bf16.msra.mxu0 %v404
    %1085 = vmatpush.bf16.msra.mxu0 %v401
    %1086 = vmatpush.bf16.msra.mxu0 %v398
    %1087 = vmatmul.bf16.gmra.mxu0 %v1051
    %v1088 = vpop.f32.mrf.mxu0
    %v1089 = vadd.f32 %v312, %v1088
    %v1090 = vpop.f32.mrf.mxu0
    %1091 = vdwg.mxu0
    %v1093 = vrot.slane %v1063, 4
    %v1095 = vadd.f32 %v1046, %v1093
    %v1096 = vxor.u32 %v1095, 2147483648
    %v1097 = vmul.f32 %v1096, 1.442695
    %v1098 = vpow.pop %v1097
    %v1099 = vadd.f32 %v1098, 1.0
    %v1100 = vrcp.pop %v1099
    %v1101 = vmul.f32 %v1099, %v1100
    %v1102 = vsub.f32 1.0, %v1101
    %v1103 = vmul.f32 %v1100, %v1102
    %v1104 = vadd.f32 %v1100, %v1103
    %vm1105 = vweird.f32 %v1099
    %vm1106 = vweird.f32 %v1100
    %vm1107 = vmor %vm1105, %vm1106
    %v1108 = vsel %vm1107, %v1100, %v1104
    %v1109 = vand.u32 2147483647, %v1099
    %vm1110 = vcmp.eq.f32.partialorder %v1109, 8.507059e+37
    %v1111 = vand.u32 %v1099, 2147483648
    %v1112 = vor.u32 1.1754944e-38, %v1111
    %v1113 = vsel %vm1110, %v1112, %v1108
    %v1114 = vmul.f32 1.0, %v1113
    %v1116 = vrot.slane %v1076, 4
    %v1118 = vadd.f32 %v1047, %v1116
    %v1119 = vxor.u32 %v1118, 2147483648
    %v1120 = vmul.f32 %v1119, 1.442695
    %v1121 = vpow.pop %v1120
    %v1122 = vadd.f32 %v1121, 1.0
    %v1123 = vrcp.pop %v1122
    %v1124 = vmul.f32 %v1122, %v1123
    %v1125 = vsub.f32 1.0, %v1124
    %v1126 = vmul.f32 %v1123, %v1125
    %v1127 = vadd.f32 %v1123, %v1126
    %vm1128 = vweird.f32 %v1122
    %vm1129 = vweird.f32 %v1123
    %vm1130 = vmor %vm1128, %vm1129
    %v1131 = vsel %vm1130, %v1123, %v1127
    %v1132 = vand.u32 2147483647, %v1122
    %vm1133 = vcmp.eq.f32.partialorder %v1132, 8.507059e+37
    %v1134 = vand.u32 %v1122, 2147483648
    %v1135 = vor.u32 1.1754944e-38, %v1134
    %v1136 = vsel %vm1133, %v1135, %v1131
    %v1137 = vmul.f32 1.0, %v1136
    %v1139 = vrot.slane %v1089, 4
    %v1141 = vmul.f32 %v1114, %v1139
    %v1142 = vadd.f32 %v1048, %v1141
    %v1143 = vtanh.pop %v1142
    %v1144 = vsub.f32 1.0, %v1137
    %v1145 = vmul.f32 %v1144, %v1143
    %v1147 = vrot.slane %v1044, 6
    %v1149 = vmul.f32 %v1137, %v1147
    %v1150 = vadd.f32 %v1145, %v1149
    %1151 = vst [vmem:[#allocation3 + $0x8] sm:$0x30] %v1150
    %v1152 = vld [vmem:[#allocation2 + $0x18] sm:$0xc0]
    %v1153 = vld [vmem:[#allocation2 + $0x20] sm:$0xc0]
    %v1154 = vld [vmem:[#allocation2 + $0x28] sm:$0xc0]
    %v1155 = vpack.c.bf16 %v1150, %v1150
    %v1157 = vrot.slane %v1155, 2
    %1159 = vmatpush.bf16.msra.mxu0 %v417
    %1160 = vmatpush.bf16.msra.mxu0 %v414
    %1161 = vmatpush.bf16.msra.mxu0 %v411
    %1162 = vmatpush.bf16.msra.mxu0 %v408
    %1163 = vmatpush.bf16.msra.mxu0 %v405
    %1164 = vmatpush.bf16.msra.mxu0 %v402
    %1165 = vmatpush.bf16.msra.mxu0 %v399
    %1166 = vmatpush.bf16.msra.mxu0 %v396
    %1167 = vmatmul.bf16.gmra.mxu0 %v1157
    %v1168 = vpop.f32.mrf.mxu0
    %v1169 = vadd.f32 %v310, %v1168
    %v1170 = vpop.f32.mrf.mxu0
    %1171 = vdwg.mxu0
    %1172 = vmatpush.bf16.msra.mxu0 %v418
    %1173 = vmatpush.bf16.msra.mxu0 %v415
    %1174 = vmatpush.bf16.msra.mxu0 %v412
    %1175 = vmatpush.bf16.msra.mxu0 %v409
    %1176 = vmatpush.bf16.msra.mxu0 %v406
    %1177 = vmatpush.bf16.msra.mxu0 %v403
    %1178 = vmatpush.bf16.msra.mxu0 %v400
    %1179 = vmatpush.bf16.msra.mxu0 %v397
    %1180 = vmatmul.bf16.gmra.mxu0 %v1157
    %v1181 = vpop.f32.mrf.mxu0
    %v1182 = vadd.f32 %v311, %v1181
    %v1183 = vpop.f32.mrf.mxu0
    %1184 = vdwg.mxu0
    %1185 = vmatpush.bf16.msra.mxu0 %v419
    %1186 = vmatpush.bf16.msra.mxu0 %v416
    %1187 = vmatpush.bf16.msra.mxu0 %v413
    %1188 = vmatpush.bf16.msra.mxu0 %v410
    %1189 = vmatpush.bf16.msra.mxu0 %v407
    %1190 = vmatpush.bf16.msra.mxu0 %v404
    %1191 = vmatpush.bf16.msra.mxu0 %v401
    %1192 = vmatpush.bf16.msra.mxu0 %v398
    %1193 = vmatmul.bf16.gmra.mxu0 %v1157
    %v1194 = vpop.f32.mrf.mxu0
    %v1195 = vadd.f32 %v312, %v1194
    %v1196 = vpop.f32.mrf.mxu0
    %1197 = vdwg.mxu0
    %v1199 = vrot.slane %v1169, 2
    %v1201 = vadd.f32 %v1152, %v1199
    %v1202 = vxor.u32 %v1201, 2147483648
    %v1203 = vmul.f32 %v1202, 1.442695
    %v1204 = vpow.pop %v1203
    %v1205 = vadd.f32 %v1204, 1.0
    %v1206 = vrcp.pop %v1205
    %v1207 = vmul.f32 %v1205, %v1206
    %v1208 = vsub.f32 1.0, %v1207
    %v1209 = vmul.f32 %v1206, %v1208
    %v1210 = vadd.f32 %v1206, %v1209
    %vm1211 = vweird.f32 %v1205
    %vm1212 = vweird.f32 %v1206
    %vm1213 = vmor %vm1211, %vm1212
    %v1214 = vsel %vm1213, %v1206, %v1210
    %v1215 = vand.u32 2147483647, %v1205
    %vm1216 = vcmp.eq.f32.partialorder %v1215, 8.507059e+37
    %v1217 = vand.u32 %v1205, 2147483648
    %v1218 = vor.u32 1.1754944e-38, %v1217
    %v1219 = vsel %vm1216, %v1218, %v1214
    %v1220 = vmul.f32 1.0, %v1219
    %v1222 = vrot.slane %v1182, 2
    %v1224 = vadd.f32 %v1153, %v1222
    %v1225 = vxor.u32 %v1224, 2147483648
    %v1226 = vmul.f32 %v1225, 1.442695
    %v1227 = vpow.pop %v1226
    %v1228 = vadd.f32 %v1227, 1.0
    %v1229 = vrcp.pop %v1228
    %v1230 = vmul.f32 %v1228, %v1229
    %v1231 = vsub.f32 1.0, %v1230
    %v1232 = vmul.f32 %v1229, %v1231
    %v1233 = vadd.f32 %v1229, %v1232
    %vm1234 = vweird.f32 %v1228
    %vm1235 = vweird.f32 %v1229
    %vm1236 = vmor %vm1234, %vm1235
    %v1237 = vsel %vm1236, %v1229, %v1233
    %v1238 = vand.u32 2147483647, %v1228
    %vm1239 = vcmp.eq.f32.partialorder %v1238, 8.507059e+37
    %v1240 = vand.u32 %v1228, 2147483648
    %v1241 = vor.u32 1.1754944e-38, %v1240
    %v1242 = vsel %vm1239, %v1241, %v1237
    %v1243 = vmul.f32 1.0, %v1242
    %v1245 = vrot.slane %v1195, 2
    %v1247 = vmul.f32 %v1220, %v1245
    %v1248 = vadd.f32 %v1154, %v1247
    %v1249 = vtanh.pop %v1248
    %v1250 = vsub.f32 1.0, %v1243
    %v1251 = vmul.f32 %v1250, %v1249
    %v1253 = vrot.slane %v1150, 6
    %v1255 = vmul.f32 %v1243, %v1253
    %v1256 = vadd.f32 %v1251, %v1255
    %1257 = vst [vmem:[#allocation3 + $0x8] sm:$0xc0] %v1256
    %v1258 = vld [vmem:[#allocation3] sm:$0xff]
    %v1259 = vld [vmem:[#allocation3 + $0x8] sm:$0xff]
    %v1260 = vpack.c.bf16 %v1259, %v1258
    %v1261 = vld [vmem:[%s4] sm:$0xff]
    %v1262 = vld [vmem:[%s4 + $0x8] sm:$0xff]
    %v1263 = vld [vmem:[%s4 + $0x10] sm:$0xff]
    %v1264 = vld [vmem:[%s4 + $0x18] sm:$0xff]
    %v1265 = vld [vmem:[%s4 + $0x20] sm:$0xff]
    %v1266 = vld [vmem:[%s4 + $0x28] sm:$0xff]
    %v1267 = vld [vmem:[%s4 + $0x30] sm:$0xff]
    %v1268 = vld [vmem:[%s4 + $0x38] sm:$0xff]
    %v1269 = vld [vmem:[%s4 + $0x40] sm:$0xff]
    %v1270 = vld [vmem:[%s4 + $0x48] sm:$0xff]
    %v1271 = vld [vmem:[%s4 + $0x50] sm:$0xff]
    %v1272 = vld [vmem:[%s4 + $0x58] sm:$0xff]
    %v1273 = vld [vmem:[%s4 + $0x60] sm:$0xff]
    %v1274 = vld [vmem:[%s4 + $0x68] sm:$0xff]
    %v1275 = vld [vmem:[%s4 + $0x70] sm:$0xff]
    %v1276 = vld [vmem:[%s4 + $0x78] sm:$0xff]
    %v1277 = vld [vmem:[%s4 + $0x80] sm:$0xff]
    %v1278 = vld [vmem:[%s4 + $0x88] sm:$0xff]
    %v1279 = vld [vmem:[%s4 + $0x90] sm:$0xff]
    %v1280 = vld [vmem:[%s4 + $0x98] sm:$0xff]
    %v1281 = vld [vmem:[%s4 + $0xa0] sm:$0xff]
    %v1282 = vld [vmem:[%s4 + $0xa8] sm:$0xff]
    %v1283 = vld [vmem:[%s4 + $0xb0] sm:$0xff]
    %v1284 = vld [vmem:[%s4 + $0xb8] sm:$0xff]
    %v1285 = vld [vmem:[%s4 + $0xc0] sm:$0xff]
    %v1286 = vld [vmem:[%s4 + $0xc8] sm:$0xff]
    %v1287 = vld [vmem:[%s4 + $0xd0] sm:$0xff]
    %v1288 = vld [vmem:[%s4 + $0xd8] sm:$0xff]
    %v1289 = vld [vmem:[%s4 + $0xe0] sm:$0xff]
    %v1290 = vld [vmem:[%s4 + $0xe8] sm:$0xff]
    %v1291 = vld [vmem:[%s4 + $0xf0] sm:$0xff]
    %v1292 = vld [vmem:[%s4 + $0xf8] sm:$0xff]
    %v1293 = vld [vmem:[%s5] sm:$0xf]
    %v1295 = vperm.slane %v1293, 0
    %v1296 = vperm.slane %v1293, 1
    %v1297 = vperm.slane %v1293, 2
    %v1298 = vperm.slane %v1293, 3
    %v1335 = vunpack.c.l.b16 %v1261
    %v1336 = vunpack.c.h.b16 %v1261
    %v1337 = vunpack.c.l.b16 %v1262
    %v1338 = vunpack.c.h.b16 %v1262
    %v1339 = vunpack.c.l.b16 %v1263
    %v1340 = vunpack.c.h.b16 %v1263
    %v1341 = vunpack.c.l.b16 %v1264
    %v1342 = vunpack.c.h.b16 %v1264
    %v1343 = vunpack.c.l.b16 %v1265
    %v1344 = vunpack.c.h.b16 %v1265
    %v1345 = vunpack.c.l.b16 %v1266
    %v1346 = vunpack.c.h.b16 %v1266
    %v1347 = vunpack.c.l.b16 %v1267
    %v1348 = vunpack.c.h.b16 %v1267
    %v1349 = vunpack.c.l.b16 %v1268
    %v1350 = vunpack.c.h.b16 %v1268
    %v1351 = vunpack.c.l.b16 %v1269
    %v1352 = vunpack.c.h.b16 %v1269
    %v1353 = vunpack.c.l.b16 %v1270
    %v1354 = vunpack.c.h.b16 %v1270
    %v1355 = vunpack.c.l.b16 %v1271
    %v1356 = vunpack.c.h.b16 %v1271
    %v1357 = vunpack.c.l.b16 %v1272
    %v1358 = vunpack.c.h.b16 %v1272
    %v1359 = vunpack.c.l.b16 %v1273
    %v1360 = vunpack.c.h.b16 %v1273
    %v1361 = vunpack.c.l.b16 %v1274
    %v1362 = vunpack.c.h.b16 %v1274
    %v1363 = vunpack.c.l.b16 %v1275
    %v1364 = vunpack.c.h.b16 %v1275
    %v1365 = vunpack.c.l.b16 %v1276
    %v1366 = vunpack.c.h.b16 %v1276
    %v1367 = vunpack.c.l.b16 %v1277
    %v1368 = vunpack.c.h.b16 %v1277
    %v1369 = vunpack.c.l.b16 %v1278
    %v1370 = vunpack.c.h.b16 %v1278
    %v1371 = vunpack.c.l.b16 %v1279
    %v1372 = vunpack.c.h.b16 %v1279
    %v1373 = vunpack.c.l.b16 %v1280
    %v1374 = vunpack.c.h.b16 %v1280
    %v1375 = vunpack.c.l.b16 %v1281
    %v1376 = vunpack.c.h.b16 %v1281
    %v1377 = vunpack.c.l.b16 %v1282
    %v1378 = vunpack.c.h.b16 %v1282
    %v1379 = vunpack.c.l.b16 %v1283
    %v1380 = vunpack.c.h.b16 %v1283
    %v1381 = vunpack.c.l.b16 %v1284
    %v1382 = vunpack.c.h.b16 %v1284
    %v1383 = vunpack.c.l.b16 %v1285
    %v1384 = vunpack.c.h.b16 %v1285
    %v1385 = vunpack.c.l.b16 %v1286
    %v1386 = vunpack.c.h.b16 %v1286
    %v1387 = vunpack.c.l.b16 %v1287
    %v1388 = vunpack.c.h.b16 %v1287
    %v1389 = vunpack.c.l.b16 %v1288
    %v1390 = vunpack.c.h.b16 %v1288
    %v1391 = vunpack.c.l.b16 %v1289
    %v1392 = vunpack.c.h.b16 %v1289
    %v1393 = vunpack.c.l.b16 %v1290
    %v1394 = vunpack.c.h.b16 %v1290
    %v1395 = vunpack.c.l.b16 %v1291
    %v1396 = vunpack.c.h.b16 %v1291
    %v1397 = vunpack.c.l.b16 %v1292
    %v1398 = vunpack.c.h.b16 %v1292
    %v1399 = vpack.c.b16 %v1339, %v1335
    %v1400 = vpack.c.b16 %v1340, %v1336
    %v1401 = vpack.c.b16 %v1341, %v1337
    %v1402 = vpack.c.b16 %v1342, %v1338
    %v1403 = vpack.c.b16 %v1347, %v1343
    %v1404 = vpack.c.b16 %v1348, %v1344
    %v1405 = vpack.c.b16 %v1349, %v1345
    %v1406 = vpack.c.b16 %v1350, %v1346
    %v1407 = vpack.c.b16 %v1355, %v1351
    %v1408 = vpack.c.b16 %v1356, %v1352
    %v1409 = vpack.c.b16 %v1357, %v1353
    %v1410 = vpack.c.b16 %v1358, %v1354
    %v1411 = vpack.c.b16 %v1363, %v1359
    %v1412 = vpack.c.b16 %v1364, %v1360
    %v1413 = vpack.c.b16 %v1365, %v1361
    %v1414 = vpack.c.b16 %v1366, %v1362
    %v1415 = vpack.c.b16 %v1371, %v1367
    %v1416 = vpack.c.b16 %v1372, %v1368
    %v1417 = vpack.c.b16 %v1373, %v1369
    %v1418 = vpack.c.b16 %v1374, %v1370
    %v1419 = vpack.c.b16 %v1379, %v1375
    %v1420 = vpack.c.b16 %v1380, %v1376
    %v1421 = vpack.c.b16 %v1381, %v1377
    %v1422 = vpack.c.b16 %v1382, %v1378
    %v1423 = vpack.c.b16 %v1387, %v1383
    %v1424 = vpack.c.b16 %v1388, %v1384
    %v1425 = vpack.c.b16 %v1389, %v1385
    %v1426 = vpack.c.b16 %v1390, %v1386
    %v1427 = vpack.c.b16 %v1395, %v1391
    %v1428 = vpack.c.b16 %v1396, %v1392
    %v1429 = vpack.c.b16 %v1397, %v1393
    %v1430 = vpack.c.b16 %v1398, %v1394
    %1463 = vmatpush.bf16.msra.mxu0 %v1427
    %1464 = vmatpush.bf16.msra.mxu0 %v1423
    %1465 = vmatpush.bf16.msra.mxu0 %v1419
    %1466 = vmatpush.bf16.msra.mxu0 %v1415
    %1467 = vmatpush.bf16.msra.mxu0 %v1411
    %1468 = vmatpush.bf16.msra.mxu0 %v1407
    %1469 = vmatpush.bf16.msra.mxu0 %v1403
    %1470 = vmatpush.bf16.msra.mxu0 %v1399
    %1471 = vmatmul.bf16.gmra.mxu0 %v1260
    %v1472 = vpop.f32.mrf.mxu0
    %v1473 = vadd.f32 %v1295, %v1472
    %v1474 = vpop.f32.mrf.mxu0
    %v1475 = vadd.f32 %v1295, %v1474
    %1476 = vdwg.mxu0
    %1477 = vmatpush.bf16.msra.mxu0 %v1428
    %1478 = vmatpush.bf16.msra.mxu0 %v1424
    %1479 = vmatpush.bf16.msra.mxu0 %v1420
    %1480 = vmatpush.bf16.msra.mxu0 %v1416
    %1481 = vmatpush.bf16.msra.mxu0 %v1412
    %1482 = vmatpush.bf16.msra.mxu0 %v1408
    %1483 = vmatpush.bf16.msra.mxu0 %v1404
    %1484 = vmatpush.bf16.msra.mxu0 %v1400
    %1485 = vmatmul.bf16.gmra.mxu0 %v1260
    %v1486 = vpop.f32.mrf.mxu0
    %v1487 = vadd.f32 %v1296, %v1486
    %v1488 = vpop.f32.mrf.mxu0
    %v1489 = vadd.f32 %v1296, %v1488
    %1490 = vdwg.mxu0
    %1491 = vmatpush.bf16.msra.mxu0 %v1429
    %1492 = vmatpush.bf16.msra.mxu0 %v1425
    %1493 = vmatpush.bf16.msra.mxu0 %v1421
    %1494 = vmatpush.bf16.msra.mxu0 %v1417
    %1495 = vmatpush.bf16.msra.mxu0 %v1413
    %1496 = vmatpush.bf16.msra.mxu0 %v1409
    %1497 = vmatpush.bf16.msra.mxu0 %v1405
    %1498 = vmatpush.bf16.msra.mxu0 %v1401
    %1499 = vmatmul.bf16.gmra.mxu0 %v1260
    %v1500 = vpop.f32.mrf.mxu0
    %v1501 = vadd.f32 %v1297, %v1500
    %v1502 = vpop.f32.mrf.mxu0
    %v1503 = vadd.f32 %v1297, %v1502
    %1504 = vdwg.mxu0
    %1505 = vmatpush.bf16.msra.mxu0 %v1430
    %1506 = vmatpush.bf16.msra.mxu0 %v1426
    %1507 = vmatpush.bf16.msra.mxu0 %v1422
    %1508 = vmatpush.bf16.msra.mxu0 %v1418
    %1509 = vmatpush.bf16.msra.mxu0 %v1414
    %1510 = vmatpush.bf16.msra.mxu0 %v1410
    %1511 = vmatpush.bf16.msra.mxu0 %v1406
    %1512 = vmatpush.bf16.msra.mxu0 %v1402
    %1513 = vmatmul.bf16.gmra.mxu0 %v1260
    %v1514 = vpop.f32.mrf.mxu0
    %v1515 = vadd.f32 %v1298, %v1514
    %v1516 = vpop.f32.mrf.mxu0
    %v1517 = vadd.f32 %v1298, %v1516
    %1518 = vdwg.mxu0
    %v1519 = vmax.f32 %v1473, 0.0
    %v1520 = vmax.f32 %v1487, 0.0
    %v1521 = vmax.f32 %v1501, 0.0
    %v1522 = vmax.f32 %v1515, 0.0
    %v1523 = vmax.f32 %v1475, 0.0
    %v1524 = vmax.f32 %v1489, 0.0
    %v1525 = vmax.f32 %v1503, 0.0
    %v1526 = vmax.f32 %v1517, 0.0
    %v1527 = vld [vmem:[%s6] sm:$0xff]
    %v1528 = vld [vmem:[%s6 + $0x8] sm:$0xff]
    %v1529 = vld [vmem:[%s6 + $0x10] sm:$0xff]
    %v1530 = vld [vmem:[%s6 + $0x18] sm:$0xff]
    %v1531 = vld [vmem:[%s6 + $0x20] sm:$0xff]
    %v1532 = vld [vmem:[%s6 + $0x28] sm:$0xff]
    %v1533 = vld [vmem:[%s6 + $0x30] sm:$0xff]
    %v1534 = vld [vmem:[%s6 + $0x38] sm:$0xff]
    %v1535 = vld [vmem:[%s6 + $0x40] sm:$0xff]
    %v1536 = vld [vmem:[%s6 + $0x48] sm:$0xff]
    %v1537 = vld [vmem:[%s6 + $0x50] sm:$0xff]
    %v1538 = vld [vmem:[%s6 + $0x58] sm:$0xff]
    %v1539 = vld [vmem:[%s6 + $0x60] sm:$0xff]
    %v1540 = vld [vmem:[%s6 + $0x68] sm:$0xff]
    %v1541 = vld [vmem:[%s6 + $0x70] sm:$0xff]
    %v1542 = vld [vmem:[%s6 + $0x78] sm:$0xff]
    %v1543 = vld [vmem:[%s6 + $0x80] sm:$0xff]
    %v1544 = vld [vmem:[%s6 + $0x88] sm:$0xff]
    %v1545 = vld [vmem:[%s6 + $0x90] sm:$0xff]
    %v1546 = vld [vmem:[%s6 + $0x98] sm:$0xff]
    %v1547 = vld [vmem:[%s6 + $0xa0] sm:$0xff]
    %v1548 = vld [vmem:[%s6 + $0xa8] sm:$0xff]
    %v1549 = vld [vmem:[%s6 + $0xb0] sm:$0xff]
    %v1550 = vld [vmem:[%s6 + $0xb8] sm:$0xff]
    %v1551 = vld [vmem:[%s6 + $0xc0] sm:$0xff]
    %v1552 = vld [vmem:[%s6 + $0xc8] sm:$0xff]
    %v1553 = vld [vmem:[%s6 + $0xd0] sm:$0xff]
    %v1554 = vld [vmem:[%s6 + $0xd8] sm:$0xff]
    %v1555 = vld [vmem:[%s6 + $0xe0] sm:$0xff]
    %v1556 = vld [vmem:[%s6 + $0xe8] sm:$0xff]
    %v1557 = vld [vmem:[%s6 + $0xf0] sm:$0xff]
    %v1558 = vld [vmem:[%s6 + $0xf8] sm:$0xff]
    %v1559 = vld [vmem:[%s6 + $0x100] sm:$0xff]
    %v1560 = vld [vmem:[%s6 + $0x108] sm:$0xff]
    %v1561 = vld [vmem:[%s6 + $0x110] sm:$0xff]
    %v1562 = vld [vmem:[%s6 + $0x118] sm:$0xff]
    %v1563 = vld [vmem:[%s6 + $0x120] sm:$0xff]
    %v1564 = vld [vmem:[%s6 + $0x128] sm:$0xff]
    %v1565 = vld [vmem:[%s6 + $0x130] sm:$0xff]
    %v1566 = vld [vmem:[%s6 + $0x138] sm:$0xff]
    %v1567 = vld [vmem:[%s6 + $0x140] sm:$0xff]
    %v1568 = vld [vmem:[%s6 + $0x148] sm:$0xff]
    %v1569 = vld [vmem:[%s6 + $0x150] sm:$0xff]
    %v1570 = vld [vmem:[%s6 + $0x158] sm:$0xff]
    %v1571 = vld [vmem:[%s6 + $0x160] sm:$0xff]
    %v1572 = vld [vmem:[%s6 + $0x168] sm:$0xff]
    %v1573 = vld [vmem:[%s6 + $0x170] sm:$0xff]
    %v1574 = vld [vmem:[%s6 + $0x178] sm:$0xff]
    %v1575 = vld [vmem:[%s6 + $0x180] sm:$0xff]
    %v1576 = vld [vmem:[%s6 + $0x188] sm:$0xff]
    %v1577 = vld [vmem:[%s6 + $0x190] sm:$0xff]
    %v1578 = vld [vmem:[%s6 + $0x198] sm:$0xff]
    %v1579 = vld [vmem:[%s6 + $0x1a0] sm:$0xff]
    %v1580 = vld [vmem:[%s6 + $0x1a8] sm:$0xff]
    %v1581 = vld [vmem:[%s6 + $0x1b0] sm:$0xff]
    %v1582 = vld [vmem:[%s6 + $0x1b8] sm:$0xff]
    %v1583 = vld [vmem:[%s6 + $0x1c0] sm:$0xff]
    %v1584 = vld [vmem:[%s6 + $0x1c8] sm:$0xff]
    %v1585 = vld [vmem:[%s6 + $0x1d0] sm:$0xff]
    %v1586 = vld [vmem:[%s6 + $0x1d8] sm:$0xff]
    %v1587 = vld [vmem:[%s6 + $0x1e0] sm:$0xff]
    %v1588 = vld [vmem:[%s6 + $0x1e8] sm:$0xff]
    %v1589 = vld [vmem:[%s6 + $0x1f0] sm:$0xff]
    %v1590 = vld [vmem:[%s6 + $0x1f8] sm:$0xff]
    %1591 = vmatpush.msra.mxu0 %v1542
    %1592 = vmatpush.msra.mxu0 %v1541
    %1593 = vmatpush.msra.mxu0 %v1540
    %1594 = vmatpush.msra.mxu0 %v1539
    %1595 = vmatpush.msra.mxu0 %v1538
    %1596 = vmatpush.msra.mxu0 %v1537
    %1597 = vmatpush.msra.mxu0 %v1536
    %1598 = vmatpush.msra.mxu0 %v1535
    %1599 = vmatpush.msra.mxu0 %v1534
    %1600 = vmatpush.msra.mxu0 %v1533
    %1601 = vmatpush.msra.mxu0 %v1532
    %1602 = vmatpush.msra.mxu0 %v1531
    %1603 = vmatpush.msra.mxu0 %v1530
    %1604 = vmatpush.msra.mxu0 %v1529
    %1605 = vmatpush.msra.mxu0 %v1528
    %1606 = vmatpush.msra.mxu0 %v1527
    %1607 = vmatmul.f32.gmra.mxu0 %v1519
    %v1608 = vpop.f32.mrf.mxu0
    %v1609 = vadd.f32 0.0, %v1608
    %1610 = vmatmul.f32.gmra.mxu0 %v1523
    %v1611 = vpop.f32.mrf.mxu0
    %v1612 = vadd.f32 0.0, %v1611
    %1613 = vdwg.mxu0
    %1614 = vmatpush.msra.mxu0 %v1558
    %1615 = vmatpush.msra.mxu0 %v1557
    %1616 = vmatpush.msra.mxu0 %v1556
    %1617 = vmatpush.msra.mxu0 %v1555
    %1618 = vmatpush.msra.mxu0 %v1554
    %1619 = vmatpush.msra.mxu0 %v1553
    %1620 = vmatpush.msra.mxu0 %v1552
    %1621 = vmatpush.msra.mxu0 %v1551
    %1622 = vmatpush.msra.mxu0 %v1550
    %1623 = vmatpush.msra.mxu0 %v1549
    %1624 = vmatpush.msra.mxu0 %v1548
    %1625 = vmatpush.msra.mxu0 %v1547
    %1626 = vmatpush.msra.mxu0 %v1546
    %1627 = vmatpush.msra.mxu0 %v1545
    %1628 = vmatpush.msra.mxu0 %v1544
    %1629 = vmatpush.msra.mxu0 %v1543
    %1630 = vmatmul.f32.gmra.mxu0 %v1520
    %v1631 = vpop.f32.mrf.mxu0
    %v1632 = vadd.f32 %v1609, %v1631
    %1633 = vmatmul.f32.gmra.mxu0 %v1524
    %v1634 = vpop.f32.mrf.mxu0
    %v1635 = vadd.f32 %v1612, %v1634
    %1636 = vdwg.mxu0
    %1637 = vmatpush.msra.mxu0 %v1574
    %1638 = vmatpush.msra.mxu0 %v1573
    %1639 = vmatpush.msra.mxu0 %v1572
    %1640 = vmatpush.msra.mxu0 %v1571
    %1641 = vmatpush.msra.mxu0 %v1570
    %1642 = vmatpush.msra.mxu0 %v1569
    %1643 = vmatpush.msra.mxu0 %v1568
    %1644 = vmatpush.msra.mxu0 %v1567
    %1645 = vmatpush.msra.mxu0 %v1566
    %1646 = vmatpush.msra.mxu0 %v1565
    %1647 = vmatpush.msra.mxu0 %v1564
    %1648 = vmatpush.msra.mxu0 %v1563
    %1649 = vmatpush.msra.mxu0 %v1562
    %1650 = vmatpush.msra.mxu0 %v1561
    %1651 = vmatpush.msra.mxu0 %v1560
    %1652 = vmatpush.msra.mxu0 %v1559
    %1653 = vmatmul.f32.gmra.mxu0 %v1521
    %v1654 = vpop.f32.mrf.mxu0
    %v1655 = vadd.f32 %v1632, %v1654
    %1656 = vmatmul.f32.gmra.mxu0 %v1525
    %v1657 = vpop.f32.mrf.mxu0
    %v1658 = vadd.f32 %v1635, %v1657
    %1659 = vdwg.mxu0
    %1660 = vmatpush.msra.mxu0 %v1590
    %1661 = vmatpush.msra.mxu0 %v1589
    %1662 = vmatpush.msra.mxu0 %v1588
    %1663 = vmatpush.msra.mxu0 %v1587
    %1664 = vmatpush.msra.mxu0 %v1586
    %1665 = vmatpush.msra.mxu0 %v1585
    %1666 = vmatpush.msra.mxu0 %v1584
    %1667 = vmatpush.msra.mxu0 %v1583
    %1668 = vmatpush.msra.mxu0 %v1582
    %1669 = vmatpush.msra.mxu0 %v1581
    %1670 = vmatpush.msra.mxu0 %v1580
    %1671 = vmatpush.msra.mxu0 %v1579
    %1672 = vmatpush.msra.mxu0 %v1578
    %1673 = vmatpush.msra.mxu0 %v1577
    %1674 = vmatpush.msra.mxu0 %v1576
    %1675 = vmatpush.msra.mxu0 %v1575
    %1676 = vmatmul.f32.gmra.mxu0 %v1522
    %v1677 = vpop.f32.mrf.mxu0
    %v1678 = vadd.f32 %v1655, %v1677
    %1679 = vmatmul.f32.gmra.mxu0 %v1526
    %v1680 = vpop.f32.mrf.mxu0
    %v1681 = vadd.f32 %v1658, %v1680
    %1682 = vdwg.mxu0
    %vm1683 = vcmask 31744
    %v1684 = vsel %vm1683, %v1678, -inf
    %v1685 = vsel %vm1683, %v1681, -inf
    %v1686 = vmax.f32 %v1684, %v1685
    %v1687 = vrot.slane %v1686, 4
    %v1688 = vmax.f32 %v1686, %v1687
    %v1689 = vrot.slane %v1688, 2
    %v1690 = vmax.f32 %v1688, %v1689
    %v1691 = vrot.slane %v1690, 1
    %v1692 = vmax.f32 %v1690, %v1691
    %v1693 = vsub.f32 %v1678, %v1692
    %v1694 = vsub.f32 %v1681, %v1692
    %v1695 = vmul.f32 %v1693, 1.442695
    %v1696 = vpow.pop %v1695
    %v1697 = vmul.f32 %v1694, 1.442695
    %v1698 = vpow.pop %v1697
    %v1699 = vld [vmem:[%s11] sm:$0xff]
    %v1700 = vld [vmem:[%s11 + $0x8] sm:$0xff]
    %v1701 = vld [vmem:[%s12] sm:$0x3]
    %vm1702 = vcmask 130048
    %v1704 = vsel %vm1702, %v1701, 0
    %1706 = vmatpush.msra.mxu0 0.0
    %1707 = vmatpush.msra.mxu0 0.0
    %1708 = vmatpush.msra.mxu0 0.0
    %1709 = vmatpush.msra.mxu0 0.0
    %1710 = vmatpush.msra.mxu0 0.0
    %1711 = vmatpush.msra.mxu0 0.0
    %1712 = vmatpush.msra.mxu0 0.0
    %1713 = vmatpush.msra.mxu0 0.0
    %1714 = vmatpush.msra.mxu0 0.0
    %1715 = vmatpush.msra.mxu0 0.0
    %1716 = vmatpush.msra.mxu0 0.0
    %1717 = vmatpush.msra.mxu0 0.0
    %1718 = vmatpush.msra.mxu0 0.0
    %1719 = vmatpush.msra.mxu0 0.0
    %1720 = vmatpush.msra.mxu0 %v1698
    %1721 = vmatpush.msra.mxu0 %v1696
    %1722 = vmatmul.f32.gmra.mxu0 %v1704
    %v1723 = vpop.f32.mrf.mxu0
    %v1724 = vadd.f32 0.0, %v1723
    %1725 = vdwg.mxu0
    %vm1726 = vcmask 15360
    %v1728 = vsel %vm1726, %v1699, 0
    %v1731 = vsel %vm1726, %v1700, 0
    %vm1733 = vcmask 1041408
    %v1735 = vsel %vm1733, %v1724, 0
    %1737 = vmatpush.msra.mxu0 0.0
    %1738 = vmatpush.msra.mxu0 0.0
    %1739 = vmatpush.msra.mxu0 0.0
    %1740 = vmatpush.msra.mxu0 0.0
    %1741 = vmatpush.msra.mxu0 0.0
    %1742 = vmatpush.msra.mxu0 0.0
    %1743 = vmatpush.msra.mxu0 0.0
    %1744 = vmatpush.msra.mxu0 0.0
    %1745 = vmatpush.msra.mxu0 0.0
    %1746 = vmatpush.msra.mxu0 0.0
    %1747 = vmatpush.msra.mxu0 0.0
    %1748 = vmatpush.msra.mxu0 0.0
    %1749 = vmatpush.msra.mxu0 0.0
    %1750 = vmatpush.msra.mxu0 0.0
    %1751 = vmatpush.msra.mxu0 0.0
    %1752 = vmatpush.msra.mxu0 %v1735
    %1753 = vmatmul.f32.gmra.mxu0 %v1728
    %v1754 = vpop.f32.mrf.mxu0
    %v1755 = vadd.f32 0.0, %v1754
    %1756 = vmatmul.f32.gmra.mxu0 %v1731
    %v1757 = vpop.f32.mrf.mxu0
    %v1758 = vadd.f32 0.0, %v1757
    %1759 = vdwg.mxu0
    %v1760 = vrcp.pop %v1755
    %v1761 = vmul.f32 %v1755, %v1760
    %v1762 = vsub.f32 1.0, %v1761
    %v1763 = vmul.f32 %v1760, %v1762
    %v1764 = vadd.f32 %v1760, %v1763
    %vm1765 = vweird.f32 %v1755
    %vm1766 = vweird.f32 %v1760
    %vm1767 = vmor %vm1765, %vm1766
    %v1768 = vsel %vm1767, %v1760, %v1764
    %v1769 = vand.u32 2147483647, %v1755
    %vm1770 = vcmp.eq.f32.partialorder %v1769, 8.507059e+37
    %v1771 = vand.u32 %v1755, 2147483648
    %v1772 = vor.u32 1.1754944e-38, %v1771
    %v1773 = vsel %vm1770, %v1772, %v1768
    %v1774 = vmul.f32 %v1696, %v1773
    %v1775 = vrcp.pop %v1758
    %v1776 = vmul.f32 %v1758, %v1775
    %v1777 = vsub.f32 1.0, %v1776
    %v1778 = vmul.f32 %v1775, %v1777
    %v1779 = vadd.f32 %v1775, %v1778
    %vm1780 = vweird.f32 %v1758
    %vm1781 = vweird.f32 %v1775
    %vm1782 = vmor %vm1780, %vm1781
    %v1783 = vsel %vm1782, %v1775, %v1779
    %v1784 = vand.u32 2147483647, %v1758
    %vm1785 = vcmp.eq.f32.partialorder %v1784, 8.507059e+37
    %v1786 = vand.u32 %v1758, 2147483648
    %v1787 = vor.u32 1.1754944e-38, %v1786
    %v1788 = vsel %vm1785, %v1787, %v1783
    %v1789 = vmul.f32 %v1698, %v1788
    %v1790 = vld [vmem:[%s13] sm:$0xff]
    %v1791 = vld [vmem:[%s13 + $0x8] sm:$0xff]
    %1794 = vst [vmem:[#allocation1] ss:$2 sm:$0xff] %v1790
    %s1795 = scalar_lea.vmem [#allocation1], 16
    %1796 = vst [vmem:[%s1795] ss:$2 sm:$0xff] %v1791
    %v1797 = vld.sshfl [vmem:[#allocation1] sm:$0xff pattern:$0x75316420]
    %v1798 = vld.sshfl [vmem:[#allocation1 + $0x8] sm:$0xff pattern:$0x75316420]
    %v1799 = vld.sshfl [vmem:[#allocation1 + $0x10] sm:$0xff pattern:$0x75316420]
    %v1800 = vld.sshfl [vmem:[#allocation1 + $0x18] sm:$0xff pattern:$0x75316420]
    %v1802 = vsel %vm1683, %v1774, 0
    %v1805 = vsel %vm1683, %v1789, 0
    %vm1807 = vcmask 1043456
    %v1808 = vsel %vm1807, %v1797, 0
    %v1810 = vsel %vm1807, %v1798, 0
    %v1812 = vsel %vm1807, %v1799, 0
    %v1814 = vsel %vm1807, %v1800, 0
    %1816 = vmatpush.msra.mxu0 0.0
    %1817 = vmatpush.msra.mxu0 0.0
    %1818 = vmatpush.msra.mxu0 0.0
    %1819 = vmatpush.msra.mxu0 0.0
    %1820 = vmatpush.msra.mxu0 0.0
    %1821 = vmatpush.msra.mxu0 0.0
    %1822 = vmatpush.msra.mxu0 0.0
    %1823 = vmatpush.msra.mxu0 0.0
    %1824 = vmatpush.msra.mxu0 0.0
    %1825 = vmatpush.msra.mxu0 0.0
    %1826 = vmatpush.msra.mxu0 0.0
    %1827 = vmatpush.msra.mxu0 0.0
    %1828 = vmatpush.msra.mxu0 0.0
    %1829 = vmatpush.msra.mxu0 0.0
    %1830 = vmatpush.msra.mxu0 0.0
    %1831 = vmatpush.msra.mxu0 %v1808
    %1832 = vmatmul.f32.gmra.mxu0 %v1802
    %v1833 = vpop.f32.mrf.mxu0
    %v1834 = vadd.f32 0.0, %v1833
    %1835 = vmatmul.f32.gmra.mxu0 %v1805
    %v1836 = vpop.f32.mrf.mxu0
    %v1837 = vadd.f32 0.0, %v1836
    %1838 = vdwg.mxu0
    %1839 = vmatpush.msra.mxu0 0.0
    %1840 = vmatpush.msra.mxu0 0.0
    %1841 = vmatpush.msra.mxu0 0.0
    %1842 = vmatpush.msra.mxu0 0.0
    %1843 = vmatpush.msra.mxu0 0.0
    %1844 = vmatpush.msra.mxu0 0.0
    %1845 = vmatpush.msra.mxu0 0.0
    %1846 = vmatpush.msra.mxu0 0.0
    %1847 = vmatpush.msra.mxu0 0.0
    %1848 = vmatpush.msra.mxu0 0.0
    %1849 = vmatpush.msra.mxu0 0.0
    %1850 = vmatpush.msra.mxu0 0.0
    %1851 = vmatpush.msra.mxu0 0.0
    %1852 = vmatpush.msra.mxu0 0.0
    %1853 = vmatpush.msra.mxu0 0.0
    %1854 = vmatpush.msra.mxu0 %v1810
    %1855 = vmatmul.f32.gmra.mxu0 %v1802
    %v1856 = vpop.f32.mrf.mxu0
    %v1857 = vadd.f32 0.0, %v1856
    %1858 = vmatmul.f32.gmra.mxu0 %v1805
    %v1859 = vpop.f32.mrf.mxu0
    %v1860 = vadd.f32 0.0, %v1859
    %1861 = vdwg.mxu0
    %1862 = vmatpush.msra.mxu0 0.0
    %1863 = vmatpush.msra.mxu0 0.0
    %1864 = vmatpush.msra.mxu0 0.0
    %1865 = vmatpush.msra.mxu0 0.0
    %1866 = vmatpush.msra.mxu0 0.0
    %1867 = vmatpush.msra.mxu0 0.0
    %1868 = vmatpush.msra.mxu0 0.0
    %1869 = vmatpush.msra.mxu0 0.0
    %1870 = vmatpush.msra.mxu0 0.0
    %1871 = vmatpush.msra.mxu0 0.0
    %1872 = vmatpush.msra.mxu0 0.0
    %1873 = vmatpush.msra.mxu0 0.0
    %1874 = vmatpush.msra.mxu0 0.0
    %1875 = vmatpush.msra.mxu0 0.0
    %1876 = vmatpush.msra.mxu0 0.0
    %1877 = vmatpush.msra.mxu0 %v1812
    %1878 = vmatmul.f32.gmra.mxu0 %v1802
    %v1879 = vpop.f32.mrf.mxu0
    %v1880 = vadd.f32 0.0, %v1879
    %1881 = vmatmul.f32.gmra.mxu0 %v1805
    %v1882 = vpop.f32.mrf.mxu0
    %v1883 = vadd.f32 0.0, %v1882
    %1884 = vdwg.mxu0
    %1885 = vmatpush.msra.mxu0 0.0
    %1886 = vmatpush.msra.mxu0 0.0
    %1887 = vmatpush.msra.mxu0 0.0
    %1888 = vmatpush.msra.mxu0 0.0
    %1889 = vmatpush.msra.mxu0 0.0
    %1890 = vmatpush.msra.mxu0 0.0
    %1891 = vmatpush.msra.mxu0 0.0
    %1892 = vmatpush.msra.mxu0 0.0
    %1893 = vmatpush.msra.mxu0 0.0
    %1894 = vmatpush.msra.mxu0 0.0
    %1895 = vmatpush.msra.mxu0 0.0
    %1896 = vmatpush.msra.mxu0 0.0
    %1897 = vmatpush.msra.mxu0 0.0
    %1898 = vmatpush.msra.mxu0 0.0
    %1899 = vmatpush.msra.mxu0 0.0
    %1900 = vmatpush.msra.mxu0 %v1814
    %1901 = vmatmul.f32.gmra.mxu0 %v1802
    %v1902 = vpop.f32.mrf.mxu0
    %v1903 = vadd.f32 0.0, %v1902
    %1904 = vmatmul.f32.gmra.mxu0 %v1805
    %v1905 = vpop.f32.mrf.mxu0
    %v1906 = vadd.f32 0.0, %v1905
    %1907 = vdwg.mxu0
    %v1908 = vmul.f32 %v1834, %v1519
    %v1909 = vmul.f32 %v1857, %v1520
    %v1910 = vmul.f32 %v1880, %v1521
    %v1911 = vmul.f32 %v1903, %v1522
    %v1912 = vmul.f32 %v1837, %v1523
    %v1913 = vmul.f32 %v1860, %v1524
    %v1914 = vmul.f32 %v1883, %v1525
    %v1915 = vmul.f32 %v1906, %v1526
    %1916 = vmatpush.msra.mxu0 0.0
    %1917 = vmatpush.msra.mxu0 0.0
    %1918 = vmatpush.msra.mxu0 0.0
    %1919 = vmatpush.msra.mxu0 0.0
    %1920 = vmatpush.msra.mxu0 0.0
    %1921 = vmatpush.msra.mxu0 0.0
    %1922 = vmatpush.msra.mxu0 0.0
    %1923 = vmatpush.msra.mxu0 0.0
    %1924 = vmatpush.msra.mxu0 0.0
    %1925 = vmatpush.msra.mxu0 0.0
    %1926 = vmatpush.msra.mxu0 0.0
    %1927 = vmatpush.msra.mxu0 0.0
    %1928 = vmatpush.msra.mxu0 0.0
    %1929 = vmatpush.msra.mxu0 0.0
    %1930 = vmatpush.msra.mxu0 %v1912
    %1931 = vmatpush.msra.mxu0 %v1908
    %1932 = vmatmul.f32.gmra.mxu0 %v1704
    %v1933 = vpop.f32.mrf.mxu0
    %v1934 = vadd.f32 0.0, %v1933
    %1935 = vdwg.mxu0
    %1936 = vmatpush.msra.mxu0 0.0
    %1937 = vmatpush.msra.mxu0 0.0
    %1938 = vmatpush.msra.mxu0 0.0
    %1939 = vmatpush.msra.mxu0 0.0
    %1940 = vmatpush.msra.mxu0 0.0
    %1941 = vmatpush.msra.mxu0 0.0
    %1942 = vmatpush.msra.mxu0 0.0
    %1943 = vmatpush.msra.mxu0 0.0
    %1944 = vmatpush.msra.mxu0 0.0
    %1945 = vmatpush.msra.mxu0 0.0
    %1946 = vmatpush.msra.mxu0 0.0
    %1947 = vmatpush.msra.mxu0 0.0
    %1948 = vmatpush.msra.mxu0 0.0
    %1949 = vmatpush.msra.mxu0 0.0
    %1950 = vmatpush.msra.mxu0 %v1913
    %1951 = vmatpush.msra.mxu0 %v1909
    %1952 = vmatmul.f32.gmra.mxu0 %v1704
    %v1953 = vpop.f32.mrf.mxu0
    %v1954 = vadd.f32 0.0, %v1953
    %1955 = vdwg.mxu0
    %1956 = vmatpush.msra.mxu0 0.0
    %1957 = vmatpush.msra.mxu0 0.0
    %1958 = vmatpush.msra.mxu0 0.0
    %1959 = vmatpush.msra.mxu0 0.0
    %1960 = vmatpush.msra.mxu0 0.0
    %1961 = vmatpush.msra.mxu0 0.0
    %1962 = vmatpush.msra.mxu0 0.0
    %1963 = vmatpush.msra.mxu0 0.0
    %1964 = vmatpush.msra.mxu0 0.0
    %1965 = vmatpush.msra.mxu0 0.0
    %1966 = vmatpush.msra.mxu0 0.0
    %1967 = vmatpush.msra.mxu0 0.0
    %1968 = vmatpush.msra.mxu0 0.0
    %1969 = vmatpush.msra.mxu0 0.0
    %1970 = vmatpush.msra.mxu0 %v1914
    %1971 = vmatpush.msra.mxu0 %v1910
    %1972 = vmatmul.f32.gmra.mxu0 %v1704
    %v1973 = vpop.f32.mrf.mxu0
    %v1974 = vadd.f32 0.0, %v1973
    %1975 = vdwg.mxu0
    %1976 = vmatpush.msra.mxu0 0.0
    %1977 = vmatpush.msra.mxu0 0.0
    %1978 = vmatpush.msra.mxu0 0.0
    %1979 = vmatpush.msra.mxu0 0.0
    %1980 = vmatpush.msra.mxu0 0.0
    %1981 = vmatpush.msra.mxu0 0.0
    %1982 = vmatpush.msra.mxu0 0.0
    %1983 = vmatpush.msra.mxu0 0.0
    %1984 = vmatpush.msra.mxu0 0.0
    %1985 = vmatpush.msra.mxu0 0.0
    %1986 = vmatpush.msra.mxu0 0.0
    %1987 = vmatpush.msra.mxu0 0.0
    %1988 = vmatpush.msra.mxu0 0.0
    %1989 = vmatpush.msra.mxu0 0.0
    %1990 = vmatpush.msra.mxu0 %v1915
    %1991 = vmatpush.msra.mxu0 %v1911
    %1992 = vmatmul.f32.gmra.mxu0 %v1704
    %v1993 = vpop.f32.mrf.mxu0
    %v1994 = vadd.f32 0.0, %v1993
    %1995 = vdwg.mxu0
    %v1996 = vpack.c.bf16 %v1934, %v1934
    %v1997 = vld [vmem:[%s7] sm:$0xf]
    %v1998 = vld [vmem:[%s7 + $0x4] sm:$0xf]
    %v1999 = vld [vmem:[%s7 + $0x8] sm:$0xf]
    %v2000 = vld [vmem:[%s7 + $0xc] sm:$0xf]
    %v2001 = vld [vmem:[%s7 + $0x10] sm:$0xf]
    %v2002 = vld [vmem:[%s7 + $0x14] sm:$0xf]
    %v2003 = vld [vmem:[%s7 + $0x18] sm:$0xf]
    %v2004 = vld [vmem:[%s7 + $0x1c] sm:$0xf]
    %v2005 = vld [vmem:[%s7 + $0x20] sm:$0xf]
    %v2006 = vld [vmem:[%s7 + $0x24] sm:$0xf]
    %v2007 = vld [vmem:[%s7 + $0x28] sm:$0xf]
    %v2008 = vld [vmem:[%s7 + $0x2c] sm:$0xf]
    %v2009 = vld [vmem:[%s7 + $0x30] sm:$0xf]
    %v2010 = vld [vmem:[%s7 + $0x34] sm:$0xf]
    %v2011 = vld [vmem:[%s7 + $0x38] sm:$0xf]
    %v2012 = vld [vmem:[%s7 + $0x3c] sm:$0xf]
    %v2013 = vld [vmem:[%s8] sm:$0x1]
    %v2015 = vperm.slane %v2013, 0
    %v2033 = vunpack.c.l.b16 %v1997
    %v2034 = vunpack.c.l.b16 %v1998
    %v2035 = vunpack.c.l.b16 %v1999
    %v2036 = vunpack.c.l.b16 %v2000
    %v2037 = vunpack.c.l.b16 %v2001
    %v2038 = vunpack.c.l.b16 %v2002
    %v2039 = vunpack.c.l.b16 %v2003
    %v2040 = vunpack.c.l.b16 %v2004
    %v2041 = vunpack.c.l.b16 %v2005
    %v2042 = vunpack.c.l.b16 %v2006
    %v2043 = vunpack.c.l.b16 %v2007
    %v2044 = vunpack.c.l.b16 %v2008
    %v2045 = vunpack.c.l.b16 %v2009
    %v2046 = vunpack.c.l.b16 %v2010
    %v2047 = vunpack.c.l.b16 %v2011
    %v2048 = vunpack.c.l.b16 %v2012
    %v2049 = vpack.c.b16 %v2034, %v2033
    %v2050 = vpack.c.b16 %v2036, %v2035
    %v2051 = vpack.c.b16 %v2038, %v2037
    %v2052 = vpack.c.b16 %v2040, %v2039
    %v2053 = vpack.c.b16 %v2042, %v2041
    %v2054 = vpack.c.b16 %v2044, %v2043
    %v2055 = vpack.c.b16 %v2046, %v2045
    %v2056 = vpack.c.b16 %v2048, %v2047
    %2065 = vmatpush.bf16.msra.mxu0 %v2056
    %2066 = vmatpush.bf16.msra.mxu0 %v2055
    %2067 = vmatpush.bf16.msra.mxu0 %v2054
    %2068 = vmatpush.bf16.msra.mxu0 %v2053
    %2069 = vmatpush.bf16.msra.mxu0 %v2052
    %2070 = vmatpush.bf16.msra.mxu0 %v2051
    %2071 = vmatpush.bf16.msra.mxu0 %v2050
    %2072 = vmatpush.bf16.msra.mxu0 %v2049
    %2073 = vmatmul.bf16.gmra.mxu0 %v1996
    %v2074 = vpop.f32.mrf.mxu0
    %v2075 = vadd.f32 %v2015, %v2074
    %v2076 = vpop.f32.mrf.mxu0
    %2077 = vdwg.mxu0
    %v2078 = vmax.f32 %v2075, 0.0
    %v2079 = vld [vmem:[%s9] sm:$0xff]
    %v2080 = vld [vmem:[%s9 + $0x8] sm:$0xff]
    %v2081 = vld [vmem:[%s9 + $0x10] sm:$0xff]
    %v2082 = vld [vmem:[%s9 + $0x18] sm:$0xff]
    %v2083 = vld [vmem:[%s9 + $0x20] sm:$0xff]
    %v2084 = vld [vmem:[%s9 + $0x28] sm:$0xff]
    %v2085 = vld [vmem:[%s9 + $0x30] sm:$0xff]
    %v2086 = vld [vmem:[%s9 + $0x38] sm:$0xff]
    %v2087 = vld [vmem:[%s9 + $0x40] sm:$0xff]
    %v2088 = vld [vmem:[%s9 + $0x48] sm:$0xff]
    %v2089 = vld [vmem:[%s9 + $0x50] sm:$0xff]
    %v2090 = vld [vmem:[%s9 + $0x58] sm:$0xff]
    %v2091 = vld [vmem:[%s9 + $0x60] sm:$0xff]
    %v2092 = vld [vmem:[%s9 + $0x68] sm:$0xff]
    %v2093 = vld [vmem:[%s9 + $0x70] sm:$0xff]
    %v2094 = vld [vmem:[%s9 + $0x78] sm:$0xff]
    %v2095 = vpack.c.bf16 %v1954, %v1954
    %s2096 = scalar_lea.vmem %s7, 64
    %v2097 = vld [vmem:[%s2096] sm:$0xf]
    %v2098 = vld [vmem:[%s2096 + $0x4] sm:$0xf]
    %v2099 = vld [vmem:[%s2096 + $0x8] sm:$0xf]
    %v2100 = vld [vmem:[%s2096 + $0xc] sm:$0xf]
    %v2101 = vld [vmem:[%s2096 + $0x10] sm:$0xf]
    %v2102 = vld [vmem:[%s2096 + $0x14] sm:$0xf]
    %v2103 = vld [vmem:[%s2096 + $0x18] sm:$0xf]
    %v2104 = vld [vmem:[%s2096 + $0x1c] sm:$0xf]
    %v2105 = vld [vmem:[%s2096 + $0x20] sm:$0xf]
    %v2106 = vld [vmem:[%s2096 + $0x24] sm:$0xf]
    %v2107 = vld [vmem:[%s2096 + $0x28] sm:$0xf]
    %v2108 = vld [vmem:[%s2096 + $0x2c] sm:$0xf]
    %v2109 = vld [vmem:[%s2096 + $0x30] sm:$0xf]
    %v2110 = vld [vmem:[%s2096 + $0x34] sm:$0xf]
    %v2111 = vld [vmem:[%s2096 + $0x38] sm:$0xf]
    %v2112 = vld [vmem:[%s2096 + $0x3c] sm:$0xf]
    %v2113 = vld [vmem:[%s8 + $0x1] sm:$0x1]
    %v2115 = vperm.slane %v2113, 0
    %v2133 = vunpack.c.l.b16 %v2097
    %v2134 = vunpack.c.l.b16 %v2098
    %v2135 = vunpack.c.l.b16 %v2099
    %v2136 = vunpack.c.l.b16 %v2100
    %v2137 = vunpack.c.l.b16 %v2101
    %v2138 = vunpack.c.l.b16 %v2102
    %v2139 = vunpack.c.l.b16 %v2103
    %v2140 = vunpack.c.l.b16 %v2104
    %v2141 = vunpack.c.l.b16 %v2105
    %v2142 = vunpack.c.l.b16 %v2106
    %v2143 = vunpack.c.l.b16 %v2107
    %v2144 = vunpack.c.l.b16 %v2108
    %v2145 = vunpack.c.l.b16 %v2109
    %v2146 = vunpack.c.l.b16 %v2110
    %v2147 = vunpack.c.l.b16 %v2111
    %v2148 = vunpack.c.l.b16 %v2112
    %v2149 = vpack.c.b16 %v2134, %v2133
    %v2150 = vpack.c.b16 %v2136, %v2135
    %v2151 = vpack.c.b16 %v2138, %v2137
    %v2152 = vpack.c.b16 %v2140, %v2139
    %v2153 = vpack.c.b16 %v2142, %v2141
    %v2154 = vpack.c.b16 %v2144, %v2143
    %v2155 = vpack.c.b16 %v2146, %v2145
    %v2156 = vpack.c.b16 %v2148, %v2147
    %2165 = vmatpush.bf16.msra.mxu0 %v2156
    %2166 = vmatpush.bf16.msra.mxu0 %v2155
    %2167 = vmatpush.bf16.msra.mxu0 %v2154
    %2168 = vmatpush.bf16.msra.mxu0 %v2153
    %2169 = vmatpush.bf16.msra.mxu0 %v2152
    %2170 = vmatpush.bf16.msra.mxu0 %v2151
    %2171 = vmatpush.bf16.msra.mxu0 %v2150
    %2172 = vmatpush.bf16.msra.mxu0 %v2149
    %2173 = vmatmul.bf16.gmra.mxu0 %v2095
    %v2174 = vpop.f32.mrf.mxu0
    %v2175 = vadd.f32 %v2115, %v2174
    %v2176 = vpop.f32.mrf.mxu0
    %2177 = vdwg.mxu0
    %v2178 = vmax.f32 %v2175, 0.0
    %v2179 = vld [vmem:[%s9 + $0x80] sm:$0xff]
    %v2180 = vld [vmem:[%s9 + $0x88] sm:$0xff]
    %v2181 = vld [vmem:[%s9 + $0x90] sm:$0xff]
    %v2182 = vld [vmem:[%s9 + $0x98] sm:$0xff]
    %v2183 = vld [vmem:[%s9 + $0xa0] sm:$0xff]
    %v2184 = vld [vmem:[%s9 + $0xa8] sm:$0xff]
    %v2185 = vld [vmem:[%s9 + $0xb0] sm:$0xff]
    %v2186 = vld [vmem:[%s9 + $0xb8] sm:$0xff]
    %v2187 = vld [vmem:[%s9 + $0xc0] sm:$0xff]
    %v2188 = vld [vmem:[%s9 + $0xc8] sm:$0xff]
    %v2189 = vld [vmem:[%s9 + $0xd0] sm:$0xff]
    %v2190 = vld [vmem:[%s9 + $0xd8] sm:$0xff]
    %v2191 = vld [vmem:[%s9 + $0xe0] sm:$0xff]
    %v2192 = vld [vmem:[%s9 + $0xe8] sm:$0xff]
    %v2193 = vld [vmem:[%s9 + $0xf0] sm:$0xff]
    %v2194 = vld [vmem:[%s9 + $0xf8] sm:$0xff]
    %2195 = vmatpush.msra.mxu0 %v2194
    %2196 = vmatpush.msra.mxu0 %v2193
    %2197 = vmatpush.msra.mxu0 %v2192
    %2198 = vmatpush.msra.mxu0 %v2191
    %2199 = vmatpush.msra.mxu0 %v2190
    %2200 = vmatpush.msra.mxu0 %v2189
    %2201 = vmatpush.msra.mxu0 %v2188
    %2202 = vmatpush.msra.mxu0 %v2187
    %2203 = vmatpush.msra.mxu0 %v2186
    %2204 = vmatpush.msra.mxu0 %v2185
    %2205 = vmatpush.msra.mxu0 %v2184
    %2206 = vmatpush.msra.mxu0 %v2183
    %2207 = vmatpush.msra.mxu0 %v2182
    %2208 = vmatpush.msra.mxu0 %v2181
    %2209 = vmatpush.msra.mxu0 %v2180
    %2210 = vmatpush.msra.mxu0 %v2179
    %2211 = vmatmul.f32.gmra.mxu0 %v2178
    %v2212 = vpop.f32.mrf.mxu0
    %v2213 = vadd.f32 0.0, %v2212
    %2214 = vdwg.mxu0
    %2215 = vmatpush.msra.mxu0 %v2094
    %2216 = vmatpush.msra.mxu0 %v2093
    %2217 = vmatpush.msra.mxu0 %v2092
    %2218 = vmatpush.msra.mxu0 %v2091
    %2219 = vmatpush.msra.mxu0 %v2090
    %2220 = vmatpush.msra.mxu0 %v2089
    %2221 = vmatpush.msra.mxu0 %v2088
    %2222 = vmatpush.msra.mxu0 %v2087
    %2223 = vmatpush.msra.mxu0 %v2086
    %2224 = vmatpush.msra.mxu0 %v2085
    %2225 = vmatpush.msra.mxu0 %v2084
    %2226 = vmatpush.msra.mxu0 %v2083
    %2227 = vmatpush.msra.mxu0 %v2082
    %2228 = vmatpush.msra.mxu0 %v2081
    %2229 = vmatpush.msra.mxu0 %v2080
    %2230 = vmatpush.msra.mxu0 %v2079
    %2231 = vmatmul.f32.gmra.mxu0 %v2078
    %v2232 = vpop.f32.mrf.mxu0
    %v2233 = vadd.f32 %v2213, %v2232
    %2234 = vdwg.mxu0
    %v2235 = vpack.c.bf16 %v1974, %v1974
    %s2236 = scalar_lea.vmem %s7, 128
    %v2237 = vld [vmem:[%s2236] sm:$0xf]
    %v2238 = vld [vmem:[%s2236 + $0x4] sm:$0xf]
    %v2239 = vld [vmem:[%s2236 + $0x8] sm:$0xf]
    %v2240 = vld [vmem:[%s2236 + $0xc] sm:$0xf]
    %v2241 = vld [vmem:[%s2236 + $0x10] sm:$0xf]
    %v2242 = vld [vmem:[%s2236 + $0x14] sm:$0xf]
    %v2243 = vld [vmem:[%s2236 + $0x18] sm:$0xf]
    %v2244 = vld [vmem:[%s2236 + $0x1c] sm:$0xf]
    %v2245 = vld [vmem:[%s2236 + $0x20] sm:$0xf]
    %v2246 = vld [vmem:[%s2236 + $0x24] sm:$0xf]
    %v2247 = vld [vmem:[%s2236 + $0x28] sm:$0xf]
    %v2248 = vld [vmem:[%s2236 + $0x2c] sm:$0xf]
    %v2249 = vld [vmem:[%s2236 + $0x30] sm:$0xf]
    %v2250 = vld [vmem:[%s2236 + $0x34] sm:$0xf]
    %v2251 = vld [vmem:[%s2236 + $0x38] sm:$0xf]
    %v2252 = vld [vmem:[%s2236 + $0x3c] sm:$0xf]
    %v2253 = vld [vmem:[%s8 + $0x2] sm:$0x1]
    %v2255 = vperm.slane %v2253, 0
    %v2273 = vunpack.c.l.b16 %v2237
    %v2274 = vunpack.c.l.b16 %v2238
    %v2275 = vunpack.c.l.b16 %v2239
    %v2276 = vunpack.c.l.b16 %v2240
    %v2277 = vunpack.c.l.b16 %v2241
    %v2278 = vunpack.c.l.b16 %v2242
    %v2279 = vunpack.c.l.b16 %v2243
    %v2280 = vunpack.c.l.b16 %v2244
    %v2281 = vunpack.c.l.b16 %v2245
    %v2282 = vunpack.c.l.b16 %v2246
    %v2283 = vunpack.c.l.b16 %v2247
    %v2284 = vunpack.c.l.b16 %v2248
    %v2285 = vunpack.c.l.b16 %v2249
    %v2286 = vunpack.c.l.b16 %v2250
    %v2287 = vunpack.c.l.b16 %v2251
    %v2288 = vunpack.c.l.b16 %v2252
    %v2289 = vpack.c.b16 %v2274, %v2273
    %v2290 = vpack.c.b16 %v2276, %v2275
    %v2291 = vpack.c.b16 %v2278, %v2277
    %v2292 = vpack.c.b16 %v2280, %v2279
    %v2293 = vpack.c.b16 %v2282, %v2281
    %v2294 = vpack.c.b16 %v2284, %v2283
    %v2295 = vpack.c.b16 %v2286, %v2285
    %v2296 = vpack.c.b16 %v2288, %v2287
    %2305 = vmatpush.bf16.msra.mxu0 %v2296
    %2306 = vmatpush.bf16.msra.mxu0 %v2295
    %2307 = vmatpush.bf16.msra.mxu0 %v2294
    %2308 = vmatpush.bf16.msra.mxu0 %v2293
    %2309 = vmatpush.bf16.msra.mxu0 %v2292
    %2310 = vmatpush.bf16.msra.mxu0 %v2291
    %2311 = vmatpush.bf16.msra.mxu0 %v2290
    %2312 = vmatpush.bf16.msra.mxu0 %v2289
    %2313 = vmatmul.bf16.gmra.mxu0 %v2235
    %v2314 = vpop.f32.mrf.mxu0
    %v2315 = vadd.f32 %v2255, %v2314
    %v2316 = vpop.f32.mrf.mxu0
    %2317 = vdwg.mxu0
    %v2318 = vmax.f32 %v2315, 0.0
    %v2319 = vld [vmem:[%s9 + $0x100] sm:$0xff]
    %v2320 = vld [vmem:[%s9 + $0x108] sm:$0xff]
    %v2321 = vld [vmem:[%s9 + $0x110] sm:$0xff]
    %v2322 = vld [vmem:[%s9 + $0x118] sm:$0xff]
    %v2323 = vld [vmem:[%s9 + $0x120] sm:$0xff]
    %v2324 = vld [vmem:[%s9 + $0x128] sm:$0xff]
    %v2325 = vld [vmem:[%s9 + $0x130] sm:$0xff]
    %v2326 = vld [vmem:[%s9 + $0x138] sm:$0xff]
    %v2327 = vld [vmem:[%s9 + $0x140] sm:$0xff]
    %v2328 = vld [vmem:[%s9 + $0x148] sm:$0xff]
    %v2329 = vld [vmem:[%s9 + $0x150] sm:$0xff]
    %v2330 = vld [vmem:[%s9 + $0x158] sm:$0xff]
    %v2331 = vld [vmem:[%s9 + $0x160] sm:$0xff]
    %v2332 = vld [vmem:[%s9 + $0x168] sm:$0xff]
    %v2333 = vld [vmem:[%s9 + $0x170] sm:$0xff]
    %v2334 = vld [vmem:[%s9 + $0x178] sm:$0xff]
    %2335 = vmatpush.msra.mxu0 %v2334
    %2336 = vmatpush.msra.mxu0 %v2333
    %2337 = vmatpush.msra.mxu0 %v2332
    %2338 = vmatpush.msra.mxu0 %v2331
    %2339 = vmatpush.msra.mxu0 %v2330
    %2340 = vmatpush.msra.mxu0 %v2329
    %2341 = vmatpush.msra.mxu0 %v2328
    %2342 = vmatpush.msra.mxu0 %v2327
    %2343 = vmatpush.msra.mxu0 %v2326
    %2344 = vmatpush.msra.mxu0 %v2325
    %2345 = vmatpush.msra.mxu0 %v2324
    %2346 = vmatpush.msra.mxu0 %v2323
    %2347 = vmatpush.msra.mxu0 %v2322
    %2348 = vmatpush.msra.mxu0 %v2321
    %2349 = vmatpush.msra.mxu0 %v2320
    %2350 = vmatpush.msra.mxu0 %v2319
    %2351 = vmatmul.f32.gmra.mxu0 %v2318
    %v2352 = vpop.f32.mrf.mxu0
    %v2353 = vadd.f32 0.0, %v2352
    %2354 = vdwg.mxu0
    %v2355 = vadd.f32 %v2233, %v2353
    %v2356 = vpack.c.bf16 %v1994, %v1994
    %s2357 = scalar_lea.vmem %s7, 192
    %v2358 = vld [vmem:[%s2357] sm:$0xf]
    %v2359 = vld [vmem:[%s2357 + $0x4] sm:$0xf]
    %v2360 = vld [vmem:[%s2357 + $0x8] sm:$0xf]
    %v2361 = vld [vmem:[%s2357 + $0xc] sm:$0xf]
    %v2362 = vld [vmem:[%s2357 + $0x10] sm:$0xf]
    %v2363 = vld [vmem:[%s2357 + $0x14] sm:$0xf]
    %v2364 = vld [vmem:[%s2357 + $0x18] sm:$0xf]
    %v2365 = vld [vmem:[%s2357 + $0x1c] sm:$0xf]
    %v2366 = vld [vmem:[%s2357 + $0x20] sm:$0xf]
    %v2367 = vld [vmem:[%s2357 + $0x24] sm:$0xf]
    %v2368 = vld [vmem:[%s2357 + $0x28] sm:$0xf]
    %v2369 = vld [vmem:[%s2357 + $0x2c] sm:$0xf]
    %v2370 = vld [vmem:[%s2357 + $0x30] sm:$0xf]
    %v2371 = vld [vmem:[%s2357 + $0x34] sm:$0xf]
    %v2372 = vld [vmem:[%s2357 + $0x38] sm:$0xf]
    %v2373 = vld [vmem:[%s2357 + $0x3c] sm:$0xf]
    %v2374 = vld [vmem:[%s8 + $0x3] sm:$0x1]
    %v2376 = vperm.slane %v2374, 0
    %v2394 = vunpack.c.l.b16 %v2358
    %v2395 = vunpack.c.l.b16 %v2359
    %v2396 = vunpack.c.l.b16 %v2360
    %v2397 = vunpack.c.l.b16 %v2361
    %v2398 = vunpack.c.l.b16 %v2362
    %v2399 = vunpack.c.l.b16 %v2363
    %v2400 = vunpack.c.l.b16 %v2364
    %v2401 = vunpack.c.l.b16 %v2365
    %v2402 = vunpack.c.l.b16 %v2366
    %v2403 = vunpack.c.l.b16 %v2367
    %v2404 = vunpack.c.l.b16 %v2368
    %v2405 = vunpack.c.l.b16 %v2369
    %v2406 = vunpack.c.l.b16 %v2370
    %v2407 = vunpack.c.l.b16 %v2371
    %v2408 = vunpack.c.l.b16 %v2372
    %v2409 = vunpack.c.l.b16 %v2373
    %v2410 = vpack.c.b16 %v2395, %v2394
    %v2411 = vpack.c.b16 %v2397, %v2396
    %v2412 = vpack.c.b16 %v2399, %v2398
    %v2413 = vpack.c.b16 %v2401, %v2400
    %v2414 = vpack.c.b16 %v2403, %v2402
    %v2415 = vpack.c.b16 %v2405, %v2404
    %v2416 = vpack.c.b16 %v2407, %v2406
    %v2417 = vpack.c.b16 %v2409, %v2408
    %2426 = vmatpush.bf16.msra.mxu0 %v2417
    %2427 = vmatpush.bf16.msra.mxu0 %v2416
    %2428 = vmatpush.bf16.msra.mxu0 %v2415
    %2429 = vmatpush.bf16.msra.mxu0 %v2414
    %2430 = vmatpush.bf16.msra.mxu0 %v2413
    %2431 = vmatpush.bf16.msra.mxu0 %v2412
    %2432 = vmatpush.bf16.msra.mxu0 %v2411
    %2433 = vmatpush.bf16.msra.mxu0 %v2410
    %2434 = vmatmul.bf16.gmra.mxu0 %v2356
    %v2435 = vpop.f32.mrf.mxu0
    %v2436 = vadd.f32 %v2376, %v2435
    %v2437 = vpop.f32.mrf.mxu0
    %2438 = vdwg.mxu0
    %v2439 = vmax.f32 %v2436, 0.0
    %v2440 = vld [vmem:[%s9 + $0x180] sm:$0xff]
    %v2441 = vld [vmem:[%s9 + $0x188] sm:$0xff]
    %v2442 = vld [vmem:[%s9 + $0x190] sm:$0xff]
    %v2443 = vld [vmem:[%s9 + $0x198] sm:$0xff]
    %v2444 = vld [vmem:[%s9 + $0x1a0] sm:$0xff]
    %v2445 = vld [vmem:[%s9 + $0x1a8] sm:$0xff]
    %v2446 = vld [vmem:[%s9 + $0x1b0] sm:$0xff]
    %v2447 = vld [vmem:[%s9 + $0x1b8] sm:$0xff]
    %v2448 = vld [vmem:[%s9 + $0x1c0] sm:$0xff]
    %v2449 = vld [vmem:[%s9 + $0x1c8] sm:$0xff]
    %v2450 = vld [vmem:[%s9 + $0x1d0] sm:$0xff]
    %v2451 = vld [vmem:[%s9 + $0x1d8] sm:$0xff]
    %v2452 = vld [vmem:[%s9 + $0x1e0] sm:$0xff]
    %v2453 = vld [vmem:[%s9 + $0x1e8] sm:$0xff]
    %v2454 = vld [vmem:[%s9 + $0x1f0] sm:$0xff]
    %v2455 = vld [vmem:[%s9 + $0x1f8] sm:$0xff]
    %2456 = vmatpush.msra.mxu0 %v2455
    %2457 = vmatpush.msra.mxu0 %v2454
    %2458 = vmatpush.msra.mxu0 %v2453
    %2459 = vmatpush.msra.mxu0 %v2452
    %2460 = vmatpush.msra.mxu0 %v2451
    %2461 = vmatpush.msra.mxu0 %v2450
    %2462 = vmatpush.msra.mxu0 %v2449
    %2463 = vmatpush.msra.mxu0 %v2448
    %2464 = vmatpush.msra.mxu0 %v2447
    %2465 = vmatpush.msra.mxu0 %v2446
    %2466 = vmatpush.msra.mxu0 %v2445
    %2467 = vmatpush.msra.mxu0 %v2444
    %2468 = vmatpush.msra.mxu0 %v2443
    %2469 = vmatpush.msra.mxu0 %v2442
    %2470 = vmatpush.msra.mxu0 %v2441
    %2471 = vmatpush.msra.mxu0 %v2440
    %2472 = vmatmul.f32.gmra.mxu0 %v2439
    %v2473 = vpop.f32.mrf.mxu0
    %v2474 = vadd.f32 0.0, %v2473
    %2475 = vdwg.mxu0
    %v2476 = vadd.f32 %v2355, %v2474
    %v2477 = vld [vmem:[%s10] sm:$0x1]
    %v2479 = vperm.slane %v2477, 0
    %v2481 = vadd.f32 %v2476, %v2479
    %vm2482 = vcmask 25600
    %2483 = vst.msk [vmem:[#allocation7] sm:$0x3] %vm2482, %v2481
    // Predicated region
    $region62: #{multi_attention_rnn.1} parent=1 // pred_check
      _
    $region63: #{multi_attention_rnn.1} parent=1 // pred_check_branch
      %2485 = sbr.rel (0) target = $region65
    $region64: #{multi_attention_rnn.1} parent=1 // pred_region
      %2487 = vsyncadd [#allocation5], 0
      %s2489 = sshll.u32 [#allocation7], 4
      %s2490 = int_to_ptr.vmem [resolvable:$true] %s2489
      %s2491 = sshll.u32 %s14, 4
      %s2492 = int_to_ptr.hbm [resolvable:$true] %s2491
      %2494 = dma.vmem_to_hbm [thread:$0]  %s2490, 32, %s2492, [#allocation5]
    $region65: #{multi_attention_rnn.1} parent=1 // pred_fallthru
      _
    // Predicated region
    $region66: #{multi_attention_rnn.1} parent=1 // pred_check
      _
    $region67: #{multi_attention_rnn.1} parent=1 // pred_check_branch
      %2496 = sbr.rel (0) target = $region69
    $region68: #{multi_attention_rnn.1} parent=1 // pred_region
      %2498 = dma.done [#allocation5], 32
    $region69: #{multi_attention_rnn.1} parent=1 // pred_fallthru
      _
    %2499 = vsyncpa [#allocation5], 1
    %2500 = vsyncpa [#allocation6], 1

</llo_original>
